<compile_context>
chip_gen: v7x
topology: tpu7x:2x2x1
jax: 0.10.0
libtpu: 0.0.40
codegen_flags: <defaults>
</compile_context>

<pallas_src>
import functools
import math

import jax
import jax.numpy as jnp
from jax import lax
from jax.experimental import pallas as pl
from jax.experimental.pallas import tpu as pltpu

_NEG = -1e30   # masked-max sentinel; logits stay f32 so this never overflows.
_POS_W = 4     # positive window: keys in [t-4,  t+4)
_WIN_W = 16    # full window:     keys in [t-16, t+16)  (negatives = window \ positives)


def _siglip_kernel(m_lo, m_c, m_hi, a_lo, a_c, a_hi, bias_ref,
                   loss_ref, corr_ref, *, T, TQ):
    """One (batch b, query block q) step — fully independent of every other step."""
    q = pl.program_id(1)
    bias = bias_ref[0, 0]
    slab = 3 * TQ

    # ---- band masks from a single diagonal-offset tensor (shared by both dirs) ----
    rg = lax.broadcasted_iota(jnp.int32, (TQ, slab), 0) + q * TQ          # query index
    cg = lax.broadcasted_iota(jnp.int32, (TQ, slab), 1) + (q - 1) * TQ    # key index
    d = cg - rg
    valid = (rg < T) & (cg >= 0) & (cg < T)     # clamped slab parts get out-of-range cg
    pos = (d >= -_POS_W) & (d < _POS_W) & valid
    win = (d >= -_WIN_W) & (d < _WIN_W) & valid
    neg = win & jnp.logical_not(pos)
    posf = pos.astype(jnp.float32)
    negf = neg.astype(jnp.float32)
    row_valid = (lax.broadcasted_iota(jnp.int32, (TQ, 1), 0) + q * TQ) < T

    # key slabs (pre-normalized bf16; motion already carries logit_scale)
    a_keys = jnp.concatenate([a_lo[0], a_c[0], a_hi[0]], axis=0)   # (slab, Dp)
    m_keys = jnp.concatenate([m_lo[0], m_c[0], m_hi[0]], axis=0)   # (slab, Dp)

    def one_direction(queries, keys):
        # (TQ, Dp) x (slab, Dp)^T -> (TQ, slab), f32 MXU accumulation
        L = lax.dot_general(queries, keys, (((1,), (1,)), ((), ())),
                            preferred_element_type=jnp.float32) + bias
        # logsigmoid(+/-L) share one exp + one log1p per element
        lg = jnp.log1p(jnp.exp(-jnp.abs(L)))
        loglik = jnp.sum(posf * (jnp.minimum(L, 0.0) - lg)
                         + negf * (-jnp.maximum(L, 0.0) - lg))
        # argmax-in-positives correctness (ties favor positives, matching concat order)
        pmax = jnp.max(jnp.where(pos, L, _NEG), axis=1, keepdims=True)
        nmax = jnp.max(jnp.where(neg, L, _NEG), axis=1, keepdims=True)
        corr = jnp.sum(jnp.where(row_valid & (pmax >= nmax), 1.0, 0.0))
        return loglik, corr

    ll1, c1 = one_direction(m_c[0], a_keys)    # motion -> audio
    ll2, c2 = one_direction(a_c[0], m_keys)    # audio  -> motion

    # lane-dense (8,128) partial tiles (unmasked stores); reduced in the wrapper.
    loss_ref[...] = jnp.full(loss_ref.shape, -(ll1 + ll2), dtype=jnp.float32)
    corr_ref[...] = jnp.full(corr_ref.shape, c1 + c2, dtype=jnp.float32)


def _pick_query_block(T):
    # 256-row query blocks fill the 256-wide MXU of v6e / v7x; older 128-wide MXUs
    # (v5e and earlier) are already saturated at 128.  Don't over-pad tiny T.
    try:
        kind = jax.devices()[0].device_kind.lower()
    except Exception:
        kind = ""
    pref = 128 if any(v in kind for v in ("v2", "v3", "v4", "v5")) else 256
    return min(pref, max(128, ((T + 127) // 128) * 128))


def local_siglip_loss(motion_feature, audio_feature, logit_scale, logit_bias):
    """motion_feature, audio_feature: (B, T, D). Returns (loss, correct) scalars."""
    B, T, D = motion_feature.shape
    assert audio_feature.shape == (B, T, D)

    TQ = _pick_query_block(T)
    Dp = ((D + 127) // 128) * 128          # lane-dense feature dim (full MXU K)
    Tp = ((T + TQ - 1) // TQ) * TQ
    NQ = Tp // TQ

    scale = jnp.exp(jnp.asarray(logit_scale, jnp.float32))
    bias = jnp.asarray(logit_bias, jnp.float32).reshape(1, 1)

    # Normalize once with plain XLA (F.normalize, eps=1e-12), fold logit_scale into
    # the motion features, cast to bf16 (halves DMA bytes), zero-pad to (Tp, Dp).
    def prep(x, s):
        x = x.astype(jnp.float32)
        x = x * lax.rsqrt(jnp.maximum(jnp.sum(x * x, axis=-1, keepdims=True), 1e-24))
        x = (x * s).astype(jnp.bfloat16)
        return jnp.pad(x, ((0, 0), (0, Tp - T), (0, Dp - D)))

    m = prep(motion_feature, scale)
    a = prep(audio_feature, jnp.float32(1.0))

    def slab_spec(off):
        def imap(b, qi):
            kb = jnp.minimum(jnp.maximum(qi + off, 0), NQ - 1)   # clamp at the edges
            return (b, kb, 0)
        return pl.BlockSpec((1, TQ, Dp), imap)

    in_specs = [slab_spec(-1), slab_spec(0), slab_spec(+1),        # motion lo/center/hi
                slab_spec(-1), slab_spec(0), slab_spec(+1),        # audio  lo/center/hi
                pl.BlockSpec(memory_space=pltpu.MemorySpace.SMEM)]  # bias scalar

    out_specs = (pl.BlockSpec((1, 1, 8, 128), lambda b, qi: (b, qi, 0, 0)),
                 pl.BlockSpec((1, 1, 8, 128), lambda b, qi: (b, qi, 0, 0)))

    # Explicit VMEM budget: 6 bf16 input blocks (double-buffered) + 2 bf16 key-slab
    # copies + 2 f32 logits tiles + mask temporaries, with ~50% headroom.
    block_bytes = TQ * Dp * 2
    working = 2 * 3 * block_bytes + 2 * TQ * 3 * TQ * 4 + 8 * TQ * 3 * TQ * 4
    vmem_bytes = int(1.5 * (6 * 2 * block_bytes + working)) + (4 << 20)
    vmem_bytes = min(max(vmem_bytes, 32 << 20), 128 << 20)

    kernel = functools.partial(_siglip_kernel, T=T, TQ=TQ)

    loss_p, corr_p = pl.pallas_call(
        kernel,
        out_shape=(jax.ShapeDtypeStruct((B, NQ, 8, 128), jnp.float32),
                   jax.ShapeDtypeStruct((B, NQ, 8, 128), jnp.float32)),
        grid_spec=pltpu.PrefetchScalarGridSpec(
            num_scalar_prefetch=0,
            grid=(B, NQ),
            in_specs=in_specs,
            out_specs=out_specs,
            scratch_shapes=[]),
        compiler_params=pltpu.CompilerParams(
            dimension_semantics=("parallel", "parallel"),
            vmem_limit_bytes=vmem_bytes),
    )(m, m, m, a, a, a, bias)

    denom = 1.0 / (2.0 * T * B)
    loss = jnp.sum(loss_p[:, :, 0, 0]) * denom
    correct = jnp.sum(corr_p[:, :, 0, 0]) * denom
    return loss, correct


if __name__ == "__main__":
    # Deterministic parameter init matching LocalSigLIPLoss.__init__
    logit_scale = jnp.float32(math.log(1.0 / 0.07))   # nn.Parameter(log(1/0.07))
    logit_bias = jnp.float32(0.0)                      # nn.Parameter(0.0)

    # Small shapes consistent with the module: batch=2, seq(T)=8, hidden(D)=32
    key = jax.random.PRNGKey(0)
    k1, k2 = jax.random.split(key)
    motion = jax.random.normal(k1, (2, 8, 32), dtype=jnp.float32)
    audio = jax.random.normal(k2, (2, 8, 32), dtype=jnp.float32)

    loss, correct = jax.jit(local_siglip_loss)(motion, audio, logit_scale, logit_bias)
    jax.block_until_ready((loss, correct))
    print("KERNEL_OK")
</pallas_src>

<mosaic_0001>
module attributes {stable_mosaic.version = 11 : i64} {
  func.func @_siglip_kernel(%arg0: i32, %arg1: i32, %arg2: memref<1x128x128xbf16, #tpu.memory_space<vmem>>, %arg3: memref<1x128x128xbf16, #tpu.memory_space<vmem>>, %arg4: memref<1x128x128xbf16, #tpu.memory_space<vmem>>, %arg5: memref<1x128x128xbf16, #tpu.memory_space<vmem>>, %arg6: memref<1x128x128xbf16, #tpu.memory_space<vmem>>, %arg7: memref<1x128x128xbf16, #tpu.memory_space<vmem>>, %arg8: memref<1x1xf32, #tpu.memory_space<smem>>, %arg9: memref<1x1x8x128xf32, #tpu.memory_space<vmem>>, %arg10: memref<1x1x8x128xf32, #tpu.memory_space<vmem>>) attributes {dimension_semantics = [#tpu.dimension_semantics<parallel>, #tpu.dimension_semantics<parallel>], iteration_bounds = array<i64: 2, 1>, scalar_prefetch = 0 : i64, scratch_operands = 0 : i64, tpu.core_type = #tpu.core_type<tc>, window_params = [{transform_indices = @transform_0, window_bounds = array<i64: 1, 128, 128>}, {transform_indices = @transform_1, window_bounds = array<i64: 1, 128, 128>}, {transform_indices = @transform_2, window_bounds = array<i64: 1, 128, 128>}, {transform_indices = @transform_3, window_bounds = array<i64: 1, 128, 128>}, {transform_indices = @transform_4, window_bounds = array<i64: 1, 128, 128>}, {transform_indices = @transform_5, window_bounds = array<i64: 1, 128, 128>}, {transform_indices = @transform_6, window_bounds = array<i64: 1, 1>}, {transform_indices = @transform_7, window_bounds = array<i64: 1, 1, 8, 128>}, {transform_indices = @transform_8, window_bounds = array<i64: 1, 1, 8, 128>}]} {
    %c0 = arith.constant 0 : index
    %c0_0 = arith.constant 0 : index
    %0 = memref.load %arg8[%c0, %c0_0] : memref<1x1xf32, #tpu.memory_space<smem>>
    %1 = tpu.iota {dimensions = array<i32: 0>} : vector<128x384xi32>
    %c128_i32 = arith.constant 128 : i32
    %2 = arith.muli %arg1, %c128_i32 : i32
    %3 = vector.broadcast %2 : i32 to vector<128x384xi32>
    %4 = arith.addi %1, %3 : vector<128x384xi32>
    %5 = tpu.iota {dimensions = array<i32: 1>} : vector<128x384xi32>
    %c1_i32 = arith.constant 1 : i32
    %6 = arith.subi %arg1, %c1_i32 : i32
    %c128_i32_1 = arith.constant 128 : i32
    %7 = arith.muli %6, %c128_i32_1 : i32
    %8 = vector.broadcast %7 : i32 to vector<128x384xi32>
    %9 = arith.addi %5, %8 : vector<128x384xi32>
    %10 = arith.subi %9, %4 : vector<128x384xi32>
    %c8_i32 = arith.constant 8 : i32
    %11 = vector.broadcast %c8_i32 : i32 to vector<128x384xi32>
    %12 = arith.cmpi slt, %4, %11 : vector<128x384xi32>
    %c0_i32 = arith.constant 0 : i32
    %13 = vector.broadcast %c0_i32 : i32 to vector<128x384xi32>
    %14 = arith.cmpi sge, %9, %13 : vector<128x384xi32>
    %15 = arith.andi %12, %14 : vector<128x384xi1>
    %c8_i32_2 = arith.constant 8 : i32
    %16 = vector.broadcast %c8_i32_2 : i32 to vector<128x384xi32>
    %17 = arith.cmpi slt, %9, %16 : vector<128x384xi32>
    %18 = arith.andi %15, %17 : vector<128x384xi1>
    %c-4_i32 = arith.constant -4 : i32
    %19 = vector.broadcast %c-4_i32 : i32 to vector<128x384xi32>
    %20 = arith.cmpi sge, %10, %19 : vector<128x384xi32>
    %c4_i32 = arith.constant 4 : i32
    %21 = vector.broadcast %c4_i32 : i32 to vector<128x384xi32>
    %22 = arith.cmpi slt, %10, %21 : vector<128x384xi32>
    %23 = arith.andi %20, %22 : vector<128x384xi1>
    %24 = arith.andi %23, %18 : vector<128x384xi1>
    %c-16_i32 = arith.constant -16 : i32
    %25 = vector.broadcast %c-16_i32 : i32 to vector<128x384xi32>
    %26 = arith.cmpi sge, %10, %25 : vector<128x384xi32>
    %c16_i32 = arith.constant 16 : i32
    %27 = vector.broadcast %c16_i32 : i32 to vector<128x384xi32>
    %28 = arith.cmpi slt, %10, %27 : vector<128x384xi32>
    %29 = arith.andi %26, %28 : vector<128x384xi1>
    %30 = arith.andi %29, %18 : vector<128x384xi1>
    %cst = arith.constant dense<true> : vector<128x384xi1>
    %31 = arith.xori %24, %cst : vector<128x384xi1>
    %32 = arith.andi %30, %31 : vector<128x384xi1>
    %33 = arith.extui %24 : vector<128x384xi1> to vector<128x384xi32>
    %34 = arith.sitofp %33 : vector<128x384xi32> to vector<128x384xf32>
    %35 = arith.extui %32 : vector<128x384xi1> to vector<128x384xi32>
    %36 = arith.sitofp %35 : vector<128x384xi32> to vector<128x384xf32>
    %37 = tpu.iota {dimensions = array<i32: 0>} : vector<128x1xi32>
    %c128_i32_3 = arith.constant 128 : i32
    %38 = arith.muli %arg1, %c128_i32_3 : i32
    %39 = vector.broadcast %38 : i32 to vector<128x1xi32>
    %40 = arith.addi %37, %39 : vector<128x1xi32>
    %c8_i32_4 = arith.constant 8 : i32
    %41 = vector.broadcast %c8_i32_4 : i32 to vector<128x1xi32>
    %42 = arith.cmpi slt, %40, %41 : vector<128x1xi32>
    %c0_5 = arith.constant 0 : index
    %c0_6 = arith.constant 0 : index
    %c0_7 = arith.constant 0 : index
    %43 = vector.load %arg5[%c0_5, %c0_6, %c0_7] : memref<1x128x128xbf16, #tpu.memory_space<vmem>>, vector<1x128x128xbf16>
    %44 = vector.shape_cast %43 : vector<1x128x128xbf16> to vector<128x128xbf16>
    %c0_8 = arith.constant 0 : index
    %c0_9 = arith.constant 0 : index
    %c0_10 = arith.constant 0 : index
    %45 = vector.load %arg6[%c0_8, %c0_9, %c0_10] : memref<1x128x128xbf16, #tpu.memory_space<vmem>>, vector<1x128x128xbf16>
    %46 = vector.shape_cast %45 : vector<1x128x128xbf16> to vector<128x128xbf16>
    %c0_11 = arith.constant 0 : index
    %c0_12 = arith.constant 0 : index
    %c0_13 = arith.constant 0 : index
    %47 = vector.load %arg7[%c0_11, %c0_12, %c0_13] : memref<1x128x128xbf16, #tpu.memory_space<vmem>>, vector<1x128x128xbf16>
    %48 = vector.shape_cast %47 : vector<1x128x128xbf16> to vector<128x128xbf16>
    %49 = tpu.concatenate %44, %46, %48 in 0 : vector<128x128xbf16>, vector<128x128xbf16>, vector<128x128xbf16> -> vector<384x128xbf16>
    %c0_14 = arith.constant 0 : index
    %c0_15 = arith.constant 0 : index
    %c0_16 = arith.constant 0 : index
    %50 = vector.load %arg2[%c0_14, %c0_15, %c0_16] : memref<1x128x128xbf16, #tpu.memory_space<vmem>>, vector<1x128x128xbf16>
    %51 = vector.shape_cast %50 : vector<1x128x128xbf16> to vector<128x128xbf16>
    %c0_17 = arith.constant 0 : index
    %c0_18 = arith.constant 0 : index
    %c0_19 = arith.constant 0 : index
    %52 = vector.load %arg3[%c0_17, %c0_18, %c0_19] : memref<1x128x128xbf16, #tpu.memory_space<vmem>>, vector<1x128x128xbf16>
    %53 = vector.shape_cast %52 : vector<1x128x128xbf16> to vector<128x128xbf16>
    %c0_20 = arith.constant 0 : index
    %c0_21 = arith.constant 0 : index
    %c0_22 = arith.constant 0 : index
    %54 = vector.load %arg4[%c0_20, %c0_21, %c0_22] : memref<1x128x128xbf16, #tpu.memory_space<vmem>>, vector<1x128x128xbf16>
    %55 = vector.shape_cast %54 : vector<1x128x128xbf16> to vector<128x128xbf16>
    %56 = tpu.concatenate %51, %53, %55 in 0 : vector<128x128xbf16>, vector<128x128xbf16>, vector<128x128xbf16> -> vector<384x128xbf16>
    %c0_23 = arith.constant 0 : index
    %c0_24 = arith.constant 0 : index
    %c0_25 = arith.constant 0 : index
    %57 = vector.load %arg3[%c0_23, %c0_24, %c0_25] : memref<1x128x128xbf16, #tpu.memory_space<vmem>>, vector<1x128x128xbf16>
    %58 = vector.shape_cast %57 : vector<1x128x128xbf16> to vector<128x128xbf16>
    %cst_26 = arith.constant dense<0.000000e+00> : vector<128x384xf32>
    %59 = tpu.matmul %58, %49, %cst_26 {dimension_numbers = #tpu.dot_dimension_numbers<[1], [1], [0], [0], [0, 0, 1, 0], [], []>} : vector<128x128xbf16>, vector<384x128xbf16>, vector<128x384xf32> -> vector<128x384xf32>
    %60 = vector.broadcast %0 : f32 to vector<128x384xf32>
    %61 = arith.addf %59, %60 : vector<128x384xf32>
    %62 = math.absf %61 : vector<128x384xf32>
    %cst_27 = arith.constant 0.000000e+00 : f32
    %63 = vector.broadcast %cst_27 : f32 to vector<128x384xf32>
    %64 = arith.subf %63, %62 : vector<128x384xf32>
    %65 = math.exp %64 : vector<128x384xf32>
    %66 = math.log1p %65 : vector<128x384xf32>
    %cst_28 = arith.constant 0.000000e+00 : f32
    %67 = vector.broadcast %cst_28 : f32 to vector<128x384xf32>
    %68 = arith.minimumf %61, %67 : vector<128x384xf32>
    %69 = arith.subf %68, %66 : vector<128x384xf32>
    %70 = arith.mulf %34, %69 : vector<128x384xf32>
    %cst_29 = arith.constant 0.000000e+00 : f32
    %71 = vector.broadcast %cst_29 : f32 to vector<128x384xf32>
    %72 = arith.maximumf %61, %71 : vector<128x384xf32>
    %cst_30 = arith.constant 0.000000e+00 : f32
    %73 = vector.broadcast %cst_30 : f32 to vector<128x384xf32>
    %74 = arith.subf %73, %72 : vector<128x384xf32>
    %75 = arith.subf %74, %66 : vector<128x384xf32>
    %76 = arith.mulf %36, %75 : vector<128x384xf32>
    %77 = arith.addf %70, %76 : vector<128x384xf32>
    %78 = vector.shape_cast %77 : vector<128x384xf32> to vector<1x128x384xf32>
    %cst_31 = arith.constant dense<0.000000e+00> : vector<1xf32>
    %79 = vector.multi_reduction <add>, %78, %cst_31 [1, 2] : vector<1x128x384xf32> to vector<1xf32>
    %80 = vector.shape_cast %79 : vector<1xf32> to vector<1x1x1xf32>
    %81 = vector.extract %80[0, 0, 0] : f32 from vector<1x1x1xf32>
    %cst_32 = arith.constant -1.000000e+30 : f32
    %82 = vector.broadcast %cst_32 : f32 to vector<128x384xf32>
    %83 = arith.select %24, %61, %82 : vector<128x384xi1>, vector<128x384xf32>
    %cst_33 = arith.constant dense<0xFF800000> : vector<128xf32>
    %84 = vector.multi_reduction <maximumf>, %83, %cst_33 [1] : vector<128x384xf32> to vector<128xf32>
    %85 = vector.shape_cast %84 : vector<128xf32> to vector<128x1xf32>
    %cst_34 = arith.constant -1.000000e+30 : f32
    %86 = vector.broadcast %cst_34 : f32 to vector<128x384xf32>
    %87 = arith.select %32, %61, %86 : vector<128x384xi1>, vector<128x384xf32>
    %cst_35 = arith.constant dense<0xFF800000> : vector<128xf32>
    %88 = vector.multi_reduction <maximumf>, %87, %cst_35 [1] : vector<128x384xf32> to vector<128xf32>
    %89 = vector.shape_cast %88 : vector<128xf32> to vector<128x1xf32>
    %90 = arith.cmpf oge, %85, %89 : vector<128x1xf32>
    %91 = arith.andi %42, %90 : vector<128x1xi1>
    %cst_36 = arith.constant 1.000000e+00 : f32
    %cst_37 = arith.constant 0.000000e+00 : f32
    %92 = vector.broadcast %cst_36 : f32 to vector<128x1xf32>
    %93 = vector.broadcast %cst_37 : f32 to vector<128x1xf32>
    %94 = arith.select %91, %92, %93 : vector<128x1xi1>, vector<128x1xf32>
    %95 = vector.shape_cast %94 : vector<128x1xf32> to vector<1x128x1xf32>
    %cst_38 = arith.constant dense<0.000000e+00> : vector<1xf32>
    %96 = vector.multi_reduction <add>, %95, %cst_38 [1, 2] : vector<1x128x1xf32> to vector<1xf32>
    %97 = vector.shape_cast %96 : vector<1xf32> to vector<1x1x1xf32>
    %98 = vector.extract %97[0, 0, 0] : f32 from vector<1x1x1xf32>
    %c0_39 = arith.constant 0 : index
    %c0_40 = arith.constant 0 : index
    %c0_41 = arith.constant 0 : index
    %99 = vector.load %arg6[%c0_39, %c0_40, %c0_41] : memref<1x128x128xbf16, #tpu.memory_space<vmem>>, vector<1x128x128xbf16>
    %100 = vector.shape_cast %99 : vector<1x128x128xbf16> to vector<128x128xbf16>
    %cst_42 = arith.constant dense<0.000000e+00> : vector<128x384xf32>
    %101 = tpu.matmul %100, %56, %cst_42 {dimension_numbers = #tpu.dot_dimension_numbers<[1], [1], [0], [0], [0, 0, 1, 0], [], []>} : vector<128x128xbf16>, vector<384x128xbf16>, vector<128x384xf32> -> vector<128x384xf32>
    %102 = vector.broadcast %0 : f32 to vector<128x384xf32>
    %103 = arith.addf %101, %102 : vector<128x384xf32>
    %104 = math.absf %103 : vector<128x384xf32>
    %cst_43 = arith.constant 0.000000e+00 : f32
    %105 = vector.broadcast %cst_43 : f32 to vector<128x384xf32>
    %106 = arith.subf %105, %104 : vector<128x384xf32>
    %107 = math.exp %106 : vector<128x384xf32>
    %108 = math.log1p %107 : vector<128x384xf32>
    %cst_44 = arith.constant 0.000000e+00 : f32
    %109 = vector.broadcast %cst_44 : f32 to vector<128x384xf32>
    %110 = arith.minimumf %103, %109 : vector<128x384xf32>
    %111 = arith.subf %110, %108 : vector<128x384xf32>
    %112 = arith.mulf %34, %111 : vector<128x384xf32>
    %cst_45 = arith.constant 0.000000e+00 : f32
    %113 = vector.broadcast %cst_45 : f32 to vector<128x384xf32>
    %114 = arith.maximumf %103, %113 : vector<128x384xf32>
    %cst_46 = arith.constant 0.000000e+00 : f32
    %115 = vector.broadcast %cst_46 : f32 to vector<128x384xf32>
    %116 = arith.subf %115, %114 : vector<128x384xf32>
    %117 = arith.subf %116, %108 : vector<128x384xf32>
    %118 = arith.mulf %36, %117 : vector<128x384xf32>
    %119 = arith.addf %112, %118 : vector<128x384xf32>
    %120 = vector.shape_cast %119 : vector<128x384xf32> to vector<1x128x384xf32>
    %cst_47 = arith.constant dense<0.000000e+00> : vector<1xf32>
    %121 = vector.multi_reduction <add>, %120, %cst_47 [1, 2] : vector<1x128x384xf32> to vector<1xf32>
    %122 = vector.shape_cast %121 : vector<1xf32> to vector<1x1x1xf32>
    %123 = vector.extract %122[0, 0, 0] : f32 from vector<1x1x1xf32>
    %cst_48 = arith.constant -1.000000e+30 : f32
    %124 = vector.broadcast %cst_48 : f32 to vector<128x384xf32>
    %125 = arith.select %24, %103, %124 : vector<128x384xi1>, vector<128x384xf32>
    %cst_49 = arith.constant dense<0xFF800000> : vector<128xf32>
    %126 = vector.multi_reduction <maximumf>, %125, %cst_49 [1] : vector<128x384xf32> to vector<128xf32>
    %127 = vector.shape_cast %126 : vector<128xf32> to vector<128x1xf32>
    %cst_50 = arith.constant -1.000000e+30 : f32
    %128 = vector.broadcast %cst_50 : f32 to vector<128x384xf32>
    %129 = arith.select %32, %103, %128 : vector<128x384xi1>, vector<128x384xf32>
    %cst_51 = arith.constant dense<0xFF800000> : vector<128xf32>
    %130 = vector.multi_reduction <maximumf>, %129, %cst_51 [1] : vector<128x384xf32> to vector<128xf32>
    %131 = vector.shape_cast %130 : vector<128xf32> to vector<128x1xf32>
    %132 = arith.cmpf oge, %127, %131 : vector<128x1xf32>
    %133 = arith.andi %42, %132 : vector<128x1xi1>
    %cst_52 = arith.constant 1.000000e+00 : f32
    %cst_53 = arith.constant 0.000000e+00 : f32
    %134 = vector.broadcast %cst_52 : f32 to vector<128x1xf32>
    %135 = vector.broadcast %cst_53 : f32 to vector<128x1xf32>
    %136 = arith.select %133, %134, %135 : vector<128x1xi1>, vector<128x1xf32>
    %137 = vector.shape_cast %136 : vector<128x1xf32> to vector<1x128x1xf32>
    %cst_54 = arith.constant dense<0.000000e+00> : vector<1xf32>
    %138 = vector.multi_reduction <add>, %137, %cst_54 [1, 2] : vector<1x128x1xf32> to vector<1xf32>
    %139 = vector.shape_cast %138 : vector<1xf32> to vector<1x1x1xf32>
    %140 = vector.extract %139[0, 0, 0] : f32 from vector<1x1x1xf32>
    %141 = arith.addf %81, %123 : f32
    %cst_55 = arith.constant 0.000000e+00 : f32
    %142 = arith.subf %cst_55, %141 : f32
    %143 = vector.broadcast %142 : f32 to vector<1x1x8x128xf32>
    %c0_56 = arith.constant 0 : index
    %c0_57 = arith.constant 0 : index
    %c0_58 = arith.constant 0 : index
    %c0_59 = arith.constant 0 : index
    %144 = vector.load %arg9[%c0_56, %c0_57, %c0_58, %c0_59] : memref<1x1x8x128xf32, #tpu.memory_space<vmem>>, vector<1x1x8x128xf32>
    tpu.vector_store %arg9[%c0_56, %c0_57, %c0_58, %c0_59], %143 {strides = array<i32>} : memref<1x1x8x128xf32, #tpu.memory_space<vmem>>, vector<1x1x8x128xf32>,
    %145 = arith.addf %98, %140 : f32
    %146 = vector.broadcast %145 : f32 to vector<1x1x8x128xf32>
    %c0_60 = arith.constant 0 : index
    %c0_61 = arith.constant 0 : index
    %c0_62 = arith.constant 0 : index
    %c0_63 = arith.constant 0 : index
    %147 = vector.load %arg10[%c0_60, %c0_61, %c0_62, %c0_63] : memref<1x1x8x128xf32, #tpu.memory_space<vmem>>, vector<1x1x8x128xf32>
    tpu.vector_store %arg10[%c0_60, %c0_61, %c0_62, %c0_63], %146 {strides = array<i32>} : memref<1x1x8x128xf32, #tpu.memory_space<vmem>>, vector<1x1x8x128xf32>,
    return
  }
  func.func @transform_0(%arg0: i32, %arg1: i32) -> (i32, i32, i32) {
    %c-1_i32 = arith.constant -1 : i32
    %0 = arith.addi %arg1, %c-1_i32 : i32
    %c0_i32 = arith.constant 0 : i32
    %1 = arith.maxsi %0, %c0_i32 : i32
    %c0_i32_0 = arith.constant 0 : i32
    %2 = arith.minsi %1, %c0_i32_0 : i32
    %c0_i32_1 = arith.constant 0 : i32
    %c0_i32_2 = arith.constant 0 : i32
    return %arg0, %2, %c0_i32_1 : i32, i32, i32
  }
  func.func @transform_1(%arg0: i32, %arg1: i32) -> (i32, i32, i32) {
    %c0_i32 = arith.constant 0 : i32
    %0 = arith.addi %arg1, %c0_i32 : i32
    %c0_i32_0 = arith.constant 0 : i32
    %1 = arith.maxsi %0, %c0_i32_0 : i32
    %c0_i32_1 = arith.constant 0 : i32
    %2 = arith.minsi %1, %c0_i32_1 : i32
    %c0_i32_2 = arith.constant 0 : i32
    %c0_i32_3 = arith.constant 0 : i32
    return %arg0, %2, %c0_i32_2 : i32, i32, i32
  }
  func.func @transform_2(%arg0: i32, %arg1: i32) -> (i32, i32, i32) {
    %c1_i32 = arith.constant 1 : i32
    %0 = arith.addi %arg1, %c1_i32 : i32
    %c0_i32 = arith.constant 0 : i32
    %1 = arith.maxsi %0, %c0_i32 : i32
    %c0_i32_0 = arith.constant 0 : i32
    %2 = arith.minsi %1, %c0_i32_0 : i32
    %c0_i32_1 = arith.constant 0 : i32
    %c0_i32_2 = arith.constant 0 : i32
    return %arg0, %2, %c0_i32_1 : i32, i32, i32
  }
  func.func @transform_3(%arg0: i32, %arg1: i32) -> (i32, i32, i32) {
    %c-1_i32 = arith.constant -1 : i32
    %0 = arith.addi %arg1, %c-1_i32 : i32
    %c0_i32 = arith.constant 0 : i32
    %1 = arith.maxsi %0, %c0_i32 : i32
    %c0_i32_0 = arith.constant 0 : i32
    %2 = arith.minsi %1, %c0_i32_0 : i32
    %c0_i32_1 = arith.constant 0 : i32
    %c0_i32_2 = arith.constant 0 : i32
    return %arg0, %2, %c0_i32_1 : i32, i32, i32
  }
  func.func @transform_4(%arg0: i32, %arg1: i32) -> (i32, i32, i32) {
    %c0_i32 = arith.constant 0 : i32
    %0 = arith.addi %arg1, %c0_i32 : i32
    %c0_i32_0 = arith.constant 0 : i32
    %1 = arith.maxsi %0, %c0_i32_0 : i32
    %c0_i32_1 = arith.constant 0 : i32
    %2 = arith.minsi %1, %c0_i32_1 : i32
    %c0_i32_2 = arith.constant 0 : i32
    %c0_i32_3 = arith.constant 0 : i32
    return %arg0, %2, %c0_i32_2 : i32, i32, i32
  }
  func.func @transform_5(%arg0: i32, %arg1: i32) -> (i32, i32, i32) {
    %c1_i32 = arith.constant 1 : i32
    %0 = arith.addi %arg1, %c1_i32 : i32
    %c0_i32 = arith.constant 0 : i32
    %1 = arith.maxsi %0, %c0_i32 : i32
    %c0_i32_0 = arith.constant 0 : i32
    %2 = arith.minsi %1, %c0_i32_0 : i32
    %c0_i32_1 = arith.constant 0 : i32
    %c0_i32_2 = arith.constant 0 : i32
    return %arg0, %2, %c0_i32_1 : i32, i32, i32
  }
  func.func @transform_6(%arg0: i32, %arg1: i32) -> (i32, i32) {
    %c0_i32 = arith.constant 0 : i32
    %c0_i32_0 = arith.constant 0 : i32
    %c0_i32_1 = arith.constant 0 : i32
    return %c0_i32, %c0_i32_0 : i32, i32
  }
  func.func @transform_7(%arg0: i32, %arg1: i32) -> (i32, i32, i32, i32) {
    %c0_i32 = arith.constant 0 : i32
    %c0_i32_0 = arith.constant 0 : i32
    %c0_i32_1 = arith.constant 0 : i32
    return %arg0, %arg1, %c0_i32, %c0_i32_0 : i32, i32, i32, i32
  }
  func.func @transform_8(%arg0: i32, %arg1: i32) -> (i32, i32, i32, i32) {
    %c0_i32 = arith.constant 0 : i32
    %c0_i32_0 = arith.constant 0 : i32
    %c0_i32_1 = arith.constant 0 : i32
    return %arg0, %arg1, %c0_i32, %c0_i32_0 : i32, i32, i32, i32
  }
}

</mosaic_0001>

<llo_original>
// kernel: local_siglip_loss.1
$region0: #{local_siglip_loss.1}
  #allocation0 [shape = 'u32[]', space=smem, size = 0x4, offset = 0x4, fixed_abs, tag = 'smem constant byte address 0x4 - core index']
  #allocation1 [shape = 'u32[144,128]{1,0:T(1,128)}', space=vmem, size = 0x12000, scoped, tag = 'internal scratch']
  #allocation2 [shape = 'f32[1,1]{1,0:T(1,128)S(6)}', space=smem, size = 0x200, scoped, tag = 'scoped memory for local_siglip_loss.1']
  %s0 = inlined_call_operand.vmem [shape: bf16[2,128,128], index: 0, kind: input, shape index: {}, may-alias: {0,1,2}]
  %s1 = inlined_call_operand.vmem [shape: bf16[2,128,128], index: 1, kind: input, shape index: {}, may-alias: {0,1,2}]
  %s2 = inlined_call_operand.vmem [shape: bf16[2,128,128], index: 2, kind: input, shape index: {}, may-alias: {0,1,2}]
  %s3 = inlined_call_operand.vmem [shape: bf16[2,128,128], index: 3, kind: input, shape index: {}, may-alias: {3,4,5}]
  %s4 = inlined_call_operand.vmem [shape: bf16[2,128,128], index: 4, kind: input, shape index: {}, may-alias: {3,4,5}]
  %s5 = inlined_call_operand.vmem [shape: bf16[2,128,128], index: 5, kind: input, shape index: {}, may-alias: {3,4,5}]
  %s6 = inlined_call_operand.<no memory space> [shape: f32[1,1], index: 6, kind: input, shape index: {}]
  %s7 = inlined_call_operand.vmem [shape: f32[2,1,8,128], index: 7, kind: output, shape index: {0}]
  %s8 = inlined_call_operand.vmem [shape: f32[2,1,8,128], index: 8, kind: output, shape index: {1}]
  %9 = xla_tuple %s7, %s8
  %s10 = sld [smem:[#allocation0]]
  $region69: #{local_siglip_loss.1} parent=0
    _
  %s12 = ssub.s32 1, %s10
  %s13 = scalar_select 0, %s12, %s10
  %14 = sst [smem:[#allocation2]] %s6
  loop: start=0, step=1, limit=4
  $region2: #{local_siglip_loss.1} parent=0 // loop_pre_header
    _
  $region3: #{local_siglip_loss.1} parent=0 // loop_header
    %s16 = sphi 0, %s20
    %p17 = scmp.ge.s32.totalorder %s16, 4
    %s23 = sphi 0, %s35
    %s24 = sphi 0, %s31
    %s25 = sphi 0, %s23
    %s26 = sphi 0, %s24
    %s27 = sphi 0, %s25
    %s28 = sphi 0, %s26
    %s50 = sphi 0, %s52
    %s53 = sphi 0, %s50
    %s54 = sphi 0, %s53
    %s70 = sphi 0, %s54
    %s86 = sphi 0, %s88
    %s89 = sphi 0, %s86
    %s90 = sphi 0, %s89
    %s106 = sphi 0, %s90
    %s124 = sphi 0, %s126
    %s127 = sphi 0, %s124
    %s128 = sphi 0, %s127
    %s144 = sphi 0, %s128
    %s162 = sphi 0, %s164
    %s165 = sphi 0, %s162
    %s166 = sphi 0, %s165
    %s182 = sphi 0, %s166
    %s198 = sphi 0, %s200
    %s201 = sphi 0, %s198
    %s202 = sphi 0, %s201
    %s218 = sphi 0, %s202
    %s236 = sphi 0, %s238
    %s239 = sphi 0, %s236
    %s240 = sphi 0, %s239
    %s256 = sphi 0, %s240
    %s260 = sphi 0, %s260
    %s262 = sphi 0, %s260
    %s263 = sphi 0, %s262
    %s277 = sphi 0, %s263
    %s285 = sphi 0, %s287
    %s288 = sphi 0, %s285
    %s289 = sphi 0, %s288
    %s305 = sphi 0, %s289
    %s313 = sphi 0, %s315
    %s316 = sphi 0, %s313
    %s317 = sphi 0, %s316
    %s333 = sphi 0, %s317
  $region4: #{local_siglip_loss.1} parent=0 // loop_header_branch
    %19 = sbr.rel (%p17) target = $region8
  $region5: #{local_siglip_loss.1} parent=0 // loop_body
    %s21 = ssub.s32 %s16, 1
    %s22 = ssub.s32 %s16, 2
    %s29 = sadd.s32 1, %s24
    %p30 = scmp.ge.s32.totalorder %s29, 1
    %s31 = scalar_select %p30, 0, %s29
    %s32 = sadd.s32 1, %s23
    %s33 = scalar_select %p30, %s32, %s23
    %p34 = scmp.ge.s32.totalorder %s33, 2
    %s35 = scalar_select %p34, 0, %s33
    %s36 = sadd.s32 %s24, 4294967295
    %p37 = scmp.gt.s32.totalorder %s36, 0
    %s38 = scalar_select %p37, %s36, 0
    %p39 = scmp.lt.s32.totalorder %s38, 0
    %s40 = scalar_select %p39, %s38, 0
    %s41 = sadd.s32 %s31, 4294967295
    %p42 = scmp.gt.s32.totalorder %s41, 0
    %s43 = scalar_select %p42, %s41, 0
    %p44 = scmp.lt.s32.totalorder %s43, 0
    %s45 = scalar_select %p44, %s43, 0
    %s46 = ssub.s32 %s23, %s35
    %s47 = ssub.s32 %s40, %s45
    %s48 = sor.u32 %s46, %s47
    %p49 = scmp.eq.s32.totalorder %s48, 0
    %s51 = sadd.s32 %s50, 1
    %s52 = scalar_select %p49, %s50, %s51
    %p55 = pneg %p49
    %p56 = scmp.eq.s32.totalorder %s16, 1
    %p57 = por %p55, %p56
    %p58 = scmp.ne.s32.totalorder %s50, %s53
    %p59 = scmp.eq.s32.totalorder %s16, 0
    %p60 = por %p58, %p59
    %p61 = scmp.ne.s32.totalorder %s50, %s53
    %p62 = scmp.eq.s32.totalorder %s21, 1
    %p63 = por %p61, %p62
    %p64 = scmp.ne.s32.totalorder %s53, %s54
    %p65 = scmp.eq.s32.totalorder %s21, 0
    %p66 = por %p64, %p65
    %p67 = scmp.ne.s32.totalorder %s53, %s54
    %p68 = scmp.eq.s32.totalorder %s22, 1
    %p69 = por %p67, %p68
    %p71 = scmp.ne.s32.totalorder %s54, %s70
    %p72 = scmp.eq.s32.totalorder %s22, 0
    %p73 = por %p71, %p72
    %p74 = scmp.gt.s32.totalorder %s24, 0
    %s75 = scalar_select %p74, %s24, 0
    %p76 = scmp.lt.s32.totalorder %s75, 0
    %s77 = scalar_select %p76, %s75, 0
    %p78 = scmp.gt.s32.totalorder %s31, 0
    %s79 = scalar_select %p78, %s31, 0
    %p80 = scmp.lt.s32.totalorder %s79, 0
    %s81 = scalar_select %p80, %s79, 0
    %s82 = ssub.s32 %s23, %s35
    %s83 = ssub.s32 %s77, %s81
    %s84 = sor.u32 %s82, %s83
    %p85 = scmp.eq.s32.totalorder %s84, 0
    %s87 = sadd.s32 %s86, 1
    %s88 = scalar_select %p85, %s86, %s87
    %p91 = pneg %p85
    %p92 = scmp.eq.s32.totalorder %s16, 1
    %p93 = por %p91, %p92
    %p94 = scmp.ne.s32.totalorder %s86, %s89
    %p95 = scmp.eq.s32.totalorder %s16, 0
    %p96 = por %p94, %p95
    %p97 = scmp.ne.s32.totalorder %s86, %s89
    %p98 = scmp.eq.s32.totalorder %s21, 1
    %p99 = por %p97, %p98
    %p100 = scmp.ne.s32.totalorder %s89, %s90
    %p101 = scmp.eq.s32.totalorder %s21, 0
    %p102 = por %p100, %p101
    %p103 = scmp.ne.s32.totalorder %s89, %s90
    %p104 = scmp.eq.s32.totalorder %s22, 1
    %p105 = por %p103, %p104
    %p107 = scmp.ne.s32.totalorder %s90, %s106
    %p108 = scmp.eq.s32.totalorder %s22, 0
    %p109 = por %p107, %p108
    %s110 = sadd.s32 %s24, 1
    %p111 = scmp.gt.s32.totalorder %s110, 0
    %s112 = scalar_select %p111, %s110, 0
    %p113 = scmp.lt.s32.totalorder %s112, 0
    %s114 = scalar_select %p113, %s112, 0
    %s115 = sadd.s32 %s31, 1
    %p116 = scmp.gt.s32.totalorder %s115, 0
    %s117 = scalar_select %p116, %s115, 0
    %p118 = scmp.lt.s32.totalorder %s117, 0
    %s119 = scalar_select %p118, %s117, 0
    %s120 = ssub.s32 %s23, %s35
    %s121 = ssub.s32 %s114, %s119
    %s122 = sor.u32 %s120, %s121
    %p123 = scmp.eq.s32.totalorder %s122, 0
    %s125 = sadd.s32 %s124, 1
    %s126 = scalar_select %p123, %s124, %s125
    %p129 = pneg %p123
    %p130 = scmp.eq.s32.totalorder %s16, 1
    %p131 = por %p129, %p130
    %p132 = scmp.ne.s32.totalorder %s124, %s127
    %p133 = scmp.eq.s32.totalorder %s16, 0
    %p134 = por %p132, %p133
    %p135 = scmp.ne.s32.totalorder %s124, %s127
    %p136 = scmp.eq.s32.totalorder %s21, 1
    %p137 = por %p135, %p136
    %p138 = scmp.ne.s32.totalorder %s127, %s128
    %p139 = scmp.eq.s32.totalorder %s21, 0
    %p140 = por %p138, %p139
    %p141 = scmp.ne.s32.totalorder %s127, %s128
    %p142 = scmp.eq.s32.totalorder %s22, 1
    %p143 = por %p141, %p142
    %p145 = scmp.ne.s32.totalorder %s128, %s144
    %p146 = scmp.eq.s32.totalorder %s22, 0
    %p147 = por %p145, %p146
    %s148 = sadd.s32 %s24, 4294967295
    %p149 = scmp.gt.s32.totalorder %s148, 0
    %s150 = scalar_select %p149, %s148, 0
    %p151 = scmp.lt.s32.totalorder %s150, 0
    %s152 = scalar_select %p151, %s150, 0
    %s153 = sadd.s32 %s31, 4294967295
    %p154 = scmp.gt.s32.totalorder %s153, 0
    %s155 = scalar_select %p154, %s153, 0
    %p156 = scmp.lt.s32.totalorder %s155, 0
    %s157 = scalar_select %p156, %s155, 0
    %s158 = ssub.s32 %s23, %s35
    %s159 = ssub.s32 %s152, %s157
    %s160 = sor.u32 %s158, %s159
    %p161 = scmp.eq.s32.totalorder %s160, 0
    %s163 = sadd.s32 %s162, 1
    %s164 = scalar_select %p161, %s162, %s163
    %p167 = pneg %p161
    %p168 = scmp.eq.s32.totalorder %s16, 1
    %p169 = por %p167, %p168
    %p170 = scmp.ne.s32.totalorder %s162, %s165
    %p171 = scmp.eq.s32.totalorder %s16, 0
    %p172 = por %p170, %p171
    %p173 = scmp.ne.s32.totalorder %s162, %s165
    %p174 = scmp.eq.s32.totalorder %s21, 1
    %p175 = por %p173, %p174
    %p176 = scmp.ne.s32.totalorder %s165, %s166
    %p177 = scmp.eq.s32.totalorder %s21, 0
    %p178 = por %p176, %p177
    %p179 = scmp.ne.s32.totalorder %s165, %s166
    %p180 = scmp.eq.s32.totalorder %s22, 1
    %p181 = por %p179, %p180
    %p183 = scmp.ne.s32.totalorder %s166, %s182
    %p184 = scmp.eq.s32.totalorder %s22, 0
    %p185 = por %p183, %p184
    %p186 = scmp.gt.s32.totalorder %s24, 0
    %s187 = scalar_select %p186, %s24, 0
    %p188 = scmp.lt.s32.totalorder %s187, 0
    %s189 = scalar_select %p188, %s187, 0
    %p190 = scmp.gt.s32.totalorder %s31, 0
    %s191 = scalar_select %p190, %s31, 0
    %p192 = scmp.lt.s32.totalorder %s191, 0
    %s193 = scalar_select %p192, %s191, 0
    %s194 = ssub.s32 %s23, %s35
    %s195 = ssub.s32 %s189, %s193
    %s196 = sor.u32 %s194, %s195
    %p197 = scmp.eq.s32.totalorder %s196, 0
    %s199 = sadd.s32 %s198, 1
    %s200 = scalar_select %p197, %s198, %s199
    %p203 = pneg %p197
    %p204 = scmp.eq.s32.totalorder %s16, 1
    %p205 = por %p203, %p204
    %p206 = scmp.ne.s32.totalorder %s198, %s201
    %p207 = scmp.eq.s32.totalorder %s16, 0
    %p208 = por %p206, %p207
    %p209 = scmp.ne.s32.totalorder %s198, %s201
    %p210 = scmp.eq.s32.totalorder %s21, 1
    %p211 = por %p209, %p210
    %p212 = scmp.ne.s32.totalorder %s201, %s202
    %p213 = scmp.eq.s32.totalorder %s21, 0
    %p214 = por %p212, %p213
    %p215 = scmp.ne.s32.totalorder %s201, %s202
    %p216 = scmp.eq.s32.totalorder %s22, 1
    %p217 = por %p215, %p216
    %p219 = scmp.ne.s32.totalorder %s202, %s218
    %p220 = scmp.eq.s32.totalorder %s22, 0
    %p221 = por %p219, %p220
    %s222 = sadd.s32 %s24, 1
    %p223 = scmp.gt.s32.totalorder %s222, 0
    %s224 = scalar_select %p223, %s222, 0
    %p225 = scmp.lt.s32.totalorder %s224, 0
    %s226 = scalar_select %p225, %s224, 0
    %s227 = sadd.s32 %s31, 1
    %p228 = scmp.gt.s32.totalorder %s227, 0
    %s229 = scalar_select %p228, %s227, 0
    %p230 = scmp.lt.s32.totalorder %s229, 0
    %s231 = scalar_select %p230, %s229, 0
    %s232 = ssub.s32 %s23, %s35
    %s233 = ssub.s32 %s226, %s231
    %s234 = sor.u32 %s232, %s233
    %p235 = scmp.eq.s32.totalorder %s234, 0
    %s237 = sadd.s32 %s236, 1
    %s238 = scalar_select %p235, %s236, %s237
    %p241 = pneg %p235
    %p242 = scmp.eq.s32.totalorder %s16, 1
    %p243 = por %p241, %p242
    %p244 = scmp.ne.s32.totalorder %s236, %s239
    %p245 = scmp.eq.s32.totalorder %s16, 0
    %p246 = por %p244, %p245
    %p247 = scmp.ne.s32.totalorder %s236, %s239
    %p248 = scmp.eq.s32.totalorder %s21, 1
    %p249 = por %p247, %p248
    %p250 = scmp.ne.s32.totalorder %s239, %s240
    %p251 = scmp.eq.s32.totalorder %s21, 0
    %p252 = por %p250, %p251
    %p253 = scmp.ne.s32.totalorder %s239, %s240
    %p254 = scmp.eq.s32.totalorder %s22, 1
    %p255 = por %p253, %p254
    %p257 = scmp.ne.s32.totalorder %s240, %s256
    %p258 = scmp.eq.s32.totalorder %s22, 0
    %p259 = por %p257, %p258
    %s261 = sadd.s32 %s260, 1
    %p264 = scmp.eq.s32.totalorder %s16, 1
    %p265 = scmp.ne.s32.totalorder %s260, %s262
    %p266 = scmp.eq.s32.totalorder %s16, 0
    %p267 = por %p265, %p266
    %p268 = scmp.ne.s32.totalorder %s260, %s262
    %p269 = scmp.eq.s32.totalorder %s21, 1
    %p270 = por %p268, %p269
    %p271 = scmp.ne.s32.totalorder %s262, %s263
    %p272 = scmp.eq.s32.totalorder %s21, 0
    %p273 = por %p271, %p272
    %p274 = scmp.ne.s32.totalorder %s262, %s263
    %p275 = scmp.eq.s32.totalorder %s22, 1
    %p276 = por %p274, %p275
    %p278 = scmp.ne.s32.totalorder %s263, %s277
    %p279 = scmp.eq.s32.totalorder %s22, 0
    %p280 = por %p278, %p279
    %s281 = ssub.s32 %s23, %s35
    %s282 = ssub.s32 %s24, %s31
    %s283 = sor.u32 %s281, %s282
    %p284 = scmp.eq.s32.totalorder %s283, 0
    %s286 = sadd.s32 %s285, 1
    %s287 = scalar_select %p284, %s285, %s286
    %p290 = pneg %p284
    %p291 = scmp.eq.s32.totalorder %s16, 1
    %p292 = por %p290, %p291
    %p293 = scmp.ne.s32.totalorder %s285, %s288
    %p294 = scmp.eq.s32.totalorder %s16, 0
    %p295 = por %p293, %p294
    %p296 = scmp.ne.s32.totalorder %s285, %s288
    %p297 = scmp.eq.s32.totalorder %s21, 1
    %p298 = por %p296, %p297
    %p299 = scmp.ne.s32.totalorder %s288, %s289
    %p300 = scmp.eq.s32.totalorder %s21, 0
    %p301 = por %p299, %p300
    %p302 = scmp.ne.s32.totalorder %s288, %s289
    %p303 = scmp.eq.s32.totalorder %s22, 1
    %p304 = por %p302, %p303
    %p306 = scmp.ne.s32.totalorder %s289, %s305
    %p307 = scmp.eq.s32.totalorder %s22, 0
    %p308 = por %p306, %p307
    %s309 = ssub.s32 %s23, %s35
    %s310 = ssub.s32 %s24, %s31
    %s311 = sor.u32 %s309, %s310
    %p312 = scmp.eq.s32.totalorder %s311, 0
    %s314 = sadd.s32 %s313, 1
    %s315 = scalar_select %p312, %s313, %s314
    %p318 = pneg %p312
    %p319 = scmp.eq.s32.totalorder %s16, 1
    %p320 = por %p318, %p319
    %p321 = scmp.ne.s32.totalorder %s313, %s316
    %p322 = scmp.eq.s32.totalorder %s16, 0
    %p323 = por %p321, %p322
    %p324 = scmp.ne.s32.totalorder %s313, %s316
    %p325 = scmp.eq.s32.totalorder %s21, 1
    %p326 = por %p324, %p325
    %p327 = scmp.ne.s32.totalorder %s316, %s317
    %p328 = scmp.eq.s32.totalorder %s21, 0
    %p329 = por %p327, %p328
    %p330 = scmp.ne.s32.totalorder %s316, %s317
    %p331 = scmp.eq.s32.totalorder %s22, 1
    %p332 = por %p330, %p331
    %p334 = scmp.ne.s32.totalorder %s317, %s333
    %p335 = scmp.eq.s32.totalorder %s22, 0
    %p336 = por %p334, %p335
    %p337 = scmp.le.s32.totalorder 1, %s16
    %p338 = scmp.lt.s32.totalorder %s16, 3
    %p339 = pnand %p337, %p338
    %p340 = pneg %p339
    // Predicated region
    $region9: #{local_siglip_loss.1} parent=5 // pred_check
      _
    $region10: #{local_siglip_loss.1} parent=5 // pred_check_branch
      %342 = sbr.rel (%p339) target = $region12
    $region11: #{local_siglip_loss.1} parent=5 // pred_region
      %s343 = ssub.s32 %s16, 1
      // Predicated region
      $region13: #{local_siglip_loss.1} parent=11 // pred_check
        %p344 = pneg %p273
      $region14: #{local_siglip_loss.1} parent=11 // pred_check_branch
        %346 = sbr.rel (%p344) target = $region16
      $region15: #{local_siglip_loss.1} parent=11 // pred_region
        _
      $region16: #{local_siglip_loss.1} parent=11 // pred_fallthru
        _
    $region12: #{local_siglip_loss.1} parent=5 // pred_fallthru
      _
    %p347 = scmp.lt.s32.totalorder %s16, 2
    // Predicated region
    $region17: #{local_siglip_loss.1} parent=5 // pred_check
      %p348 = pneg %p347
    $region18: #{local_siglip_loss.1} parent=5 // pred_check_branch
      %350 = sbr.rel (%p348) target = $region20
    $region19: #{local_siglip_loss.1} parent=5 // pred_region
      // Predicated region
      $region21: #{local_siglip_loss.1} parent=19 // pred_check
        %p351 = pneg %p60
      $region22: #{local_siglip_loss.1} parent=19 // pred_check_branch
        %353 = sbr.rel (%p351) target = $region24
      $region23: #{local_siglip_loss.1} parent=19 // pred_region
        %s354 = sadd.s32 %s24, 4294967295
        %p355 = scmp.gt.s32.totalorder %s354, 0
        %s356 = scalar_select %p355, %s354, 0
        %p357 = scmp.lt.s32.totalorder %s356, 0
        %s358 = scalar_select %p357, %s356, 0
        %s359 = smul.u32 16, %s358
        %p360 = scmp.lt.s32.totalorder %s23, 1
        %s361 = scalar_select %p360, %s23, 1
        %p362 = scmp.lt.s32.totalorder %s359, 15
        %s363 = scalar_select %p362, %s359, 15
        %s364 = smul.addr %s361, 16
        %s365 = sadd.s32 %s363, %s364
        %s366 = smul.addr %s365, 4
        %s367 = scalar_lea.vmem %s0, %s366
        %s368 = sadd.s32 %s24, 4294967295
        %p369 = scmp.gt.s32.totalorder %s368, 0
        %s370 = scalar_select %p369, %s368, 0
        %p371 = scmp.lt.s32.totalorder %s370, 0
        %s372 = scalar_select %p371, %s370, 0
        %s373 = smul.u32 16, %s372
      $region24: #{local_siglip_loss.1} parent=19 // pred_fallthru
        _
      // Predicated region
      $region25: #{local_siglip_loss.1} parent=19 // pred_check
        %p374 = pneg %p96
      $region26: #{local_siglip_loss.1} parent=19 // pred_check_branch
        %376 = sbr.rel (%p374) target = $region28
      $region27: #{local_siglip_loss.1} parent=19 // pred_region
        %p377 = scmp.gt.s32.totalorder %s24, 0
        %s378 = scalar_select %p377, %s24, 0
        %p379 = scmp.lt.s32.totalorder %s378, 0
        %s380 = scalar_select %p379, %s378, 0
        %s381 = smul.u32 16, %s380
        %p382 = scmp.lt.s32.totalorder %s23, 1
        %s383 = scalar_select %p382, %s23, 1
        %p384 = scmp.lt.s32.totalorder %s381, 15
        %s385 = scalar_select %p384, %s381, 15
        %s386 = smul.addr %s383, 16
        %s387 = sadd.s32 %s385, %s386
        %s388 = smul.addr %s387, 4
        %s389 = scalar_lea.vmem %s1, %s388
        %p390 = scmp.gt.s32.totalorder %s24, 0
        %s391 = scalar_select %p390, %s24, 0
        %p392 = scmp.lt.s32.totalorder %s391, 0
        %s393 = scalar_select %p392, %s391, 0
        %s394 = smul.u32 16, %s393
      $region28: #{local_siglip_loss.1} parent=19 // pred_fallthru
        _
      // Predicated region
      $region29: #{local_siglip_loss.1} parent=19 // pred_check
        %p395 = pneg %p134
      $region30: #{local_siglip_loss.1} parent=19 // pred_check_branch
        %397 = sbr.rel (%p395) target = $region32
      $region31: #{local_siglip_loss.1} parent=19 // pred_region
        %s398 = sadd.s32 %s24, 1
        %p399 = scmp.gt.s32.totalorder %s398, 0
        %s400 = scalar_select %p399, %s398, 0
        %p401 = scmp.lt.s32.totalorder %s400, 0
        %s402 = scalar_select %p401, %s400, 0
        %s403 = smul.u32 16, %s402
        %p404 = scmp.lt.s32.totalorder %s23, 1
        %s405 = scalar_select %p404, %s23, 1
        %p406 = scmp.lt.s32.totalorder %s403, 15
        %s407 = scalar_select %p406, %s403, 15
        %s408 = smul.addr %s405, 16
        %s409 = sadd.s32 %s407, %s408
        %s410 = smul.addr %s409, 4
        %s411 = scalar_lea.vmem %s2, %s410
        %s412 = sadd.s32 %s24, 1
        %p413 = scmp.gt.s32.totalorder %s412, 0
        %s414 = scalar_select %p413, %s412, 0
        %p415 = scmp.lt.s32.totalorder %s414, 0
        %s416 = scalar_select %p415, %s414, 0
        %s417 = smul.u32 16, %s416
      $region32: #{local_siglip_loss.1} parent=19 // pred_fallthru
        _
      // Predicated region
      $region33: #{local_siglip_loss.1} parent=19 // pred_check
        %p418 = pneg %p172
      $region34: #{local_siglip_loss.1} parent=19 // pred_check_branch
        %420 = sbr.rel (%p418) target = $region36
      $region35: #{local_siglip_loss.1} parent=19 // pred_region
        %s421 = sadd.s32 %s24, 4294967295
        %p422 = scmp.gt.s32.totalorder %s421, 0
        %s423 = scalar_select %p422, %s421, 0
        %p424 = scmp.lt.s32.totalorder %s423, 0
        %s425 = scalar_select %p424, %s423, 0
        %s426 = smul.u32 16, %s425
        %p427 = scmp.lt.s32.totalorder %s23, 1
        %s428 = scalar_select %p427, %s23, 1
        %p429 = scmp.lt.s32.totalorder %s426, 15
        %s430 = scalar_select %p429, %s426, 15
        %s431 = smul.addr %s428, 16
        %s432 = sadd.s32 %s430, %s431
        %s433 = smul.addr %s432, 4
        %s434 = scalar_lea.vmem %s3, %s433
        %s435 = sadd.s32 %s24, 4294967295
        %p436 = scmp.gt.s32.totalorder %s435, 0
        %s437 = scalar_select %p436, %s435, 0
        %p438 = scmp.lt.s32.totalorder %s437, 0
        %s439 = scalar_select %p438, %s437, 0
        %s440 = smul.u32 16, %s439
      $region36: #{local_siglip_loss.1} parent=19 // pred_fallthru
        _
      // Predicated region
      $region37: #{local_siglip_loss.1} parent=19 // pred_check
        %p441 = pneg %p208
      $region38: #{local_siglip_loss.1} parent=19 // pred_check_branch
        %443 = sbr.rel (%p441) target = $region40
      $region39: #{local_siglip_loss.1} parent=19 // pred_region
        %p444 = scmp.gt.s32.totalorder %s24, 0
        %s445 = scalar_select %p444, %s24, 0
        %p446 = scmp.lt.s32.totalorder %s445, 0
        %s447 = scalar_select %p446, %s445, 0
        %s448 = smul.u32 16, %s447
        %p449 = scmp.lt.s32.totalorder %s23, 1
        %s450 = scalar_select %p449, %s23, 1
        %p451 = scmp.lt.s32.totalorder %s448, 15
        %s452 = scalar_select %p451, %s448, 15
        %s453 = smul.addr %s450, 16
        %s454 = sadd.s32 %s452, %s453
        %s455 = smul.addr %s454, 4
        %s456 = scalar_lea.vmem %s4, %s455
        %p457 = scmp.gt.s32.totalorder %s24, 0
        %s458 = scalar_select %p457, %s24, 0
        %p459 = scmp.lt.s32.totalorder %s458, 0
        %s460 = scalar_select %p459, %s458, 0
        %s461 = smul.u32 16, %s460
      $region40: #{local_siglip_loss.1} parent=19 // pred_fallthru
        _
      // Predicated region
      $region41: #{local_siglip_loss.1} parent=19 // pred_check
        %p462 = pneg %p246
      $region42: #{local_siglip_loss.1} parent=19 // pred_check_branch
        %464 = sbr.rel (%p462) target = $region44
      $region43: #{local_siglip_loss.1} parent=19 // pred_region
        %s465 = sadd.s32 %s24, 1
        %p466 = scmp.gt.s32.totalorder %s465, 0
        %s467 = scalar_select %p466, %s465, 0
        %p468 = scmp.lt.s32.totalorder %s467, 0
        %s469 = scalar_select %p468, %s467, 0
        %s470 = smul.u32 16, %s469
        %p471 = scmp.lt.s32.totalorder %s23, 1
        %s472 = scalar_select %p471, %s23, 1
        %p473 = scmp.lt.s32.totalorder %s470, 15
        %s474 = scalar_select %p473, %s470, 15
        %s475 = smul.addr %s472, 16
        %s476 = sadd.s32 %s474, %s475
        %s477 = smul.addr %s476, 4
        %s478 = scalar_lea.vmem %s5, %s477
        %s479 = sadd.s32 %s24, 1
        %p480 = scmp.gt.s32.totalorder %s479, 0
        %s481 = scalar_select %p480, %s479, 0
        %p482 = scmp.lt.s32.totalorder %s481, 0
        %s483 = scalar_select %p482, %s481, 0
        %s484 = smul.u32 16, %s483
      $region44: #{local_siglip_loss.1} parent=19 // pred_fallthru
        _
    $region20: #{local_siglip_loss.1} parent=5 // pred_fallthru
      _
    %p485 = scmp.le.s32.totalorder 1, %s16
    %p486 = scmp.lt.s32.totalorder %s16, 3
    %p487 = pnand %p485, %p486
    %p488 = pneg %p487
    // Predicated region
    $region45: #{local_siglip_loss.1} parent=5 // pred_check
      _
    $region46: #{local_siglip_loss.1} parent=5 // pred_check_branch
      %490 = sbr.rel (%p487) target = $region48
    $region47: #{local_siglip_loss.1} parent=5 // pred_region
      %s491 = ssub.s32 %s16, 1
      %s492 = sadd.s32 %s26, 4294967295
      %p493 = scmp.gt.s32.totalorder %s492, 0
      %s494 = scalar_select %p493, %s492, 0
      %p495 = scmp.lt.s32.totalorder %s494, 0
      %s496 = scalar_select %p495, %s494, 0
      %s497 = smul.u32 16, %s496
      %p498 = scmp.lt.s32.totalorder %s25, 1
      %s499 = scalar_select %p498, %s25, 1
      %p500 = scmp.lt.s32.totalorder %s497, 15
      %s501 = scalar_select %p500, %s497, 15
      %s502 = smul.addr %s499, 16
      %s503 = sadd.s32 %s501, %s502
      %s504 = smul.addr %s503, 4
      %s505 = scalar_lea.vmem %s0, %s504
      %p506 = pneg %p66
      %p507 = pneg %p63
      %p508 = scmp.gt.s32.totalorder %s26, 0
      %s509 = scalar_select %p508, %s26, 0
      %p510 = scmp.lt.s32.totalorder %s509, 0
      %s511 = scalar_select %p510, %s509, 0
      %s512 = smul.u32 16, %s511
      %p513 = scmp.lt.s32.totalorder %s25, 1
      %s514 = scalar_select %p513, %s25, 1
      %p515 = scmp.lt.s32.totalorder %s512, 15
      %s516 = scalar_select %p515, %s512, 15
      %s517 = smul.addr %s514, 16
      %s518 = sadd.s32 %s516, %s517
      %s519 = smul.addr %s518, 4
      %s520 = scalar_lea.vmem %s1, %s519
      %p521 = pneg %p102
      %p522 = pneg %p99
      %s523 = sadd.s32 %s26, 1
      %p524 = scmp.gt.s32.totalorder %s523, 0
      %s525 = scalar_select %p524, %s523, 0
      %p526 = scmp.lt.s32.totalorder %s525, 0
      %s527 = scalar_select %p526, %s525, 0
      %s528 = smul.u32 16, %s527
      %p529 = scmp.lt.s32.totalorder %s25, 1
      %s530 = scalar_select %p529, %s25, 1
      %p531 = scmp.lt.s32.totalorder %s528, 15
      %s532 = scalar_select %p531, %s528, 15
      %s533 = smul.addr %s530, 16
      %s534 = sadd.s32 %s532, %s533
      %s535 = smul.addr %s534, 4
      %s536 = scalar_lea.vmem %s2, %s535
      %p537 = pneg %p140
      %p538 = pneg %p137
      %s539 = sadd.s32 %s26, 4294967295
      %p540 = scmp.gt.s32.totalorder %s539, 0
      %s541 = scalar_select %p540, %s539, 0
      %p542 = scmp.lt.s32.totalorder %s541, 0
      %s543 = scalar_select %p542, %s541, 0
      %s544 = smul.u32 16, %s543
      %p545 = scmp.lt.s32.totalorder %s25, 1
      %s546 = scalar_select %p545, %s25, 1
      %p547 = scmp.lt.s32.totalorder %s544, 15
      %s548 = scalar_select %p547, %s544, 15
      %s549 = smul.addr %s546, 16
      %s550 = sadd.s32 %s548, %s549
      %s551 = smul.addr %s550, 4
      %s552 = scalar_lea.vmem %s3, %s551
      %p553 = pneg %p178
      %p554 = pneg %p175
      %p555 = scmp.gt.s32.totalorder %s26, 0
      %s556 = scalar_select %p555, %s26, 0
      %p557 = scmp.lt.s32.totalorder %s556, 0
      %s558 = scalar_select %p557, %s556, 0
      %s559 = smul.u32 16, %s558
      %p560 = scmp.lt.s32.totalorder %s25, 1
      %s561 = scalar_select %p560, %s25, 1
      %p562 = scmp.lt.s32.totalorder %s559, 15
      %s563 = scalar_select %p562, %s559, 15
      %s564 = smul.addr %s561, 16
      %s565 = sadd.s32 %s563, %s564
      %s566 = smul.addr %s565, 4
      %s567 = scalar_lea.vmem %s4, %s566
      %p568 = pneg %p214
      %p569 = pneg %p211
      %s570 = sadd.s32 %s26, 1
      %p571 = scmp.gt.s32.totalorder %s570, 0
      %s572 = scalar_select %p571, %s570, 0
      %p573 = scmp.lt.s32.totalorder %s572, 0
      %s574 = scalar_select %p573, %s572, 0
      %s575 = smul.u32 16, %s574
      %p576 = scmp.lt.s32.totalorder %s25, 1
      %s577 = scalar_select %p576, %s25, 1
      %p578 = scmp.lt.s32.totalorder %s575, 15
      %s579 = scalar_select %p578, %s575, 15
      %s580 = smul.addr %s577, 16
      %s581 = sadd.s32 %s579, %s580
      %s582 = smul.addr %s581, 4
      %s583 = scalar_lea.vmem %s5, %s582
      %p584 = pneg %p252
      %p585 = pneg %p249
      %p586 = pneg %p273
      %p587 = pneg %p270
      %p588 = pneg %p301
      %p589 = pneg %p298
      %p590 = scmp.lt.s32.totalorder %s25, 1
      %s591 = scalar_select %p590, %s25, 1
      %p592 = scmp.lt.s32.totalorder %s26, 0
      %s593 = scalar_select %p592, %s26, 0
      %s594 = sadd.s32 %s593, %s591
      %s595 = smul.addr %s594, 8
      %s596 = scalar_lea.vmem %s7, %s595
      %p597 = pneg %p329
      %p598 = pneg %p326
      %p599 = scmp.lt.s32.totalorder %s25, 1
      %s600 = scalar_select %p599, %s25, 1
      %p601 = scmp.lt.s32.totalorder %s26, 0
      %s602 = scalar_select %p601, %s26, 0
      %s603 = sadd.s32 %s602, %s600
      %s604 = smul.addr %s603, 8
      %s605 = scalar_lea.vmem %s8, %s604
      %s606 = sadd.s32 %s26, 4294967295
      %p607 = scmp.gt.s32.totalorder %s606, 0
      %s608 = scalar_select %p607, %s606, 0
      %p609 = scmp.lt.s32.totalorder %s608, 0
      %s610 = scalar_select %p609, %s608, 0
      %s611 = smul.u32 16, %s610
      %p612 = scmp.lt.s32.totalorder %s25, 1
      %s613 = scalar_select %p612, %s25, 1
      %p614 = scmp.lt.s32.totalorder %s611, 15
      %s615 = scalar_select %p614, %s611, 15
      %s616 = smul.addr %s613, 16
      %s617 = sadd.s32 %s615, %s616
      %s618 = smul.addr %s617, 4
      %s619 = scalar_lea.vmem %s0, %s618
      %s620 = sadd.s32 %s26, 4294967295
      %p621 = scmp.gt.s32.totalorder %s620, 0
      %s622 = scalar_select %p621, %s620, 0
      %p623 = scmp.lt.s32.totalorder %s622, 0
      %s624 = scalar_select %p623, %s622, 0
      %s625 = smul.u32 16, %s624
      %p626 = scmp.gt.s32.totalorder %s26, 0
      %s627 = scalar_select %p626, %s26, 0
      %p628 = scmp.lt.s32.totalorder %s627, 0
      %s629 = scalar_select %p628, %s627, 0
      %s630 = smul.u32 16, %s629
      %p631 = scmp.lt.s32.totalorder %s25, 1
      %s632 = scalar_select %p631, %s25, 1
      %p633 = scmp.lt.s32.totalorder %s630, 15
      %s634 = scalar_select %p633, %s630, 15
      %s635 = smul.addr %s632, 16
      %s636 = sadd.s32 %s634, %s635
      %s637 = smul.addr %s636, 4
      %s638 = scalar_lea.vmem %s1, %s637
      %p639 = scmp.gt.s32.totalorder %s26, 0
      %s640 = scalar_select %p639, %s26, 0
      %p641 = scmp.lt.s32.totalorder %s640, 0
      %s642 = scalar_select %p641, %s640, 0
      %s643 = smul.u32 16, %s642
      %s644 = sadd.s32 %s26, 1
      %p645 = scmp.gt.s32.totalorder %s644, 0
      %s646 = scalar_select %p645, %s644, 0
      %p647 = scmp.lt.s32.totalorder %s646, 0
      %s648 = scalar_select %p647, %s646, 0
      %s649 = smul.u32 16, %s648
      %p650 = scmp.lt.s32.totalorder %s25, 1
      %s651 = scalar_select %p650, %s25, 1
      %p652 = scmp.lt.s32.totalorder %s649, 15
      %s653 = scalar_select %p652, %s649, 15
      %s654 = smul.addr %s651, 16
      %s655 = sadd.s32 %s653, %s654
      %s656 = smul.addr %s655, 4
      %s657 = scalar_lea.vmem %s2, %s656
      %s658 = sadd.s32 %s26, 1
      %p659 = scmp.gt.s32.totalorder %s658, 0
      %s660 = scalar_select %p659, %s658, 0
      %p661 = scmp.lt.s32.totalorder %s660, 0
      %s662 = scalar_select %p661, %s660, 0
      %s663 = smul.u32 16, %s662
      %s664 = sadd.s32 %s26, 4294967295
      %p665 = scmp.gt.s32.totalorder %s664, 0
      %s666 = scalar_select %p665, %s664, 0
      %p667 = scmp.lt.s32.totalorder %s666, 0
      %s668 = scalar_select %p667, %s666, 0
      %s669 = smul.u32 16, %s668
      %p670 = scmp.lt.s32.totalorder %s25, 1
      %s671 = scalar_select %p670, %s25, 1
      %p672 = scmp.lt.s32.totalorder %s669, 15
      %s673 = scalar_select %p672, %s669, 15
      %s674 = smul.addr %s671, 16
      %s675 = sadd.s32 %s673, %s674
      %s676 = smul.addr %s675, 4
      %s677 = scalar_lea.vmem %s3, %s676
      %s678 = sadd.s32 %s26, 4294967295
      %p679 = scmp.gt.s32.totalorder %s678, 0
      %s680 = scalar_select %p679, %s678, 0
      %p681 = scmp.lt.s32.totalorder %s680, 0
      %s682 = scalar_select %p681, %s680, 0
      %s683 = smul.u32 16, %s682
      %p684 = scmp.gt.s32.totalorder %s26, 0
      %s685 = scalar_select %p684, %s26, 0
      %p686 = scmp.lt.s32.totalorder %s685, 0
      %s687 = scalar_select %p686, %s685, 0
      %s688 = smul.u32 16, %s687
      %p689 = scmp.lt.s32.totalorder %s25, 1
      %s690 = scalar_select %p689, %s25, 1
      %p691 = scmp.lt.s32.totalorder %s688, 15
      %s692 = scalar_select %p691, %s688, 15
      %s693 = smul.addr %s690, 16
      %s694 = sadd.s32 %s692, %s693
      %s695 = smul.addr %s694, 4
      %s696 = scalar_lea.vmem %s4, %s695
      %p697 = scmp.gt.s32.totalorder %s26, 0
      %s698 = scalar_select %p697, %s26, 0
      %p699 = scmp.lt.s32.totalorder %s698, 0
      %s700 = scalar_select %p699, %s698, 0
      %s701 = smul.u32 16, %s700
      %s702 = sadd.s32 %s26, 1
      %p703 = scmp.gt.s32.totalorder %s702, 0
      %s704 = scalar_select %p703, %s702, 0
      %p705 = scmp.lt.s32.totalorder %s704, 0
      %s706 = scalar_select %p705, %s704, 0
      %s707 = smul.u32 16, %s706
      %p708 = scmp.lt.s32.totalorder %s25, 1
      %s709 = scalar_select %p708, %s25, 1
      %p710 = scmp.lt.s32.totalorder %s707, 15
      %s711 = scalar_select %p710, %s707, 15
      %s712 = smul.addr %s709, 16
      %s713 = sadd.s32 %s711, %s712
      %s714 = smul.addr %s713, 4
      %s715 = scalar_lea.vmem %s5, %s714
      %s716 = sadd.s32 %s26, 1
      %p717 = scmp.gt.s32.totalorder %s716, 0
      %s718 = scalar_select %p717, %s716, 0
      %p719 = scmp.lt.s32.totalorder %s718, 0
      %s720 = scalar_select %p719, %s718, 0
      %s721 = smul.u32 16, %s720
      %p722 = scmp.lt.s32.totalorder %s25, 1
      %s723 = scalar_select %p722, %s25, 1
      %p724 = scmp.lt.s32.totalorder %s26, 0
      %s725 = scalar_select %p724, %s26, 0
      %s726 = sadd.s32 %s725, %s723
      %s727 = smul.addr %s726, 8
      %s728 = scalar_lea.vmem %s7, %s727
      %p729 = scmp.lt.s32.totalorder %s25, 1
      %s730 = scalar_select %p729, %s25, 1
      %p731 = scmp.lt.s32.totalorder %s26, 0
      %s732 = scalar_select %p731, %s26, 0
      %s733 = sadd.s32 %s732, %s730
      %s734 = smul.addr %s733, 8
      %s735 = scalar_lea.vmem %s8, %s734
      %s737 = sld [smem:[#allocation2]]
      %v738 = vlaneseq
      %v739 = vshrl.u32 %v738, 7
      %v740 = vadd.s32 %v739, 8
      %v741 = vadd.s32 %v739, 16
      %v742 = vadd.s32 %v739, 24
      %v743 = vadd.s32 %v739, 32
      %v744 = vadd.s32 %v739, 40
      %v745 = vadd.s32 %v739, 48
      %v746 = vadd.s32 %v739, 56
      %v747 = vadd.s32 %v739, 64
      %v748 = vadd.s32 %v739, 72
      %v749 = vadd.s32 %v739, 80
      %v750 = vadd.s32 %v739, 88
      %v751 = vadd.s32 %v739, 96
      %v752 = vadd.s32 %v739, 104
      %v753 = vadd.s32 %v739, 112
      %v754 = vadd.s32 %v739, 120
      %s755 = smul.u32 %s26, 128
      %v756 = vstv %s755
      %v757 = vadd.s32 %v739, %v756
      %v758 = vadd.s32 %v740, %v756
      %v759 = vadd.s32 %v741, %v756
      %v760 = vadd.s32 %v742, %v756
      %v761 = vadd.s32 %v743, %v756
      %v762 = vadd.s32 %v744, %v756
      %v763 = vadd.s32 %v745, %v756
      %v764 = vadd.s32 %v746, %v756
      %v765 = vadd.s32 %v747, %v756
      %v766 = vadd.s32 %v748, %v756
      %v767 = vadd.s32 %v749, %v756
      %v768 = vadd.s32 %v750, %v756
      %v769 = vadd.s32 %v751, %v756
      %v770 = vadd.s32 %v752, %v756
      %v771 = vadd.s32 %v753, %v756
      %v772 = vadd.s32 %v754, %v756
      %v773 = vlaneseq
      %v774 = vand.u32 %v773, 127
      %v775 = vadd.s32 %v774, 128
      %v776 = vadd.s32 %v774, 256
      %s777 = ssub.s32 %s26, 1
      %s778 = smul.u32 %s777, 128
      %v779 = vstv %s778
      %v780 = vadd.s32 %v774, %v779
      %v781 = vadd.s32 %v775, %v779
      %v782 = vadd.s32 %v776, %v779
      %v783 = vsub.s32 %v780, %v757
      %v784 = vsub.s32 %v781, %v757
      %v785 = vsub.s32 %v782, %v757
      %v786 = vsub.s32 %v780, %v758
      %v787 = vsub.s32 %v781, %v758
      %v788 = vsub.s32 %v782, %v758
      %v789 = vsub.s32 %v780, %v759
      %v790 = vsub.s32 %v781, %v759
      %v791 = vsub.s32 %v782, %v759
      %v792 = vsub.s32 %v780, %v760
      %v793 = vsub.s32 %v781, %v760
      %v794 = vsub.s32 %v782, %v760
      %v795 = vsub.s32 %v780, %v761
      %v796 = vsub.s32 %v781, %v761
      %v797 = vsub.s32 %v782, %v761
      %v798 = vsub.s32 %v780, %v762
      %v799 = vsub.s32 %v781, %v762
      %v800 = vsub.s32 %v782, %v762
      %v801 = vsub.s32 %v780, %v763
      %v802 = vsub.s32 %v781, %v763
      %v803 = vsub.s32 %v782, %v763
      %v804 = vsub.s32 %v780, %v764
      %v805 = vsub.s32 %v781, %v764
      %v806 = vsub.s32 %v782, %v764
      %v807 = vsub.s32 %v780, %v765
      %v808 = vsub.s32 %v781, %v765
      %v809 = vsub.s32 %v782, %v765
      %v810 = vsub.s32 %v780, %v766
      %v811 = vsub.s32 %v781, %v766
      %v812 = vsub.s32 %v782, %v766
      %v813 = vsub.s32 %v780, %v767
      %v814 = vsub.s32 %v781, %v767
      %v815 = vsub.s32 %v782, %v767
      %v816 = vsub.s32 %v780, %v768
      %v817 = vsub.s32 %v781, %v768
      %v818 = vsub.s32 %v782, %v768
      %v819 = vsub.s32 %v780, %v769
      %v820 = vsub.s32 %v781, %v769
      %v821 = vsub.s32 %v782, %v769
      %v822 = vsub.s32 %v780, %v770
      %v823 = vsub.s32 %v781, %v770
      %v824 = vsub.s32 %v782, %v770
      %v825 = vsub.s32 %v780, %v771
      %v826 = vsub.s32 %v781, %v771
      %v827 = vsub.s32 %v782, %v771
      %v828 = vsub.s32 %v780, %v772
      %v829 = vsub.s32 %v781, %v772
      %v830 = vsub.s32 %v782, %v772
      %vm831 = vcmp.lt.s32.totalorder %v757, 8
      %vm832 = vcmp.lt.s32.totalorder %v758, 8
      %vm833 = vcmp.lt.s32.totalorder %v759, 8
      %vm834 = vcmp.lt.s32.totalorder %v760, 8
      %vm835 = vcmp.lt.s32.totalorder %v761, 8
      %vm836 = vcmp.lt.s32.totalorder %v762, 8
      %vm837 = vcmp.lt.s32.totalorder %v763, 8
      %vm838 = vcmp.lt.s32.totalorder %v764, 8
      %vm839 = vcmp.lt.s32.totalorder %v765, 8
      %vm840 = vcmp.lt.s32.totalorder %v766, 8
      %vm841 = vcmp.lt.s32.totalorder %v767, 8
      %vm842 = vcmp.lt.s32.totalorder %v768, 8
      %vm843 = vcmp.lt.s32.totalorder %v769, 8
      %vm844 = vcmp.lt.s32.totalorder %v770, 8
      %vm845 = vcmp.lt.s32.totalorder %v771, 8
      %vm846 = vcmp.lt.s32.totalorder %v772, 8
      %vm847 = vcmp.ge.s32.totalorder %v780, 0
      %vm848 = vcmp.ge.s32.totalorder %v781, 0
      %vm849 = vcmp.ge.s32.totalorder %v782, 0
      %vm850 = vmand %vm831, %vm847
      %vm851 = vmand %vm831, %vm848
      %vm852 = vmand %vm831, %vm849
      %vm853 = vmand %vm832, %vm847
      %vm854 = vmand %vm832, %vm848
      %vm855 = vmand %vm832, %vm849
      %vm856 = vmand %vm833, %vm847
      %vm857 = vmand %vm833, %vm848
      %vm858 = vmand %vm833, %vm849
      %vm859 = vmand %vm834, %vm847
      %vm860 = vmand %vm834, %vm848
      %vm861 = vmand %vm834, %vm849
      %vm862 = vmand %vm835, %vm847
      %vm863 = vmand %vm835, %vm848
      %vm864 = vmand %vm835, %vm849
      %vm865 = vmand %vm836, %vm847
      %vm866 = vmand %vm836, %vm848
      %vm867 = vmand %vm836, %vm849
      %vm868 = vmand %vm837, %vm847
      %vm869 = vmand %vm837, %vm848
      %vm870 = vmand %vm837, %vm849
      %vm871 = vmand %vm838, %vm847
      %vm872 = vmand %vm838, %vm848
      %vm873 = vmand %vm838, %vm849
      %vm874 = vmand %vm839, %vm847
      %vm875 = vmand %vm839, %vm848
      %vm876 = vmand %vm839, %vm849
      %vm877 = vmand %vm840, %vm847
      %vm878 = vmand %vm840, %vm848
      %vm879 = vmand %vm840, %vm849
      %vm880 = vmand %vm841, %vm847
      %vm881 = vmand %vm841, %vm848
      %vm882 = vmand %vm841, %vm849
      %vm883 = vmand %vm842, %vm847
      %vm884 = vmand %vm842, %vm848
      %vm885 = vmand %vm842, %vm849
      %vm886 = vmand %vm843, %vm847
      %vm887 = vmand %vm843, %vm848
      %vm888 = vmand %vm843, %vm849
      %vm889 = vmand %vm844, %vm847
      %vm890 = vmand %vm844, %vm848
      %vm891 = vmand %vm844, %vm849
      %vm892 = vmand %vm845, %vm847
      %vm893 = vmand %vm845, %vm848
      %vm894 = vmand %vm845, %vm849
      %vm895 = vmand %vm846, %vm847
      %vm896 = vmand %vm846, %vm848
      %vm897 = vmand %vm846, %vm849
      %vm898 = vcmp.lt.s32.totalorder %v780, 8
      %vm899 = vcmp.lt.s32.totalorder %v781, 8
      %vm900 = vcmp.lt.s32.totalorder %v782, 8
      %vm901 = vmand %vm850, %vm898
      %vm902 = vmand %vm851, %vm899
      %vm903 = vmand %vm852, %vm900
      %vm904 = vmand %vm853, %vm898
      %vm905 = vmand %vm854, %vm899
      %vm906 = vmand %vm855, %vm900
      %vm907 = vmand %vm856, %vm898
      %vm908 = vmand %vm857, %vm899
      %vm909 = vmand %vm858, %vm900
      %vm910 = vmand %vm859, %vm898
      %vm911 = vmand %vm860, %vm899
      %vm912 = vmand %vm861, %vm900
      %vm913 = vmand %vm862, %vm898
      %vm914 = vmand %vm863, %vm899
      %vm915 = vmand %vm864, %vm900
      %vm916 = vmand %vm865, %vm898
      %vm917 = vmand %vm866, %vm899
      %vm918 = vmand %vm867, %vm900
      %vm919 = vmand %vm868, %vm898
      %vm920 = vmand %vm869, %vm899
      %vm921 = vmand %vm870, %vm900
      %vm922 = vmand %vm871, %vm898
      %vm923 = vmand %vm872, %vm899
      %vm924 = vmand %vm873, %vm900
      %vm925 = vmand %vm874, %vm898
      %vm926 = vmand %vm875, %vm899
      %vm927 = vmand %vm876, %vm900
      %vm928 = vmand %vm877, %vm898
      %vm929 = vmand %vm878, %vm899
      %vm930 = vmand %vm879, %vm900
      %vm931 = vmand %vm880, %vm898
      %vm932 = vmand %vm881, %vm899
      %vm933 = vmand %vm882, %vm900
      %vm934 = vmand %vm883, %vm898
      %vm935 = vmand %vm884, %vm899
      %vm936 = vmand %vm885, %vm900
      %vm937 = vmand %vm886, %vm898
      %vm938 = vmand %vm887, %vm899
      %vm939 = vmand %vm888, %vm900
      %vm940 = vmand %vm889, %vm898
      %vm941 = vmand %vm890, %vm899
      %vm942 = vmand %vm891, %vm900
      %vm943 = vmand %vm892, %vm898
      %vm944 = vmand %vm893, %vm899
      %vm945 = vmand %vm894, %vm900
      %vm946 = vmand %vm895, %vm898
      %vm947 = vmand %vm896, %vm899
      %vm948 = vmand %vm897, %vm900
      %vm949 = vcmp.ge.s32.totalorder %v783, 4294967292
      %vm950 = vcmp.ge.s32.totalorder %v784, 4294967292
      %vm951 = vcmp.ge.s32.totalorder %v785, 4294967292
      %vm952 = vcmp.ge.s32.totalorder %v786, 4294967292
      %vm953 = vcmp.ge.s32.totalorder %v787, 4294967292
      %vm954 = vcmp.ge.s32.totalorder %v788, 4294967292
      %vm955 = vcmp.ge.s32.totalorder %v789, 4294967292
      %vm956 = vcmp.ge.s32.totalorder %v790, 4294967292
      %vm957 = vcmp.ge.s32.totalorder %v791, 4294967292
      %vm958 = vcmp.ge.s32.totalorder %v792, 4294967292
      %vm959 = vcmp.ge.s32.totalorder %v793, 4294967292
      %vm960 = vcmp.ge.s32.totalorder %v794, 4294967292
      %vm961 = vcmp.ge.s32.totalorder %v795, 4294967292
      %vm962 = vcmp.ge.s32.totalorder %v796, 4294967292
      %vm963 = vcmp.ge.s32.totalorder %v797, 4294967292
      %vm964 = vcmp.ge.s32.totalorder %v798, 4294967292
      %vm965 = vcmp.ge.s32.totalorder %v799, 4294967292
      %vm966 = vcmp.ge.s32.totalorder %v800, 4294967292
      %vm967 = vcmp.ge.s32.totalorder %v801, 4294967292
      %vm968 = vcmp.ge.s32.totalorder %v802, 4294967292
      %vm969 = vcmp.ge.s32.totalorder %v803, 4294967292
      %vm970 = vcmp.ge.s32.totalorder %v804, 4294967292
      %vm971 = vcmp.ge.s32.totalorder %v805, 4294967292
      %vm972 = vcmp.ge.s32.totalorder %v806, 4294967292
      %vm973 = vcmp.ge.s32.totalorder %v807, 4294967292
      %vm974 = vcmp.ge.s32.totalorder %v808, 4294967292
      %vm975 = vcmp.ge.s32.totalorder %v809, 4294967292
      %vm976 = vcmp.ge.s32.totalorder %v810, 4294967292
      %vm977 = vcmp.ge.s32.totalorder %v811, 4294967292
      %vm978 = vcmp.ge.s32.totalorder %v812, 4294967292
      %vm979 = vcmp.ge.s32.totalorder %v813, 4294967292
      %vm980 = vcmp.ge.s32.totalorder %v814, 4294967292
      %vm981 = vcmp.ge.s32.totalorder %v815, 4294967292
      %vm982 = vcmp.ge.s32.totalorder %v816, 4294967292
      %vm983 = vcmp.ge.s32.totalorder %v817, 4294967292
      %vm984 = vcmp.ge.s32.totalorder %v818, 4294967292
      %vm985 = vcmp.ge.s32.totalorder %v819, 4294967292
      %vm986 = vcmp.ge.s32.totalorder %v820, 4294967292
      %vm987 = vcmp.ge.s32.totalorder %v821, 4294967292
      %vm988 = vcmp.ge.s32.totalorder %v822, 4294967292
      %vm989 = vcmp.ge.s32.totalorder %v823, 4294967292
      %vm990 = vcmp.ge.s32.totalorder %v824, 4294967292
      %vm991 = vcmp.ge.s32.totalorder %v825, 4294967292
      %vm992 = vcmp.ge.s32.totalorder %v826, 4294967292
      %vm993 = vcmp.ge.s32.totalorder %v827, 4294967292
      %vm994 = vcmp.ge.s32.totalorder %v828, 4294967292
      %vm995 = vcmp.ge.s32.totalorder %v829, 4294967292
      %vm996 = vcmp.ge.s32.totalorder %v830, 4294967292
      %vm997 = vcmp.lt.s32.totalorder %v783, 4
      %vm998 = vcmp.lt.s32.totalorder %v784, 4
      %vm999 = vcmp.lt.s32.totalorder %v785, 4
      %vm1000 = vcmp.lt.s32.totalorder %v786, 4
      %vm1001 = vcmp.lt.s32.totalorder %v787, 4
      %vm1002 = vcmp.lt.s32.totalorder %v788, 4
      %vm1003 = vcmp.lt.s32.totalorder %v789, 4
      %vm1004 = vcmp.lt.s32.totalorder %v790, 4
      %vm1005 = vcmp.lt.s32.totalorder %v791, 4
      %vm1006 = vcmp.lt.s32.totalorder %v792, 4
      %vm1007 = vcmp.lt.s32.totalorder %v793, 4
      %vm1008 = vcmp.lt.s32.totalorder %v794, 4
      %vm1009 = vcmp.lt.s32.totalorder %v795, 4
      %vm1010 = vcmp.lt.s32.totalorder %v796, 4
      %vm1011 = vcmp.lt.s32.totalorder %v797, 4
      %vm1012 = vcmp.lt.s32.totalorder %v798, 4
      %vm1013 = vcmp.lt.s32.totalorder %v799, 4
      %vm1014 = vcmp.lt.s32.totalorder %v800, 4
      %vm1015 = vcmp.lt.s32.totalorder %v801, 4
      %vm1016 = vcmp.lt.s32.totalorder %v802, 4
      %vm1017 = vcmp.lt.s32.totalorder %v803, 4
      %vm1018 = vcmp.lt.s32.totalorder %v804, 4
      %vm1019 = vcmp.lt.s32.totalorder %v805, 4
      %vm1020 = vcmp.lt.s32.totalorder %v806, 4
      %vm1021 = vcmp.lt.s32.totalorder %v807, 4
      %vm1022 = vcmp.lt.s32.totalorder %v808, 4
      %vm1023 = vcmp.lt.s32.totalorder %v809, 4
      %vm1024 = vcmp.lt.s32.totalorder %v810, 4
      %vm1025 = vcmp.lt.s32.totalorder %v811, 4
      %vm1026 = vcmp.lt.s32.totalorder %v812, 4
      %vm1027 = vcmp.lt.s32.totalorder %v813, 4
      %vm1028 = vcmp.lt.s32.totalorder %v814, 4
      %vm1029 = vcmp.lt.s32.totalorder %v815, 4
      %vm1030 = vcmp.lt.s32.totalorder %v816, 4
      %vm1031 = vcmp.lt.s32.totalorder %v817, 4
      %vm1032 = vcmp.lt.s32.totalorder %v818, 4
      %vm1033 = vcmp.lt.s32.totalorder %v819, 4
      %vm1034 = vcmp.lt.s32.totalorder %v820, 4
      %vm1035 = vcmp.lt.s32.totalorder %v821, 4
      %vm1036 = vcmp.lt.s32.totalorder %v822, 4
      %vm1037 = vcmp.lt.s32.totalorder %v823, 4
      %vm1038 = vcmp.lt.s32.totalorder %v824, 4
      %vm1039 = vcmp.lt.s32.totalorder %v825, 4
      %vm1040 = vcmp.lt.s32.totalorder %v826, 4
      %vm1041 = vcmp.lt.s32.totalorder %v827, 4
      %vm1042 = vcmp.lt.s32.totalorder %v828, 4
      %vm1043 = vcmp.lt.s32.totalorder %v829, 4
      %vm1044 = vcmp.lt.s32.totalorder %v830, 4
      %vm1045 = vmand %vm949, %vm997
      %vm1046 = vmand %vm950, %vm998
      %vm1047 = vmand %vm951, %vm999
      %vm1048 = vmand %vm952, %vm1000
      %vm1049 = vmand %vm953, %vm1001
      %vm1050 = vmand %vm954, %vm1002
      %vm1051 = vmand %vm955, %vm1003
      %vm1052 = vmand %vm956, %vm1004
      %vm1053 = vmand %vm957, %vm1005
      %vm1054 = vmand %vm958, %vm1006
      %vm1055 = vmand %vm959, %vm1007
      %vm1056 = vmand %vm960, %vm1008
      %vm1057 = vmand %vm961, %vm1009
      %vm1058 = vmand %vm962, %vm1010
      %vm1059 = vmand %vm963, %vm1011
      %vm1060 = vmand %vm964, %vm1012
      %vm1061 = vmand %vm965, %vm1013
      %vm1062 = vmand %vm966, %vm1014
      %vm1063 = vmand %vm967, %vm1015
      %vm1064 = vmand %vm968, %vm1016
      %vm1065 = vmand %vm969, %vm1017
      %vm1066 = vmand %vm970, %vm1018
      %vm1067 = vmand %vm971, %vm1019
      %vm1068 = vmand %vm972, %vm1020
      %vm1069 = vmand %vm973, %vm1021
      %vm1070 = vmand %vm974, %vm1022
      %vm1071 = vmand %vm975, %vm1023
      %vm1072 = vmand %vm976, %vm1024
      %vm1073 = vmand %vm977, %vm1025
      %vm1074 = vmand %vm978, %vm1026
      %vm1075 = vmand %vm979, %vm1027
      %vm1076 = vmand %vm980, %vm1028
      %vm1077 = vmand %vm981, %vm1029
      %vm1078 = vmand %vm982, %vm1030
      %vm1079 = vmand %vm983, %vm1031
      %vm1080 = vmand %vm984, %vm1032
      %vm1081 = vmand %vm985, %vm1033
      %vm1082 = vmand %vm986, %vm1034
      %vm1083 = vmand %vm987, %vm1035
      %vm1084 = vmand %vm988, %vm1036
      %vm1085 = vmand %vm989, %vm1037
      %vm1086 = vmand %vm990, %vm1038
      %vm1087 = vmand %vm991, %vm1039
      %vm1088 = vmand %vm992, %vm1040
      %vm1089 = vmand %vm993, %vm1041
      %vm1090 = vmand %vm994, %vm1042
      %vm1091 = vmand %vm995, %vm1043
      %vm1092 = vmand %vm996, %vm1044
      %vm1093 = vmand %vm1045, %vm901
      %vm1094 = vmand %vm1046, %vm902
      %vm1095 = vmand %vm1047, %vm903
      %vm1096 = vmand %vm1048, %vm904
      %vm1097 = vmand %vm1049, %vm905
      %vm1098 = vmand %vm1050, %vm906
      %vm1099 = vmand %vm1051, %vm907
      %vm1100 = vmand %vm1052, %vm908
      %vm1101 = vmand %vm1053, %vm909
      %vm1102 = vmand %vm1054, %vm910
      %vm1103 = vmand %vm1055, %vm911
      %vm1104 = vmand %vm1056, %vm912
      %vm1105 = vmand %vm1057, %vm913
      %vm1106 = vmand %vm1058, %vm914
      %vm1107 = vmand %vm1059, %vm915
      %vm1108 = vmand %vm1060, %vm916
      %vm1109 = vmand %vm1061, %vm917
      %vm1110 = vmand %vm1062, %vm918
      %vm1111 = vmand %vm1063, %vm919
      %vm1112 = vmand %vm1064, %vm920
      %vm1113 = vmand %vm1065, %vm921
      %vm1114 = vmand %vm1066, %vm922
      %vm1115 = vmand %vm1067, %vm923
      %vm1116 = vmand %vm1068, %vm924
      %vm1117 = vmand %vm1069, %vm925
      %vm1118 = vmand %vm1070, %vm926
      %vm1119 = vmand %vm1071, %vm927
      %vm1120 = vmand %vm1072, %vm928
      %vm1121 = vmand %vm1073, %vm929
      %vm1122 = vmand %vm1074, %vm930
      %vm1123 = vmand %vm1075, %vm931
      %vm1124 = vmand %vm1076, %vm932
      %vm1125 = vmand %vm1077, %vm933
      %vm1126 = vmand %vm1078, %vm934
      %vm1127 = vmand %vm1079, %vm935
      %vm1128 = vmand %vm1080, %vm936
      %vm1129 = vmand %vm1081, %vm937
      %vm1130 = vmand %vm1082, %vm938
      %vm1131 = vmand %vm1083, %vm939
      %vm1132 = vmand %vm1084, %vm940
      %vm1133 = vmand %vm1085, %vm941
      %vm1134 = vmand %vm1086, %vm942
      %vm1135 = vmand %vm1087, %vm943
      %vm1136 = vmand %vm1088, %vm944
      %vm1137 = vmand %vm1089, %vm945
      %vm1138 = vmand %vm1090, %vm946
      %vm1139 = vmand %vm1091, %vm947
      %vm1140 = vmand %vm1092, %vm948
      %vm1141 = vcmp.ge.s32.totalorder %v783, 4294967280
      %vm1142 = vcmp.ge.s32.totalorder %v784, 4294967280
      %vm1143 = vcmp.ge.s32.totalorder %v785, 4294967280
      %vm1144 = vcmp.ge.s32.totalorder %v786, 4294967280
      %vm1145 = vcmp.ge.s32.totalorder %v787, 4294967280
      %vm1146 = vcmp.ge.s32.totalorder %v788, 4294967280
      %vm1147 = vcmp.ge.s32.totalorder %v789, 4294967280
      %vm1148 = vcmp.ge.s32.totalorder %v790, 4294967280
      %vm1149 = vcmp.ge.s32.totalorder %v791, 4294967280
      %vm1150 = vcmp.ge.s32.totalorder %v792, 4294967280
      %vm1151 = vcmp.ge.s32.totalorder %v793, 4294967280
      %vm1152 = vcmp.ge.s32.totalorder %v794, 4294967280
      %vm1153 = vcmp.ge.s32.totalorder %v795, 4294967280
      %vm1154 = vcmp.ge.s32.totalorder %v796, 4294967280
      %vm1155 = vcmp.ge.s32.totalorder %v797, 4294967280
      %vm1156 = vcmp.ge.s32.totalorder %v798, 4294967280
      %vm1157 = vcmp.ge.s32.totalorder %v799, 4294967280
      %vm1158 = vcmp.ge.s32.totalorder %v800, 4294967280
      %vm1159 = vcmp.ge.s32.totalorder %v801, 4294967280
      %vm1160 = vcmp.ge.s32.totalorder %v802, 4294967280
      %vm1161 = vcmp.ge.s32.totalorder %v803, 4294967280
      %vm1162 = vcmp.ge.s32.totalorder %v804, 4294967280
      %vm1163 = vcmp.ge.s32.totalorder %v805, 4294967280
      %vm1164 = vcmp.ge.s32.totalorder %v806, 4294967280
      %vm1165 = vcmp.ge.s32.totalorder %v807, 4294967280
      %vm1166 = vcmp.ge.s32.totalorder %v808, 4294967280
      %vm1167 = vcmp.ge.s32.totalorder %v809, 4294967280
      %vm1168 = vcmp.ge.s32.totalorder %v810, 4294967280
      %vm1169 = vcmp.ge.s32.totalorder %v811, 4294967280
      %vm1170 = vcmp.ge.s32.totalorder %v812, 4294967280
      %vm1171 = vcmp.ge.s32.totalorder %v813, 4294967280
      %vm1172 = vcmp.ge.s32.totalorder %v814, 4294967280
      %vm1173 = vcmp.ge.s32.totalorder %v815, 4294967280
      %vm1174 = vcmp.ge.s32.totalorder %v816, 4294967280
      %vm1175 = vcmp.ge.s32.totalorder %v817, 4294967280
      %vm1176 = vcmp.ge.s32.totalorder %v818, 4294967280
      %vm1177 = vcmp.ge.s32.totalorder %v819, 4294967280
      %vm1178 = vcmp.ge.s32.totalorder %v820, 4294967280
      %vm1179 = vcmp.ge.s32.totalorder %v821, 4294967280
      %vm1180 = vcmp.ge.s32.totalorder %v822, 4294967280
      %vm1181 = vcmp.ge.s32.totalorder %v823, 4294967280
      %vm1182 = vcmp.ge.s32.totalorder %v824, 4294967280
      %vm1183 = vcmp.ge.s32.totalorder %v825, 4294967280
      %vm1184 = vcmp.ge.s32.totalorder %v826, 4294967280
      %vm1185 = vcmp.ge.s32.totalorder %v827, 4294967280
      %vm1186 = vcmp.ge.s32.totalorder %v828, 4294967280
      %vm1187 = vcmp.ge.s32.totalorder %v829, 4294967280
      %vm1188 = vcmp.ge.s32.totalorder %v830, 4294967280
      %vm1189 = vcmp.lt.s32.totalorder %v783, 16
      %vm1190 = vcmp.lt.s32.totalorder %v784, 16
      %vm1191 = vcmp.lt.s32.totalorder %v785, 16
      %vm1192 = vcmp.lt.s32.totalorder %v786, 16
      %vm1193 = vcmp.lt.s32.totalorder %v787, 16
      %vm1194 = vcmp.lt.s32.totalorder %v788, 16
      %vm1195 = vcmp.lt.s32.totalorder %v789, 16
      %vm1196 = vcmp.lt.s32.totalorder %v790, 16
      %vm1197 = vcmp.lt.s32.totalorder %v791, 16
      %vm1198 = vcmp.lt.s32.totalorder %v792, 16
      %vm1199 = vcmp.lt.s32.totalorder %v793, 16
      %vm1200 = vcmp.lt.s32.totalorder %v794, 16
      %vm1201 = vcmp.lt.s32.totalorder %v795, 16
      %vm1202 = vcmp.lt.s32.totalorder %v796, 16
      %vm1203 = vcmp.lt.s32.totalorder %v797, 16
      %vm1204 = vcmp.lt.s32.totalorder %v798, 16
      %vm1205 = vcmp.lt.s32.totalorder %v799, 16
      %vm1206 = vcmp.lt.s32.totalorder %v800, 16
      %vm1207 = vcmp.lt.s32.totalorder %v801, 16
      %vm1208 = vcmp.lt.s32.totalorder %v802, 16
      %vm1209 = vcmp.lt.s32.totalorder %v803, 16
      %vm1210 = vcmp.lt.s32.totalorder %v804, 16
      %vm1211 = vcmp.lt.s32.totalorder %v805, 16
      %vm1212 = vcmp.lt.s32.totalorder %v806, 16
      %vm1213 = vcmp.lt.s32.totalorder %v807, 16
      %vm1214 = vcmp.lt.s32.totalorder %v808, 16
      %vm1215 = vcmp.lt.s32.totalorder %v809, 16
      %vm1216 = vcmp.lt.s32.totalorder %v810, 16
      %vm1217 = vcmp.lt.s32.totalorder %v811, 16
      %vm1218 = vcmp.lt.s32.totalorder %v812, 16
      %vm1219 = vcmp.lt.s32.totalorder %v813, 16
      %vm1220 = vcmp.lt.s32.totalorder %v814, 16
      %vm1221 = vcmp.lt.s32.totalorder %v815, 16
      %vm1222 = vcmp.lt.s32.totalorder %v816, 16
      %vm1223 = vcmp.lt.s32.totalorder %v817, 16
      %vm1224 = vcmp.lt.s32.totalorder %v818, 16
      %vm1225 = vcmp.lt.s32.totalorder %v819, 16
      %vm1226 = vcmp.lt.s32.totalorder %v820, 16
      %vm1227 = vcmp.lt.s32.totalorder %v821, 16
      %vm1228 = vcmp.lt.s32.totalorder %v822, 16
      %vm1229 = vcmp.lt.s32.totalorder %v823, 16
      %vm1230 = vcmp.lt.s32.totalorder %v824, 16
      %vm1231 = vcmp.lt.s32.totalorder %v825, 16
      %vm1232 = vcmp.lt.s32.totalorder %v826, 16
      %vm1233 = vcmp.lt.s32.totalorder %v827, 16
      %vm1234 = vcmp.lt.s32.totalorder %v828, 16
      %vm1235 = vcmp.lt.s32.totalorder %v829, 16
      %vm1236 = vcmp.lt.s32.totalorder %v830, 16
      %vm1237 = vmand %vm1141, %vm1189
      %vm1238 = vmand %vm1142, %vm1190
      %vm1239 = vmand %vm1143, %vm1191
      %vm1240 = vmand %vm1144, %vm1192
      %vm1241 = vmand %vm1145, %vm1193
      %vm1242 = vmand %vm1146, %vm1194
      %vm1243 = vmand %vm1147, %vm1195
      %vm1244 = vmand %vm1148, %vm1196
      %vm1245 = vmand %vm1149, %vm1197
      %vm1246 = vmand %vm1150, %vm1198
      %vm1247 = vmand %vm1151, %vm1199
      %vm1248 = vmand %vm1152, %vm1200
      %vm1249 = vmand %vm1153, %vm1201
      %vm1250 = vmand %vm1154, %vm1202
      %vm1251 = vmand %vm1155, %vm1203
      %vm1252 = vmand %vm1156, %vm1204
      %vm1253 = vmand %vm1157, %vm1205
      %vm1254 = vmand %vm1158, %vm1206
      %vm1255 = vmand %vm1159, %vm1207
      %vm1256 = vmand %vm1160, %vm1208
      %vm1257 = vmand %vm1161, %vm1209
      %vm1258 = vmand %vm1162, %vm1210
      %vm1259 = vmand %vm1163, %vm1211
      %vm1260 = vmand %vm1164, %vm1212
      %vm1261 = vmand %vm1165, %vm1213
      %vm1262 = vmand %vm1166, %vm1214
      %vm1263 = vmand %vm1167, %vm1215
      %vm1264 = vmand %vm1168, %vm1216
      %vm1265 = vmand %vm1169, %vm1217
      %vm1266 = vmand %vm1170, %vm1218
      %vm1267 = vmand %vm1171, %vm1219
      %vm1268 = vmand %vm1172, %vm1220
      %vm1269 = vmand %vm1173, %vm1221
      %vm1270 = vmand %vm1174, %vm1222
      %vm1271 = vmand %vm1175, %vm1223
      %vm1272 = vmand %vm1176, %vm1224
      %vm1273 = vmand %vm1177, %vm1225
      %vm1274 = vmand %vm1178, %vm1226
      %vm1275 = vmand %vm1179, %vm1227
      %vm1276 = vmand %vm1180, %vm1228
      %vm1277 = vmand %vm1181, %vm1229
      %vm1278 = vmand %vm1182, %vm1230
      %vm1279 = vmand %vm1183, %vm1231
      %vm1280 = vmand %vm1184, %vm1232
      %vm1281 = vmand %vm1185, %vm1233
      %vm1282 = vmand %vm1186, %vm1234
      %vm1283 = vmand %vm1187, %vm1235
      %vm1284 = vmand %vm1188, %vm1236
      %vm1285 = vmand %vm1237, %vm901
      %vm1286 = vmand %vm1238, %vm902
      %vm1287 = vmand %vm1239, %vm903
      %vm1288 = vmand %vm1240, %vm904
      %vm1289 = vmand %vm1241, %vm905
      %vm1290 = vmand %vm1242, %vm906
      %vm1291 = vmand %vm1243, %vm907
      %vm1292 = vmand %vm1244, %vm908
      %vm1293 = vmand %vm1245, %vm909
      %vm1294 = vmand %vm1246, %vm910
      %vm1295 = vmand %vm1247, %vm911
      %vm1296 = vmand %vm1248, %vm912
      %vm1297 = vmand %vm1249, %vm913
      %vm1298 = vmand %vm1250, %vm914
      %vm1299 = vmand %vm1251, %vm915
      %vm1300 = vmand %vm1252, %vm916
      %vm1301 = vmand %vm1253, %vm917
      %vm1302 = vmand %vm1254, %vm918
      %vm1303 = vmand %vm1255, %vm919
      %vm1304 = vmand %vm1256, %vm920
      %vm1305 = vmand %vm1257, %vm921
      %vm1306 = vmand %vm1258, %vm922
      %vm1307 = vmand %vm1259, %vm923
      %vm1308 = vmand %vm1260, %vm924
      %vm1309 = vmand %vm1261, %vm925
      %vm1310 = vmand %vm1262, %vm926
      %vm1311 = vmand %vm1263, %vm927
      %vm1312 = vmand %vm1264, %vm928
      %vm1313 = vmand %vm1265, %vm929
      %vm1314 = vmand %vm1266, %vm930
      %vm1315 = vmand %vm1267, %vm931
      %vm1316 = vmand %vm1268, %vm932
      %vm1317 = vmand %vm1269, %vm933
      %vm1318 = vmand %vm1270, %vm934
      %vm1319 = vmand %vm1271, %vm935
      %vm1320 = vmand %vm1272, %vm936
      %vm1321 = vmand %vm1273, %vm937
      %vm1322 = vmand %vm1274, %vm938
      %vm1323 = vmand %vm1275, %vm939
      %vm1324 = vmand %vm1276, %vm940
      %vm1325 = vmand %vm1277, %vm941
      %vm1326 = vmand %vm1278, %vm942
      %vm1327 = vmand %vm1279, %vm943
      %vm1328 = vmand %vm1280, %vm944
      %vm1329 = vmand %vm1281, %vm945
      %vm1330 = vmand %vm1282, %vm946
      %vm1331 = vmand %vm1283, %vm947
      %vm1332 = vmand %vm1284, %vm948
      %vm1333 = vmxor %vm1093, 1
      %vm1334 = vmxor %vm1094, 1
      %vm1335 = vmxor %vm1095, 1
      %vm1336 = vmxor %vm1096, 1
      %vm1337 = vmxor %vm1097, 1
      %vm1338 = vmxor %vm1098, 1
      %vm1339 = vmxor %vm1099, 1
      %vm1340 = vmxor %vm1100, 1
      %vm1341 = vmxor %vm1101, 1
      %vm1342 = vmxor %vm1102, 1
      %vm1343 = vmxor %vm1103, 1
      %vm1344 = vmxor %vm1104, 1
      %vm1345 = vmxor %vm1105, 1
      %vm1346 = vmxor %vm1106, 1
      %vm1347 = vmxor %vm1107, 1
      %vm1348 = vmxor %vm1108, 1
      %vm1349 = vmxor %vm1109, 1
      %vm1350 = vmxor %vm1110, 1
      %vm1351 = vmxor %vm1111, 1
      %vm1352 = vmxor %vm1112, 1
      %vm1353 = vmxor %vm1113, 1
      %vm1354 = vmxor %vm1114, 1
      %vm1355 = vmxor %vm1115, 1
      %vm1356 = vmxor %vm1116, 1
      %vm1357 = vmxor %vm1117, 1
      %vm1358 = vmxor %vm1118, 1
      %vm1359 = vmxor %vm1119, 1
      %vm1360 = vmxor %vm1120, 1
      %vm1361 = vmxor %vm1121, 1
      %vm1362 = vmxor %vm1122, 1
      %vm1363 = vmxor %vm1123, 1
      %vm1364 = vmxor %vm1124, 1
      %vm1365 = vmxor %vm1125, 1
      %vm1366 = vmxor %vm1126, 1
      %vm1367 = vmxor %vm1127, 1
      %vm1368 = vmxor %vm1128, 1
      %vm1369 = vmxor %vm1129, 1
      %vm1370 = vmxor %vm1130, 1
      %vm1371 = vmxor %vm1131, 1
      %vm1372 = vmxor %vm1132, 1
      %vm1373 = vmxor %vm1133, 1
      %vm1374 = vmxor %vm1134, 1
      %vm1375 = vmxor %vm1135, 1
      %vm1376 = vmxor %vm1136, 1
      %vm1377 = vmxor %vm1137, 1
      %vm1378 = vmxor %vm1138, 1
      %vm1379 = vmxor %vm1139, 1
      %vm1380 = vmxor %vm1140, 1
      %vm1381 = vmand %vm1285, %vm1333
      %vm1382 = vmand %vm1286, %vm1334
      %vm1383 = vmand %vm1287, %vm1335
      %vm1384 = vmand %vm1288, %vm1336
      %vm1385 = vmand %vm1289, %vm1337
      %vm1386 = vmand %vm1290, %vm1338
      %vm1387 = vmand %vm1291, %vm1339
      %vm1388 = vmand %vm1292, %vm1340
      %vm1389 = vmand %vm1293, %vm1341
      %vm1390 = vmand %vm1294, %vm1342
      %vm1391 = vmand %vm1295, %vm1343
      %vm1392 = vmand %vm1296, %vm1344
      %vm1393 = vmand %vm1297, %vm1345
      %vm1394 = vmand %vm1298, %vm1346
      %vm1395 = vmand %vm1299, %vm1347
      %vm1396 = vmand %vm1300, %vm1348
      %vm1397 = vmand %vm1301, %vm1349
      %vm1398 = vmand %vm1302, %vm1350
      %vm1399 = vmand %vm1303, %vm1351
      %vm1400 = vmand %vm1304, %vm1352
      %vm1401 = vmand %vm1305, %vm1353
      %vm1402 = vmand %vm1306, %vm1354
      %vm1403 = vmand %vm1307, %vm1355
      %vm1404 = vmand %vm1308, %vm1356
      %vm1405 = vmand %vm1309, %vm1357
      %vm1406 = vmand %vm1310, %vm1358
      %vm1407 = vmand %vm1311, %vm1359
      %vm1408 = vmand %vm1312, %vm1360
      %vm1409 = vmand %vm1313, %vm1361
      %vm1410 = vmand %vm1314, %vm1362
      %vm1411 = vmand %vm1315, %vm1363
      %vm1412 = vmand %vm1316, %vm1364
      %vm1413 = vmand %vm1317, %vm1365
      %vm1414 = vmand %vm1318, %vm1366
      %vm1415 = vmand %vm1319, %vm1367
      %vm1416 = vmand %vm1320, %vm1368
      %vm1417 = vmand %vm1321, %vm1369
      %vm1418 = vmand %vm1322, %vm1370
      %vm1419 = vmand %vm1323, %vm1371
      %vm1420 = vmand %vm1324, %vm1372
      %vm1421 = vmand %vm1325, %vm1373
      %vm1422 = vmand %vm1326, %vm1374
      %vm1423 = vmand %vm1327, %vm1375
      %vm1424 = vmand %vm1328, %vm1376
      %vm1425 = vmand %vm1329, %vm1377
      %vm1426 = vmand %vm1330, %vm1378
      %vm1427 = vmand %vm1331, %vm1379
      %vm1428 = vmand %vm1332, %vm1380
      %v1429 = vsel %vm1093, 1, 0
      %v1430 = vsel %vm1094, 1, 0
      %v1431 = vsel %vm1095, 1, 0
      %v1432 = vsel %vm1096, 1, 0
      %v1433 = vsel %vm1097, 1, 0
      %v1434 = vsel %vm1098, 1, 0
      %v1435 = vsel %vm1099, 1, 0
      %v1436 = vsel %vm1100, 1, 0
      %v1437 = vsel %vm1101, 1, 0
      %v1438 = vsel %vm1102, 1, 0
      %v1439 = vsel %vm1103, 1, 0
      %v1440 = vsel %vm1104, 1, 0
      %v1441 = vsel %vm1105, 1, 0
      %v1442 = vsel %vm1106, 1, 0
      %v1443 = vsel %vm1107, 1, 0
      %v1444 = vsel %vm1108, 1, 0
      %v1445 = vsel %vm1109, 1, 0
      %v1446 = vsel %vm1110, 1, 0
      %v1447 = vsel %vm1111, 1, 0
      %v1448 = vsel %vm1112, 1, 0
      %v1449 = vsel %vm1113, 1, 0
      %v1450 = vsel %vm1114, 1, 0
      %v1451 = vsel %vm1115, 1, 0
      %v1452 = vsel %vm1116, 1, 0
      %v1453 = vsel %vm1117, 1, 0
      %v1454 = vsel %vm1118, 1, 0
      %v1455 = vsel %vm1119, 1, 0
      %v1456 = vsel %vm1120, 1, 0
      %v1457 = vsel %vm1121, 1, 0
      %v1458 = vsel %vm1122, 1, 0
      %v1459 = vsel %vm1123, 1, 0
      %v1460 = vsel %vm1124, 1, 0
      %v1461 = vsel %vm1125, 1, 0
      %v1462 = vsel %vm1126, 1, 0
      %v1463 = vsel %vm1127, 1, 0
      %v1464 = vsel %vm1128, 1, 0
      %v1465 = vsel %vm1129, 1, 0
      %v1466 = vsel %vm1130, 1, 0
      %v1467 = vsel %vm1131, 1, 0
      %v1468 = vsel %vm1132, 1, 0
      %v1469 = vsel %vm1133, 1, 0
      %v1470 = vsel %vm1134, 1, 0
      %v1471 = vsel %vm1135, 1, 0
      %v1472 = vsel %vm1136, 1, 0
      %v1473 = vsel %vm1137, 1, 0
      %v1474 = vsel %vm1138, 1, 0
      %v1475 = vsel %vm1139, 1, 0
      %v1476 = vsel %vm1140, 1, 0
      %v1477 = vcvt.s32.f32 %v1429
      %v1478 = vcvt.s32.f32 %v1430
      %v1479 = vcvt.s32.f32 %v1431
      %v1480 = vcvt.s32.f32 %v1432
      %v1481 = vcvt.s32.f32 %v1433
      %v1482 = vcvt.s32.f32 %v1434
      %v1483 = vcvt.s32.f32 %v1435
      %v1484 = vcvt.s32.f32 %v1436
      %v1485 = vcvt.s32.f32 %v1437
      %v1486 = vcvt.s32.f32 %v1438
      %v1487 = vcvt.s32.f32 %v1439
      %v1488 = vcvt.s32.f32 %v1440
      %v1489 = vcvt.s32.f32 %v1441
      %v1490 = vcvt.s32.f32 %v1442
      %v1491 = vcvt.s32.f32 %v1443
      %v1492 = vcvt.s32.f32 %v1444
      %v1493 = vcvt.s32.f32 %v1445
      %v1494 = vcvt.s32.f32 %v1446
      %v1495 = vcvt.s32.f32 %v1447
      %v1496 = vcvt.s32.f32 %v1448
      %v1497 = vcvt.s32.f32 %v1449
      %v1498 = vcvt.s32.f32 %v1450
      %v1499 = vcvt.s32.f32 %v1451
      %v1500 = vcvt.s32.f32 %v1452
      %v1501 = vcvt.s32.f32 %v1453
      %v1502 = vcvt.s32.f32 %v1454
      %v1503 = vcvt.s32.f32 %v1455
      %v1504 = vcvt.s32.f32 %v1456
      %v1505 = vcvt.s32.f32 %v1457
      %v1506 = vcvt.s32.f32 %v1458
      %v1507 = vcvt.s32.f32 %v1459
      %v1508 = vcvt.s32.f32 %v1460
      %v1509 = vcvt.s32.f32 %v1461
      %v1510 = vcvt.s32.f32 %v1462
      %v1511 = vcvt.s32.f32 %v1463
      %v1512 = vcvt.s32.f32 %v1464
      %v1513 = vcvt.s32.f32 %v1465
      %v1514 = vcvt.s32.f32 %v1466
      %v1515 = vcvt.s32.f32 %v1467
      %v1516 = vcvt.s32.f32 %v1468
      %v1517 = vcvt.s32.f32 %v1469
      %v1518 = vcvt.s32.f32 %v1470
      %v1519 = vcvt.s32.f32 %v1471
      %v1520 = vcvt.s32.f32 %v1472
      %v1521 = vcvt.s32.f32 %v1473
      %v1522 = vcvt.s32.f32 %v1474
      %v1523 = vcvt.s32.f32 %v1475
      %v1524 = vcvt.s32.f32 %v1476
      %v1525 = vsel %vm1381, 1, 0
      %v1526 = vsel %vm1382, 1, 0
      %v1527 = vsel %vm1383, 1, 0
      %v1528 = vsel %vm1384, 1, 0
      %v1529 = vsel %vm1385, 1, 0
      %v1530 = vsel %vm1386, 1, 0
      %v1531 = vsel %vm1387, 1, 0
      %v1532 = vsel %vm1388, 1, 0
      %v1533 = vsel %vm1389, 1, 0
      %v1534 = vsel %vm1390, 1, 0
      %v1535 = vsel %vm1391, 1, 0
      %v1536 = vsel %vm1392, 1, 0
      %v1537 = vsel %vm1393, 1, 0
      %v1538 = vsel %vm1394, 1, 0
      %v1539 = vsel %vm1395, 1, 0
      %v1540 = vsel %vm1396, 1, 0
      %v1541 = vsel %vm1397, 1, 0
      %v1542 = vsel %vm1398, 1, 0
      %v1543 = vsel %vm1399, 1, 0
      %v1544 = vsel %vm1400, 1, 0
      %v1545 = vsel %vm1401, 1, 0
      %v1546 = vsel %vm1402, 1, 0
      %v1547 = vsel %vm1403, 1, 0
      %v1548 = vsel %vm1404, 1, 0
      %v1549 = vsel %vm1405, 1, 0
      %v1550 = vsel %vm1406, 1, 0
      %v1551 = vsel %vm1407, 1, 0
      %v1552 = vsel %vm1408, 1, 0
      %v1553 = vsel %vm1409, 1, 0
      %v1554 = vsel %vm1410, 1, 0
      %v1555 = vsel %vm1411, 1, 0
      %v1556 = vsel %vm1412, 1, 0
      %v1557 = vsel %vm1413, 1, 0
      %v1558 = vsel %vm1414, 1, 0
      %v1559 = vsel %vm1415, 1, 0
      %v1560 = vsel %vm1416, 1, 0
      %v1561 = vsel %vm1417, 1, 0
      %v1562 = vsel %vm1418, 1, 0
      %v1563 = vsel %vm1419, 1, 0
      %v1564 = vsel %vm1420, 1, 0
      %v1565 = vsel %vm1421, 1, 0
      %v1566 = vsel %vm1422, 1, 0
      %v1567 = vsel %vm1423, 1, 0
      %v1568 = vsel %vm1424, 1, 0
      %v1569 = vsel %vm1425, 1, 0
      %v1570 = vsel %vm1426, 1, 0
      %v1571 = vsel %vm1427, 1, 0
      %v1572 = vsel %vm1428, 1, 0
      %v1573 = vcvt.s32.f32 %v1525
      %v1574 = vcvt.s32.f32 %v1526
      %v1575 = vcvt.s32.f32 %v1527
      %v1576 = vcvt.s32.f32 %v1528
      %v1577 = vcvt.s32.f32 %v1529
      %v1578 = vcvt.s32.f32 %v1530
      %v1579 = vcvt.s32.f32 %v1531
      %v1580 = vcvt.s32.f32 %v1532
      %v1581 = vcvt.s32.f32 %v1533
      %v1582 = vcvt.s32.f32 %v1534
      %v1583 = vcvt.s32.f32 %v1535
      %v1584 = vcvt.s32.f32 %v1536
      %v1585 = vcvt.s32.f32 %v1537
      %v1586 = vcvt.s32.f32 %v1538
      %v1587 = vcvt.s32.f32 %v1539
      %v1588 = vcvt.s32.f32 %v1540
      %v1589 = vcvt.s32.f32 %v1541
      %v1590 = vcvt.s32.f32 %v1542
      %v1591 = vcvt.s32.f32 %v1543
      %v1592 = vcvt.s32.f32 %v1544
      %v1593 = vcvt.s32.f32 %v1545
      %v1594 = vcvt.s32.f32 %v1546
      %v1595 = vcvt.s32.f32 %v1547
      %v1596 = vcvt.s32.f32 %v1548
      %v1597 = vcvt.s32.f32 %v1549
      %v1598 = vcvt.s32.f32 %v1550
      %v1599 = vcvt.s32.f32 %v1551
      %v1600 = vcvt.s32.f32 %v1552
      %v1601 = vcvt.s32.f32 %v1553
      %v1602 = vcvt.s32.f32 %v1554
      %v1603 = vcvt.s32.f32 %v1555
      %v1604 = vcvt.s32.f32 %v1556
      %v1605 = vcvt.s32.f32 %v1557
      %v1606 = vcvt.s32.f32 %v1558
      %v1607 = vcvt.s32.f32 %v1559
      %v1608 = vcvt.s32.f32 %v1560
      %v1609 = vcvt.s32.f32 %v1561
      %v1610 = vcvt.s32.f32 %v1562
      %v1611 = vcvt.s32.f32 %v1563
      %v1612 = vcvt.s32.f32 %v1564
      %v1613 = vcvt.s32.f32 %v1565
      %v1614 = vcvt.s32.f32 %v1566
      %v1615 = vcvt.s32.f32 %v1567
      %v1616 = vcvt.s32.f32 %v1568
      %v1617 = vcvt.s32.f32 %v1569
      %v1618 = vcvt.s32.f32 %v1570
      %v1619 = vcvt.s32.f32 %v1571
      %v1620 = vcvt.s32.f32 %v1572
      %v1621 = vld [vmem:[%s677] sm:$0xf]
      %v1622 = vld [vmem:[%s677 + $0x4] sm:$0xf]
      %v1623 = vld [vmem:[%s677 + $0x8] sm:$0xf]
      %v1624 = vld [vmem:[%s677 + $0xc] sm:$0xf]
      %v1625 = vld [vmem:[%s677 + $0x10] sm:$0xf]
      %v1626 = vld [vmem:[%s677 + $0x14] sm:$0xf]
      %v1627 = vld [vmem:[%s677 + $0x18] sm:$0xf]
      %v1628 = vld [vmem:[%s677 + $0x1c] sm:$0xf]
      %v1629 = vld [vmem:[%s677 + $0x20] sm:$0xf]
      %v1630 = vld [vmem:[%s677 + $0x24] sm:$0xf]
      %v1631 = vld [vmem:[%s677 + $0x28] sm:$0xf]
      %v1632 = vld [vmem:[%s677 + $0x2c] sm:$0xf]
      %v1633 = vld [vmem:[%s677 + $0x30] sm:$0xf]
      %v1634 = vld [vmem:[%s677 + $0x34] sm:$0xf]
      %v1635 = vld [vmem:[%s677 + $0x38] sm:$0xf]
      %v1636 = vld [vmem:[%s677 + $0x3c] sm:$0xf]
      %v1637 = vld [vmem:[%s696] sm:$0xf]
      %v1638 = vld [vmem:[%s696 + $0x4] sm:$0xf]
      %v1639 = vld [vmem:[%s696 + $0x8] sm:$0xf]
      %v1640 = vld [vmem:[%s696 + $0xc] sm:$0xf]
      %v1641 = vld [vmem:[%s696 + $0x10] sm:$0xf]
      %v1642 = vld [vmem:[%s696 + $0x14] sm:$0xf]
      %v1643 = vld [vmem:[%s696 + $0x18] sm:$0xf]
      %v1644 = vld [vmem:[%s696 + $0x1c] sm:$0xf]
      %v1645 = vld [vmem:[%s696 + $0x20] sm:$0xf]
      %v1646 = vld [vmem:[%s696 + $0x24] sm:$0xf]
      %v1647 = vld [vmem:[%s696 + $0x28] sm:$0xf]
      %v1648 = vld [vmem:[%s696 + $0x2c] sm:$0xf]
      %v1649 = vld [vmem:[%s696 + $0x30] sm:$0xf]
      %v1650 = vld [vmem:[%s696 + $0x34] sm:$0xf]
      %v1651 = vld [vmem:[%s696 + $0x38] sm:$0xf]
      %v1652 = vld [vmem:[%s696 + $0x3c] sm:$0xf]
      %v1653 = vld [vmem:[%s715] sm:$0xf]
      %v1654 = vld [vmem:[%s715 + $0x4] sm:$0xf]
      %v1655 = vld [vmem:[%s715 + $0x8] sm:$0xf]
      %v1656 = vld [vmem:[%s715 + $0xc] sm:$0xf]
      %v1657 = vld [vmem:[%s715 + $0x10] sm:$0xf]
      %v1658 = vld [vmem:[%s715 + $0x14] sm:$0xf]
      %v1659 = vld [vmem:[%s715 + $0x18] sm:$0xf]
      %v1660 = vld [vmem:[%s715 + $0x1c] sm:$0xf]
      %v1661 = vld [vmem:[%s715 + $0x20] sm:$0xf]
      %v1662 = vld [vmem:[%s715 + $0x24] sm:$0xf]
      %v1663 = vld [vmem:[%s715 + $0x28] sm:$0xf]
      %v1664 = vld [vmem:[%s715 + $0x2c] sm:$0xf]
      %v1665 = vld [vmem:[%s715 + $0x30] sm:$0xf]
      %v1666 = vld [vmem:[%s715 + $0x34] sm:$0xf]
      %v1667 = vld [vmem:[%s715 + $0x38] sm:$0xf]
      %v1668 = vld [vmem:[%s715 + $0x3c] sm:$0xf]
      %v1685 = vunpack.c.l.b16 %v1621
      %v1686 = vunpack.c.l.b16 %v1622
      %v1687 = vunpack.c.l.b16 %v1623
      %v1688 = vunpack.c.l.b16 %v1624
      %v1689 = vunpack.c.l.b16 %v1625
      %v1690 = vunpack.c.l.b16 %v1626
      %v1691 = vunpack.c.l.b16 %v1627
      %v1692 = vunpack.c.l.b16 %v1628
      %v1693 = vunpack.c.l.b16 %v1629
      %v1694 = vunpack.c.l.b16 %v1630
      %v1695 = vunpack.c.l.b16 %v1631
      %v1696 = vunpack.c.l.b16 %v1632
      %v1697 = vunpack.c.l.b16 %v1633
      %v1698 = vunpack.c.l.b16 %v1634
      %v1699 = vunpack.c.l.b16 %v1635
      %v1700 = vunpack.c.l.b16 %v1636
      %v1701 = vpack.c.b16 %v1686, %v1685
      %v1702 = vpack.c.b16 %v1688, %v1687
      %v1703 = vpack.c.b16 %v1690, %v1689
      %v1704 = vpack.c.b16 %v1692, %v1691
      %v1705 = vpack.c.b16 %v1694, %v1693
      %v1706 = vpack.c.b16 %v1696, %v1695
      %v1707 = vpack.c.b16 %v1698, %v1697
      %v1708 = vpack.c.b16 %v1700, %v1699
      %v1733 = vunpack.c.l.b16 %v1637
      %v1734 = vunpack.c.l.b16 %v1638
      %v1735 = vunpack.c.l.b16 %v1639
      %v1736 = vunpack.c.l.b16 %v1640
      %v1737 = vunpack.c.l.b16 %v1641
      %v1738 = vunpack.c.l.b16 %v1642
      %v1739 = vunpack.c.l.b16 %v1643
      %v1740 = vunpack.c.l.b16 %v1644
      %v1741 = vunpack.c.l.b16 %v1645
      %v1742 = vunpack.c.l.b16 %v1646
      %v1743 = vunpack.c.l.b16 %v1647
      %v1744 = vunpack.c.l.b16 %v1648
      %v1745 = vunpack.c.l.b16 %v1649
      %v1746 = vunpack.c.l.b16 %v1650
      %v1747 = vunpack.c.l.b16 %v1651
      %v1748 = vunpack.c.l.b16 %v1652
      %v1749 = vpack.c.b16 %v1734, %v1733
      %v1750 = vpack.c.b16 %v1736, %v1735
      %v1751 = vpack.c.b16 %v1738, %v1737
      %v1752 = vpack.c.b16 %v1740, %v1739
      %v1753 = vpack.c.b16 %v1742, %v1741
      %v1754 = vpack.c.b16 %v1744, %v1743
      %v1755 = vpack.c.b16 %v1746, %v1745
      %v1756 = vpack.c.b16 %v1748, %v1747
      %v1781 = vunpack.c.l.b16 %v1653
      %v1782 = vunpack.c.l.b16 %v1654
      %v1783 = vunpack.c.l.b16 %v1655
      %v1784 = vunpack.c.l.b16 %v1656
      %v1785 = vunpack.c.l.b16 %v1657
      %v1786 = vunpack.c.l.b16 %v1658
      %v1787 = vunpack.c.l.b16 %v1659
      %v1788 = vunpack.c.l.b16 %v1660
      %v1789 = vunpack.c.l.b16 %v1661
      %v1790 = vunpack.c.l.b16 %v1662
      %v1791 = vunpack.c.l.b16 %v1663
      %v1792 = vunpack.c.l.b16 %v1664
      %v1793 = vunpack.c.l.b16 %v1665
      %v1794 = vunpack.c.l.b16 %v1666
      %v1795 = vunpack.c.l.b16 %v1667
      %v1796 = vunpack.c.l.b16 %v1668
      %v1797 = vpack.c.b16 %v1782, %v1781
      %v1798 = vpack.c.b16 %v1784, %v1783
      %v1799 = vpack.c.b16 %v1786, %v1785
      %v1800 = vpack.c.b16 %v1788, %v1787
      %v1801 = vpack.c.b16 %v1790, %v1789
      %v1802 = vpack.c.b16 %v1792, %v1791
      %v1803 = vpack.c.b16 %v1794, %v1793
      %v1804 = vpack.c.b16 %v1796, %v1795
      %v1813 = vld [vmem:[%s619] sm:$0xf]
      %v1814 = vld [vmem:[%s619 + $0x4] sm:$0xf]
      %v1815 = vld [vmem:[%s619 + $0x8] sm:$0xf]
      %v1816 = vld [vmem:[%s619 + $0xc] sm:$0xf]
      %v1817 = vld [vmem:[%s619 + $0x10] sm:$0xf]
      %v1818 = vld [vmem:[%s619 + $0x14] sm:$0xf]
      %v1819 = vld [vmem:[%s619 + $0x18] sm:$0xf]
      %v1820 = vld [vmem:[%s619 + $0x1c] sm:$0xf]
      %v1821 = vld [vmem:[%s619 + $0x20] sm:$0xf]
      %v1822 = vld [vmem:[%s619 + $0x24] sm:$0xf]
      %v1823 = vld [vmem:[%s619 + $0x28] sm:$0xf]
      %v1824 = vld [vmem:[%s619 + $0x2c] sm:$0xf]
      %v1825 = vld [vmem:[%s619 + $0x30] sm:$0xf]
      %v1826 = vld [vmem:[%s619 + $0x34] sm:$0xf]
      %v1827 = vld [vmem:[%s619 + $0x38] sm:$0xf]
      %v1828 = vld [vmem:[%s619 + $0x3c] sm:$0xf]
      %v1829 = vld [vmem:[%s638] sm:$0xf]
      %v1830 = vld [vmem:[%s638 + $0x4] sm:$0xf]
      %v1831 = vld [vmem:[%s638 + $0x8] sm:$0xf]
      %v1832 = vld [vmem:[%s638 + $0xc] sm:$0xf]
      %v1833 = vld [vmem:[%s638 + $0x10] sm:$0xf]
      %v1834 = vld [vmem:[%s638 + $0x14] sm:$0xf]
      %v1835 = vld [vmem:[%s638 + $0x18] sm:$0xf]
      %v1836 = vld [vmem:[%s638 + $0x1c] sm:$0xf]
      %v1837 = vld [vmem:[%s638 + $0x20] sm:$0xf]
      %v1838 = vld [vmem:[%s638 + $0x24] sm:$0xf]
      %v1839 = vld [vmem:[%s638 + $0x28] sm:$0xf]
      %v1840 = vld [vmem:[%s638 + $0x2c] sm:$0xf]
      %v1841 = vld [vmem:[%s638 + $0x30] sm:$0xf]
      %v1842 = vld [vmem:[%s638 + $0x34] sm:$0xf]
      %v1843 = vld [vmem:[%s638 + $0x38] sm:$0xf]
      %v1844 = vld [vmem:[%s638 + $0x3c] sm:$0xf]
      %v1845 = vld [vmem:[%s657] sm:$0xf]
      %v1846 = vld [vmem:[%s657 + $0x4] sm:$0xf]
      %v1847 = vld [vmem:[%s657 + $0x8] sm:$0xf]
      %v1848 = vld [vmem:[%s657 + $0xc] sm:$0xf]
      %v1849 = vld [vmem:[%s657 + $0x10] sm:$0xf]
      %v1850 = vld [vmem:[%s657 + $0x14] sm:$0xf]
      %v1851 = vld [vmem:[%s657 + $0x18] sm:$0xf]
      %v1852 = vld [vmem:[%s657 + $0x1c] sm:$0xf]
      %v1853 = vld [vmem:[%s657 + $0x20] sm:$0xf]
      %v1854 = vld [vmem:[%s657 + $0x24] sm:$0xf]
      %v1855 = vld [vmem:[%s657 + $0x28] sm:$0xf]
      %v1856 = vld [vmem:[%s657 + $0x2c] sm:$0xf]
      %v1857 = vld [vmem:[%s657 + $0x30] sm:$0xf]
      %v1858 = vld [vmem:[%s657 + $0x34] sm:$0xf]
      %v1859 = vld [vmem:[%s657 + $0x38] sm:$0xf]
      %v1860 = vld [vmem:[%s657 + $0x3c] sm:$0xf]
      %v1877 = vunpack.c.l.b16 %v1813
      %v1878 = vunpack.c.l.b16 %v1814
      %v1879 = vunpack.c.l.b16 %v1815
      %v1880 = vunpack.c.l.b16 %v1816
      %v1881 = vunpack.c.l.b16 %v1817
      %v1882 = vunpack.c.l.b16 %v1818
      %v1883 = vunpack.c.l.b16 %v1819
      %v1884 = vunpack.c.l.b16 %v1820
      %v1885 = vunpack.c.l.b16 %v1821
      %v1886 = vunpack.c.l.b16 %v1822
      %v1887 = vunpack.c.l.b16 %v1823
      %v1888 = vunpack.c.l.b16 %v1824
      %v1889 = vunpack.c.l.b16 %v1825
      %v1890 = vunpack.c.l.b16 %v1826
      %v1891 = vunpack.c.l.b16 %v1827
      %v1892 = vunpack.c.l.b16 %v1828
      %v1893 = vpack.c.b16 %v1878, %v1877
      %v1894 = vpack.c.b16 %v1880, %v1879
      %v1895 = vpack.c.b16 %v1882, %v1881
      %v1896 = vpack.c.b16 %v1884, %v1883
      %v1897 = vpack.c.b16 %v1886, %v1885
      %v1898 = vpack.c.b16 %v1888, %v1887
      %v1899 = vpack.c.b16 %v1890, %v1889
      %v1900 = vpack.c.b16 %v1892, %v1891
      %v1925 = vunpack.c.l.b16 %v1829
      %v1926 = vunpack.c.l.b16 %v1830
      %v1927 = vunpack.c.l.b16 %v1831
      %v1928 = vunpack.c.l.b16 %v1832
      %v1929 = vunpack.c.l.b16 %v1833
      %v1930 = vunpack.c.l.b16 %v1834
      %v1931 = vunpack.c.l.b16 %v1835
      %v1932 = vunpack.c.l.b16 %v1836
      %v1933 = vunpack.c.l.b16 %v1837
      %v1934 = vunpack.c.l.b16 %v1838
      %v1935 = vunpack.c.l.b16 %v1839
      %v1936 = vunpack.c.l.b16 %v1840
      %v1937 = vunpack.c.l.b16 %v1841
      %v1938 = vunpack.c.l.b16 %v1842
      %v1939 = vunpack.c.l.b16 %v1843
      %v1940 = vunpack.c.l.b16 %v1844
      %v1941 = vpack.c.b16 %v1926, %v1925
      %v1942 = vpack.c.b16 %v1928, %v1927
      %v1943 = vpack.c.b16 %v1930, %v1929
      %v1944 = vpack.c.b16 %v1932, %v1931
      %v1945 = vpack.c.b16 %v1934, %v1933
      %v1946 = vpack.c.b16 %v1936, %v1935
      %v1947 = vpack.c.b16 %v1938, %v1937
      %v1948 = vpack.c.b16 %v1940, %v1939
      %v1973 = vunpack.c.l.b16 %v1845
      %v1974 = vunpack.c.l.b16 %v1846
      %v1975 = vunpack.c.l.b16 %v1847
      %v1976 = vunpack.c.l.b16 %v1848
      %v1977 = vunpack.c.l.b16 %v1849
      %v1978 = vunpack.c.l.b16 %v1850
      %v1979 = vunpack.c.l.b16 %v1851
      %v1980 = vunpack.c.l.b16 %v1852
      %v1981 = vunpack.c.l.b16 %v1853
      %v1982 = vunpack.c.l.b16 %v1854
      %v1983 = vunpack.c.l.b16 %v1855
      %v1984 = vunpack.c.l.b16 %v1856
      %v1985 = vunpack.c.l.b16 %v1857
      %v1986 = vunpack.c.l.b16 %v1858
      %v1987 = vunpack.c.l.b16 %v1859
      %v1988 = vunpack.c.l.b16 %v1860
      %v1989 = vpack.c.b16 %v1974, %v1973
      %v1990 = vpack.c.b16 %v1976, %v1975
      %v1991 = vpack.c.b16 %v1978, %v1977
      %v1992 = vpack.c.b16 %v1980, %v1979
      %v1993 = vpack.c.b16 %v1982, %v1981
      %v1994 = vpack.c.b16 %v1984, %v1983
      %v1995 = vpack.c.b16 %v1986, %v1985
      %v1996 = vpack.c.b16 %v1988, %v1987
      %v2005 = vstv %s737
      %2006 = vmatprep.subr.bf16.mxu0 0
      %2007 = vmatpush1.bf16.xpose.msra.mxu0 %v1701
      %2008 = vmatprep.subr.bf16.mxu0 0
      %2009 = vmatpush1.bf16.xpose.msra.mxu0 %v1702
      %2010 = vmatprep.subr.bf16.mxu0 0
      %2011 = vmatpush1.bf16.xpose.msra.mxu0 %v1703
      %2012 = vmatprep.subr.bf16.mxu0 0
      %2013 = vmatpush1.bf16.xpose.msra.mxu0 %v1704
      %2014 = vmatprep.subr.bf16.mxu0 0
      %2015 = vmatpush1.bf16.xpose.msra.mxu0 %v1705
      %2016 = vmatprep.subr.bf16.mxu0 0
      %2017 = vmatpush1.bf16.xpose.msra.mxu0 %v1706
      %2018 = vmatprep.subr.bf16.mxu0 0
      %2019 = vmatpush1.bf16.xpose.msra.mxu0 %v1707
      %2020 = vmatprep.subr.bf16.mxu0 0
      %2021 = vmatpush1.bf16.xpose.msra.mxu0 %v1708
      %2022 = vmatprep.subr.bf16.mxu0 0
      %2023 = vmatpush1.bf16.xpose.msra.mxu0 %v1749
      %2024 = vmatprep.subr.bf16.mxu0 0
      %2025 = vmatpush1.bf16.xpose.msra.mxu0 %v1750
      %2026 = vmatprep.subr.bf16.mxu0 0
      %2027 = vmatpush1.bf16.xpose.msra.mxu0 %v1751
      %2028 = vmatprep.subr.bf16.mxu0 0
      %2029 = vmatpush1.bf16.xpose.msra.mxu0 %v1752
      %2030 = vmatprep.subr.bf16.mxu0 0
      %2031 = vmatpush1.bf16.xpose.msra.mxu0 %v1753
      %2032 = vmatprep.subr.bf16.mxu0 0
      %2033 = vmatpush1.bf16.xpose.msra.mxu0 %v1754
      %2034 = vmatprep.subr.bf16.mxu0 0
      %2035 = vmatpush1.bf16.xpose.msra.mxu0 %v1755
      %2036 = vmatprep.subr.bf16.mxu0 0
      %2037 = vmatpush1.bf16.xpose.msra.mxu0 %v1756
      %2038 = vmatprep.mubr.bf16.mxu0 0
      %2039 = vmatmul.mubr.bf16.gmra.mrb[0].mxu0 %v1941
      %v2040 = vpop.f32.mrb[0].mxu0
      %v2041 = vadd.f32 %v2005, %v2040
      %v2042 = vpop.f32.mrb[0].mxu0
      %v2043 = vadd.f32 %v2005, %v2042
      %v2044 = vpop.f32.mrb[0].mxu0
      %v2045 = vadd.f32 %v2005, %v2044
      %v2046 = vpop.f32.mrb[0].mxu0
      %v2047 = vadd.f32 %v2005, %v2046
      %2048 = vmatprep.mubr.bf16.mxu0 0
      %2049 = vmatmul.mubr.bf16.gmra.mrb[0].mxu0 %v1942
      %v2050 = vpop.f32.mrb[0].mxu0
      %v2051 = vadd.f32 %v2005, %v2050
      %v2052 = vpop.f32.mrb[0].mxu0
      %v2053 = vadd.f32 %v2005, %v2052
      %v2054 = vpop.f32.mrb[0].mxu0
      %v2055 = vadd.f32 %v2005, %v2054
      %v2056 = vpop.f32.mrb[0].mxu0
      %v2057 = vadd.f32 %v2005, %v2056
      %2058 = vmatprep.mubr.bf16.mxu0 0
      %2059 = vmatmul.mubr.bf16.gmra.mrb[0].mxu0 %v1943
      %v2060 = vpop.f32.mrb[0].mxu0
      %v2061 = vadd.f32 %v2005, %v2060
      %v2062 = vpop.f32.mrb[0].mxu0
      %v2063 = vadd.f32 %v2005, %v2062
      %v2064 = vpop.f32.mrb[0].mxu0
      %v2065 = vadd.f32 %v2005, %v2064
      %v2066 = vpop.f32.mrb[0].mxu0
      %v2067 = vadd.f32 %v2005, %v2066
      %2068 = vmatprep.mubr.bf16.mxu0 0
      %2069 = vmatmul.mubr.bf16.gmra.mrb[0].mxu0 %v1944
      %v2070 = vpop.f32.mrb[0].mxu0
      %v2071 = vadd.f32 %v2005, %v2070
      %v2072 = vpop.f32.mrb[0].mxu0
      %v2073 = vadd.f32 %v2005, %v2072
      %v2074 = vpop.f32.mrb[0].mxu0
      %v2075 = vadd.f32 %v2005, %v2074
      %v2076 = vpop.f32.mrb[0].mxu0
      %v2077 = vadd.f32 %v2005, %v2076
      %2078 = vmatprep.mubr.bf16.mxu0 0
      %2079 = vmatmul.mubr.bf16.gmra.mrb[0].mxu0 %v1945
      %v2080 = vpop.f32.mrb[0].mxu0
      %v2081 = vadd.f32 %v2005, %v2080
      %v2082 = vpop.f32.mrb[0].mxu0
      %v2083 = vadd.f32 %v2005, %v2082
      %v2084 = vpop.f32.mrb[0].mxu0
      %v2085 = vadd.f32 %v2005, %v2084
      %v2086 = vpop.f32.mrb[0].mxu0
      %v2087 = vadd.f32 %v2005, %v2086
      %2088 = vmatprep.mubr.bf16.mxu0 0
      %2089 = vmatmul.mubr.bf16.gmra.mrb[0].mxu0 %v1946
      %v2090 = vpop.f32.mrb[0].mxu0
      %v2091 = vadd.f32 %v2005, %v2090
      %v2092 = vpop.f32.mrb[0].mxu0
      %v2093 = vadd.f32 %v2005, %v2092
      %v2094 = vpop.f32.mrb[0].mxu0
      %v2095 = vadd.f32 %v2005, %v2094
      %v2096 = vpop.f32.mrb[0].mxu0
      %v2097 = vadd.f32 %v2005, %v2096
      %2098 = vmatprep.mubr.bf16.mxu0 0
      %2099 = vmatmul.mubr.bf16.gmra.mrb[0].mxu0 %v1947
      %v2100 = vpop.f32.mrb[0].mxu0
      %v2101 = vadd.f32 %v2005, %v2100
      %v2102 = vpop.f32.mrb[0].mxu0
      %v2103 = vadd.f32 %v2005, %v2102
      %v2104 = vpop.f32.mrb[0].mxu0
      %v2105 = vadd.f32 %v2005, %v2104
      %v2106 = vpop.f32.mrb[0].mxu0
      %v2107 = vadd.f32 %v2005, %v2106
      %2108 = vmatprep.mubr.bf16.mxu0 0
      %2109 = vmatmul.mubr.bf16.gmra.mrb[0].mxu0 %v1948
      %v2110 = vpop.f32.mrb[0].mxu0
      %v2111 = vadd.f32 %v2005, %v2110
      %v2112 = vpop.f32.mrb[0].mxu0
      %v2113 = vadd.f32 %v2005, %v2112
      %v2114 = vpop.f32.mrb[0].mxu0
      %v2115 = vadd.f32 %v2005, %v2114
      %v2116 = vpop.f32.mrb[0].mxu0
      %v2117 = vadd.f32 %v2005, %v2116
      %2118 = vdwg.mxu0
      %2119 = vmatprep.subr.bf16.mxu0 0
      %2120 = vmatpush1.bf16.xpose.msra.mxu0 %v1797
      %2121 = vmatprep.subr.bf16.mxu0 0
      %2122 = vmatpush1.bf16.xpose.msra.mxu0 %v1798
      %2123 = vmatprep.subr.bf16.mxu0 0
      %2124 = vmatpush1.bf16.xpose.msra.mxu0 %v1799
      %2125 = vmatprep.subr.bf16.mxu0 0
      %2126 = vmatpush1.bf16.xpose.msra.mxu0 %v1800
      %2127 = vmatprep.subr.bf16.mxu0 0
      %2128 = vmatpush1.bf16.xpose.msra.mxu0 %v1801
      %2129 = vmatprep.subr.bf16.mxu0 0
      %2130 = vmatpush1.bf16.xpose.msra.mxu0 %v1802
      %2131 = vmatprep.subr.bf16.mxu0 0
      %2132 = vmatpush1.bf16.xpose.msra.mxu0 %v1803
      %2133 = vmatprep.subr.bf16.mxu0 0
      %2134 = vmatpush1.bf16.xpose.msra.mxu0 %v1804
      %2135 = vmatprep.subr.bf16.mxu0 0
      %2136 = vmatpush1.bf16.xpose.msra.mxu0 0
      %2137 = vmatprep.subr.bf16.mxu0 0
      %2138 = vmatpush1.bf16.xpose.msra.mxu0 0
      %2139 = vmatprep.subr.bf16.mxu0 0
      %2140 = vmatpush1.bf16.xpose.msra.mxu0 0
      %2141 = vmatprep.subr.bf16.mxu0 0
      %2142 = vmatpush1.bf16.xpose.msra.mxu0 0
      %2143 = vmatprep.subr.bf16.mxu0 0
      %2144 = vmatpush1.bf16.xpose.msra.mxu0 0
      %2145 = vmatprep.subr.bf16.mxu0 0
      %2146 = vmatpush1.bf16.xpose.msra.mxu0 0
      %2147 = vmatprep.subr.bf16.mxu0 0
      %2148 = vmatpush1.bf16.xpose.msra.mxu0 0
      %2149 = vmatprep.subr.bf16.mxu0 0
      %2150 = vmatpush1.bf16.xpose.msra.mxu0 0
      %2151 = vmatprep.mubr.bf16.mxu0 0
      %2152 = vmatmul.mubr.bf16.gmra.mrb[0].mxu0 %v1941
      %v2153 = vpop.f32.mrb[0].mxu0
      %v2154 = vadd.f32 %v2005, %v2153
      %v2155 = vpop.f32.mrb[0].mxu0
      %v2156 = vpop.f32.mrb[0].mxu0
      %v2157 = vadd.f32 %v2005, %v2156
      %v2158 = vpop.f32.mrb[0].mxu0
      %2159 = vmatprep.mubr.bf16.mxu0 0
      %2160 = vmatmul.mubr.bf16.gmra.mrb[0].mxu0 %v1942
      %v2161 = vpop.f32.mrb[0].mxu0
      %v2162 = vadd.f32 %v2005, %v2161
      %v2163 = vpop.f32.mrb[0].mxu0
      %v2164 = vpop.f32.mrb[0].mxu0
      %v2165 = vadd.f32 %v2005, %v2164
      %v2166 = vpop.f32.mrb[0].mxu0
      %2167 = vmatprep.mubr.bf16.mxu0 0
      %2168 = vmatmul.mubr.bf16.gmra.mrb[0].mxu0 %v1943
      %v2169 = vpop.f32.mrb[0].mxu0
      %v2170 = vadd.f32 %v2005, %v2169
      %v2171 = vpop.f32.mrb[0].mxu0
      %v2172 = vpop.f32.mrb[0].mxu0
      %v2173 = vadd.f32 %v2005, %v2172
      %v2174 = vpop.f32.mrb[0].mxu0
      %2175 = vmatprep.mubr.bf16.mxu0 0
      %2176 = vmatmul.mubr.bf16.gmra.mrb[0].mxu0 %v1944
      %v2177 = vpop.f32.mrb[0].mxu0
      %v2178 = vadd.f32 %v2005, %v2177
      %v2179 = vpop.f32.mrb[0].mxu0
      %v2180 = vpop.f32.mrb[0].mxu0
      %v2181 = vadd.f32 %v2005, %v2180
      %v2182 = vpop.f32.mrb[0].mxu0
      %2183 = vmatprep.mubr.bf16.mxu0 0
      %2184 = vmatmul.mubr.bf16.gmra.mrb[0].mxu0 %v1945
      %v2185 = vpop.f32.mrb[0].mxu0
      %v2186 = vadd.f32 %v2005, %v2185
      %v2187 = vpop.f32.mrb[0].mxu0
      %v2188 = vpop.f32.mrb[0].mxu0
      %v2189 = vadd.f32 %v2005, %v2188
      %v2190 = vpop.f32.mrb[0].mxu0
      %2191 = vmatprep.mubr.bf16.mxu0 0
      %2192 = vmatmul.mubr.bf16.gmra.mrb[0].mxu0 %v1946
      %v2193 = vpop.f32.mrb[0].mxu0
      %v2194 = vadd.f32 %v2005, %v2193
      %v2195 = vpop.f32.mrb[0].mxu0
      %v2196 = vpop.f32.mrb[0].mxu0
      %v2197 = vadd.f32 %v2005, %v2196
      %v2198 = vpop.f32.mrb[0].mxu0
      %2199 = vmatprep.mubr.bf16.mxu0 0
      %2200 = vmatmul.mubr.bf16.gmra.mrb[0].mxu0 %v1947
      %v2201 = vpop.f32.mrb[0].mxu0
      %v2202 = vadd.f32 %v2005, %v2201
      %v2203 = vpop.f32.mrb[0].mxu0
      %v2204 = vpop.f32.mrb[0].mxu0
      %v2205 = vadd.f32 %v2005, %v2204
      %v2206 = vpop.f32.mrb[0].mxu0
      %2207 = vmatprep.mubr.bf16.mxu0 0
      %2208 = vmatmul.mubr.bf16.gmra.mrb[0].mxu0 %v1948
      %v2209 = vpop.f32.mrb[0].mxu0
      %v2210 = vadd.f32 %v2005, %v2209
      %v2211 = vpop.f32.mrb[0].mxu0
      %v2212 = vpop.f32.mrb[0].mxu0
      %v2213 = vadd.f32 %v2005, %v2212
      %v2214 = vpop.f32.mrb[0].mxu0
      %2215 = vdwg.mxu0
      %v2216 = vand.u32 2147483647, %v2041
      %v2217 = vand.u32 2147483647, %v2043
      %v2218 = vand.u32 2147483647, %v2154
      %v2219 = vand.u32 2147483647, %v2045
      %v2220 = vand.u32 2147483647, %v2047
      %v2221 = vand.u32 2147483647, %v2157
      %v2222 = vand.u32 2147483647, %v2051
      %v2223 = vand.u32 2147483647, %v2053
      %v2224 = vand.u32 2147483647, %v2162
      %v2225 = vand.u32 2147483647, %v2055
      %v2226 = vand.u32 2147483647, %v2057
      %v2227 = vand.u32 2147483647, %v2165
      %v2228 = vand.u32 2147483647, %v2061
      %v2229 = vand.u32 2147483647, %v2063
      %v2230 = vand.u32 2147483647, %v2170
      %v2231 = vand.u32 2147483647, %v2065
      %v2232 = vand.u32 2147483647, %v2067
      %v2233 = vand.u32 2147483647, %v2173
      %v2234 = vand.u32 2147483647, %v2071
      %v2235 = vand.u32 2147483647, %v2073
      %v2236 = vand.u32 2147483647, %v2178
      %v2237 = vand.u32 2147483647, %v2075
      %v2238 = vand.u32 2147483647, %v2077
      %v2239 = vand.u32 2147483647, %v2181
      %v2240 = vand.u32 2147483647, %v2081
      %v2241 = vand.u32 2147483647, %v2083
      %v2242 = vand.u32 2147483647, %v2186
      %v2243 = vand.u32 2147483647, %v2085
      %v2244 = vand.u32 2147483647, %v2087
      %v2245 = vand.u32 2147483647, %v2189
      %v2246 = vand.u32 2147483647, %v2091
      %v2247 = vand.u32 2147483647, %v2093
      %v2248 = vand.u32 2147483647, %v2194
      %v2249 = vand.u32 2147483647, %v2095
      %v2250 = vand.u32 2147483647, %v2097
      %v2251 = vand.u32 2147483647, %v2197
      %v2252 = vand.u32 2147483647, %v2101
      %v2253 = vand.u32 2147483647, %v2103
      %v2254 = vand.u32 2147483647, %v2202
      %v2255 = vand.u32 2147483647, %v2105
      %v2256 = vand.u32 2147483647, %v2107
      %v2257 = vand.u32 2147483647, %v2205
      %v2258 = vand.u32 2147483647, %v2111
      %v2259 = vand.u32 2147483647, %v2113
      %v2260 = vand.u32 2147483647, %v2210
      %v2261 = vand.u32 2147483647, %v2115
      %v2262 = vand.u32 2147483647, %v2117
      %v2263 = vand.u32 2147483647, %v2213
      %v2264 = vsub.f32 0.0, %v2216
      %v2265 = vsub.f32 0.0, %v2217
      %v2266 = vsub.f32 0.0, %v2218
      %v2267 = vsub.f32 0.0, %v2219
      %v2268 = vsub.f32 0.0, %v2220
      %v2269 = vsub.f32 0.0, %v2221
      %v2270 = vsub.f32 0.0, %v2222
      %v2271 = vsub.f32 0.0, %v2223
      %v2272 = vsub.f32 0.0, %v2224
      %v2273 = vsub.f32 0.0, %v2225
      %v2274 = vsub.f32 0.0, %v2226
      %v2275 = vsub.f32 0.0, %v2227
      %v2276 = vsub.f32 0.0, %v2228
      %v2277 = vsub.f32 0.0, %v2229
      %v2278 = vsub.f32 0.0, %v2230
      %v2279 = vsub.f32 0.0, %v2231
      %v2280 = vsub.f32 0.0, %v2232
      %v2281 = vsub.f32 0.0, %v2233
      %v2282 = vsub.f32 0.0, %v2234
      %v2283 = vsub.f32 0.0, %v2235
      %v2284 = vsub.f32 0.0, %v2236
      %v2285 = vsub.f32 0.0, %v2237
      %v2286 = vsub.f32 0.0, %v2238
      %v2287 = vsub.f32 0.0, %v2239
      %v2288 = vsub.f32 0.0, %v2240
      %v2289 = vsub.f32 0.0, %v2241
      %v2290 = vsub.f32 0.0, %v2242
      %v2291 = vsub.f32 0.0, %v2243
      %v2292 = vsub.f32 0.0, %v2244
      %v2293 = vsub.f32 0.0, %v2245
      %v2294 = vsub.f32 0.0, %v2246
      %v2295 = vsub.f32 0.0, %v2247
      %v2296 = vsub.f32 0.0, %v2248
      %v2297 = vsub.f32 0.0, %v2249
      %v2298 = vsub.f32 0.0, %v2250
      %v2299 = vsub.f32 0.0, %v2251
      %v2300 = vsub.f32 0.0, %v2252
      %v2301 = vsub.f32 0.0, %v2253
      %v2302 = vsub.f32 0.0, %v2254
      %v2303 = vsub.f32 0.0, %v2255
      %v2304 = vsub.f32 0.0, %v2256
      %v2305 = vsub.f32 0.0, %v2257
      %v2306 = vsub.f32 0.0, %v2258
      %v2307 = vsub.f32 0.0, %v2259
      %v2308 = vsub.f32 0.0, %v2260
      %v2309 = vsub.f32 0.0, %v2261
      %v2310 = vsub.f32 0.0, %v2262
      %v2311 = vsub.f32 0.0, %v2263
      %v2312 = vmul.f32 %v2264, 1.442695
      %v2313 = vpow.pop %v2312
      %v2314 = vmul.f32 %v2265, 1.442695
      %v2315 = vpow.pop %v2314
      %v2316 = vmul.f32 %v2266, 1.442695
      %v2317 = vpow.pop %v2316
      %v2318 = vmul.f32 %v2267, 1.442695
      %v2319 = vpow.pop %v2318
      %v2320 = vmul.f32 %v2268, 1.442695
      %v2321 = vpow.pop %v2320
      %v2322 = vmul.f32 %v2269, 1.442695
      %v2323 = vpow.pop %v2322
      %v2324 = vmul.f32 %v2270, 1.442695
      %v2325 = vpow.pop %v2324
      %v2326 = vmul.f32 %v2271, 1.442695
      %v2327 = vpow.pop %v2326
      %v2328 = vmul.f32 %v2272, 1.442695
      %v2329 = vpow.pop %v2328
      %v2330 = vmul.f32 %v2273, 1.442695
      %v2331 = vpow.pop %v2330
      %v2332 = vmul.f32 %v2274, 1.442695
      %v2333 = vpow.pop %v2332
      %v2334 = vmul.f32 %v2275, 1.442695
      %v2335 = vpow.pop %v2334
      %v2336 = vmul.f32 %v2276, 1.442695
      %v2337 = vpow.pop %v2336
      %v2338 = vmul.f32 %v2277, 1.442695
      %v2339 = vpow.pop %v2338
      %v2340 = vmul.f32 %v2278, 1.442695
      %v2341 = vpow.pop %v2340
      %v2342 = vmul.f32 %v2279, 1.442695
      %v2343 = vpow.pop %v2342
      %v2344 = vmul.f32 %v2280, 1.442695
      %v2345 = vpow.pop %v2344
      %v2346 = vmul.f32 %v2281, 1.442695
      %v2347 = vpow.pop %v2346
      %v2348 = vmul.f32 %v2282, 1.442695
      %v2349 = vpow.pop %v2348
      %v2350 = vmul.f32 %v2283, 1.442695
      %v2351 = vpow.pop %v2350
      %v2352 = vmul.f32 %v2284, 1.442695
      %v2353 = vpow.pop %v2352
      %v2354 = vmul.f32 %v2285, 1.442695
      %v2355 = vpow.pop %v2354
      %v2356 = vmul.f32 %v2286, 1.442695
      %v2357 = vpow.pop %v2356
      %v2358 = vmul.f32 %v2287, 1.442695
      %v2359 = vpow.pop %v2358
      %v2360 = vmul.f32 %v2288, 1.442695
      %v2361 = vpow.pop %v2360
      %v2362 = vmul.f32 %v2289, 1.442695
      %v2363 = vpow.pop %v2362
      %v2364 = vmul.f32 %v2290, 1.442695
      %v2365 = vpow.pop %v2364
      %v2366 = vmul.f32 %v2291, 1.442695
      %v2367 = vpow.pop %v2366
      %v2368 = vmul.f32 %v2292, 1.442695
      %v2369 = vpow.pop %v2368
      %v2370 = vmul.f32 %v2293, 1.442695
      %v2371 = vpow.pop %v2370
      %v2372 = vmul.f32 %v2294, 1.442695
      %v2373 = vpow.pop %v2372
      %v2374 = vmul.f32 %v2295, 1.442695
      %v2375 = vpow.pop %v2374
      %v2376 = vmul.f32 %v2296, 1.442695
      %v2377 = vpow.pop %v2376
      %v2378 = vmul.f32 %v2297, 1.442695
      %v2379 = vpow.pop %v2378
      %v2380 = vmul.f32 %v2298, 1.442695
      %v2381 = vpow.pop %v2380
      %v2382 = vmul.f32 %v2299, 1.442695
      %v2383 = vpow.pop %v2382
      %v2384 = vmul.f32 %v2300, 1.442695
      %v2385 = vpow.pop %v2384
      %v2386 = vmul.f32 %v2301, 1.442695
      %v2387 = vpow.pop %v2386
      %v2388 = vmul.f32 %v2302, 1.442695
      %v2389 = vpow.pop %v2388
      %v2390 = vmul.f32 %v2303, 1.442695
      %v2391 = vpow.pop %v2390
      %v2392 = vmul.f32 %v2304, 1.442695
      %v2393 = vpow.pop %v2392
      %v2394 = vmul.f32 %v2305, 1.442695
      %v2395 = vpow.pop %v2394
      %v2396 = vmul.f32 %v2306, 1.442695
      %v2397 = vpow.pop %v2396
      %v2398 = vmul.f32 %v2307, 1.442695
      %v2399 = vpow.pop %v2398
      %v2400 = vmul.f32 %v2308, 1.442695
      %v2401 = vpow.pop %v2400
      %v2402 = vmul.f32 %v2309, 1.442695
      %v2403 = vpow.pop %v2402
      %v2404 = vmul.f32 %v2310, 1.442695
      %v2405 = vpow.pop %v2404
      %v2406 = vmul.f32 %v2311, 1.442695
      %v2407 = vpow.pop %v2406
      %v2408 = vadd.f32 %v2313, 1.0
      %v2409 = vlog2.pop %v2408
      %v2410 = vmul.f32 %v2409, 0.6931472
      %v2411 = vmul.f32 -0.5, %v2313
      %v2412 = vadd.f32 %v2411, 1.0
      %v2413 = vmul.f32 %v2412, %v2313
      %v2414 = vand.u32 2147483647, %v2313
      %vm2415 = vcmp.lt.f32.partialorder %v2414, 0.0004427343
      %v2416 = vsel %vm2415, %v2413, %v2410
      %v2417 = vadd.f32 %v2315, 1.0
      %v2418 = vlog2.pop %v2417
      %v2419 = vmul.f32 %v2418, 0.6931472
      %v2420 = vmul.f32 -0.5, %v2315
      %v2421 = vadd.f32 %v2420, 1.0
      %v2422 = vmul.f32 %v2421, %v2315
      %v2423 = vand.u32 2147483647, %v2315
      %vm2424 = vcmp.lt.f32.partialorder %v2423, 0.0004427343
      %v2425 = vsel %vm2424, %v2422, %v2419
      %v2426 = vadd.f32 %v2317, 1.0
      %v2427 = vlog2.pop %v2426
      %v2428 = vmul.f32 %v2427, 0.6931472
      %v2429 = vmul.f32 -0.5, %v2317
      %v2430 = vadd.f32 %v2429, 1.0
      %v2431 = vmul.f32 %v2430, %v2317
      %v2432 = vand.u32 2147483647, %v2317
      %vm2433 = vcmp.lt.f32.partialorder %v2432, 0.0004427343
      %v2434 = vsel %vm2433, %v2431, %v2428
      %v2435 = vadd.f32 %v2319, 1.0
      %v2436 = vlog2.pop %v2435
      %v2437 = vmul.f32 %v2436, 0.6931472
      %v2438 = vmul.f32 -0.5, %v2319
      %v2439 = vadd.f32 %v2438, 1.0
      %v2440 = vmul.f32 %v2439, %v2319
      %v2441 = vand.u32 2147483647, %v2319
      %vm2442 = vcmp.lt.f32.partialorder %v2441, 0.0004427343
      %v2443 = vsel %vm2442, %v2440, %v2437
      %v2444 = vadd.f32 %v2321, 1.0
      %v2445 = vlog2.pop %v2444
      %v2446 = vmul.f32 %v2445, 0.6931472
      %v2447 = vmul.f32 -0.5, %v2321
      %v2448 = vadd.f32 %v2447, 1.0
      %v2449 = vmul.f32 %v2448, %v2321
      %v2450 = vand.u32 2147483647, %v2321
      %vm2451 = vcmp.lt.f32.partialorder %v2450, 0.0004427343
      %v2452 = vsel %vm2451, %v2449, %v2446
      %v2453 = vadd.f32 %v2323, 1.0
      %v2454 = vlog2.pop %v2453
      %v2455 = vmul.f32 %v2454, 0.6931472
      %v2456 = vmul.f32 -0.5, %v2323
      %v2457 = vadd.f32 %v2456, 1.0
      %v2458 = vmul.f32 %v2457, %v2323
      %v2459 = vand.u32 2147483647, %v2323
      %vm2460 = vcmp.lt.f32.partialorder %v2459, 0.0004427343
      %v2461 = vsel %vm2460, %v2458, %v2455
      %v2462 = vadd.f32 %v2325, 1.0
      %v2463 = vlog2.pop %v2462
      %v2464 = vmul.f32 %v2463, 0.6931472
      %v2465 = vmul.f32 -0.5, %v2325
      %v2466 = vadd.f32 %v2465, 1.0
      %v2467 = vmul.f32 %v2466, %v2325
      %v2468 = vand.u32 2147483647, %v2325
      %vm2469 = vcmp.lt.f32.partialorder %v2468, 0.0004427343
      %v2470 = vsel %vm2469, %v2467, %v2464
      %v2471 = vadd.f32 %v2327, 1.0
      %v2472 = vlog2.pop %v2471
      %v2473 = vmul.f32 %v2472, 0.6931472
      %v2474 = vmul.f32 -0.5, %v2327
      %v2475 = vadd.f32 %v2474, 1.0
      %v2476 = vmul.f32 %v2475, %v2327
      %v2477 = vand.u32 2147483647, %v2327
      %vm2478 = vcmp.lt.f32.partialorder %v2477, 0.0004427343
      %v2479 = vsel %vm2478, %v2476, %v2473
      %v2480 = vadd.f32 %v2329, 1.0
      %v2481 = vlog2.pop %v2480
      %v2482 = vmul.f32 %v2481, 0.6931472
      %v2483 = vmul.f32 -0.5, %v2329
      %v2484 = vadd.f32 %v2483, 1.0
      %v2485 = vmul.f32 %v2484, %v2329
      %v2486 = vand.u32 2147483647, %v2329
      %vm2487 = vcmp.lt.f32.partialorder %v2486, 0.0004427343
      %v2488 = vsel %vm2487, %v2485, %v2482
      %v2489 = vadd.f32 %v2331, 1.0
      %v2490 = vlog2.pop %v2489
      %v2491 = vmul.f32 %v2490, 0.6931472
      %v2492 = vmul.f32 -0.5, %v2331
      %v2493 = vadd.f32 %v2492, 1.0
      %v2494 = vmul.f32 %v2493, %v2331
      %v2495 = vand.u32 2147483647, %v2331
      %vm2496 = vcmp.lt.f32.partialorder %v2495, 0.0004427343
      %v2497 = vsel %vm2496, %v2494, %v2491
      %v2498 = vadd.f32 %v2333, 1.0
      %v2499 = vlog2.pop %v2498
      %v2500 = vmul.f32 %v2499, 0.6931472
      %v2501 = vmul.f32 -0.5, %v2333
      %v2502 = vadd.f32 %v2501, 1.0
      %v2503 = vmul.f32 %v2502, %v2333
      %v2504 = vand.u32 2147483647, %v2333
      %vm2505 = vcmp.lt.f32.partialorder %v2504, 0.0004427343
      %v2506 = vsel %vm2505, %v2503, %v2500
      %v2507 = vadd.f32 %v2335, 1.0
      %v2508 = vlog2.pop %v2507
      %v2509 = vmul.f32 %v2508, 0.6931472
      %v2510 = vmul.f32 -0.5, %v2335
      %v2511 = vadd.f32 %v2510, 1.0
      %v2512 = vmul.f32 %v2511, %v2335
      %v2513 = vand.u32 2147483647, %v2335
      %vm2514 = vcmp.lt.f32.partialorder %v2513, 0.0004427343
      %v2515 = vsel %vm2514, %v2512, %v2509
      %v2516 = vadd.f32 %v2337, 1.0
      %v2517 = vlog2.pop %v2516
      %v2518 = vmul.f32 %v2517, 0.6931472
      %v2519 = vmul.f32 -0.5, %v2337
      %v2520 = vadd.f32 %v2519, 1.0
      %v2521 = vmul.f32 %v2520, %v2337
      %v2522 = vand.u32 2147483647, %v2337
      %vm2523 = vcmp.lt.f32.partialorder %v2522, 0.0004427343
      %v2524 = vsel %vm2523, %v2521, %v2518
      %v2525 = vadd.f32 %v2339, 1.0
      %v2526 = vlog2.pop %v2525
      %v2527 = vmul.f32 %v2526, 0.6931472
      %v2528 = vmul.f32 -0.5, %v2339
      %v2529 = vadd.f32 %v2528, 1.0
      %v2530 = vmul.f32 %v2529, %v2339
      %v2531 = vand.u32 2147483647, %v2339
      %vm2532 = vcmp.lt.f32.partialorder %v2531, 0.0004427343
      %v2533 = vsel %vm2532, %v2530, %v2527
      %v2534 = vadd.f32 %v2341, 1.0
      %v2535 = vlog2.pop %v2534
      %v2536 = vmul.f32 %v2535, 0.6931472
      %v2537 = vmul.f32 -0.5, %v2341
      %v2538 = vadd.f32 %v2537, 1.0
      %v2539 = vmul.f32 %v2538, %v2341
      %v2540 = vand.u32 2147483647, %v2341
      %vm2541 = vcmp.lt.f32.partialorder %v2540, 0.0004427343
      %v2542 = vsel %vm2541, %v2539, %v2536
      %v2543 = vadd.f32 %v2343, 1.0
      %v2544 = vlog2.pop %v2543
      %v2545 = vmul.f32 %v2544, 0.6931472
      %v2546 = vmul.f32 -0.5, %v2343
      %v2547 = vadd.f32 %v2546, 1.0
      %v2548 = vmul.f32 %v2547, %v2343
      %v2549 = vand.u32 2147483647, %v2343
      %vm2550 = vcmp.lt.f32.partialorder %v2549, 0.0004427343
      %v2551 = vsel %vm2550, %v2548, %v2545
      %v2552 = vadd.f32 %v2345, 1.0
      %v2553 = vlog2.pop %v2552
      %v2554 = vmul.f32 %v2553, 0.6931472
      %v2555 = vmul.f32 -0.5, %v2345
      %v2556 = vadd.f32 %v2555, 1.0
      %v2557 = vmul.f32 %v2556, %v2345
      %v2558 = vand.u32 2147483647, %v2345
      %vm2559 = vcmp.lt.f32.partialorder %v2558, 0.0004427343
      %v2560 = vsel %vm2559, %v2557, %v2554
      %v2561 = vadd.f32 %v2347, 1.0
      %v2562 = vlog2.pop %v2561
      %v2563 = vmul.f32 %v2562, 0.6931472
      %v2564 = vmul.f32 -0.5, %v2347
      %v2565 = vadd.f32 %v2564, 1.0
      %v2566 = vmul.f32 %v2565, %v2347
      %v2567 = vand.u32 2147483647, %v2347
      %vm2568 = vcmp.lt.f32.partialorder %v2567, 0.0004427343
      %v2569 = vsel %vm2568, %v2566, %v2563
      %v2570 = vadd.f32 %v2349, 1.0
      %v2571 = vlog2.pop %v2570
      %v2572 = vmul.f32 %v2571, 0.6931472
      %v2573 = vmul.f32 -0.5, %v2349
      %v2574 = vadd.f32 %v2573, 1.0
      %v2575 = vmul.f32 %v2574, %v2349
      %v2576 = vand.u32 2147483647, %v2349
      %vm2577 = vcmp.lt.f32.partialorder %v2576, 0.0004427343
      %v2578 = vsel %vm2577, %v2575, %v2572
      %v2579 = vadd.f32 %v2351, 1.0
      %v2580 = vlog2.pop %v2579
      %v2581 = vmul.f32 %v2580, 0.6931472
      %v2582 = vmul.f32 -0.5, %v2351
      %v2583 = vadd.f32 %v2582, 1.0
      %v2584 = vmul.f32 %v2583, %v2351
      %v2585 = vand.u32 2147483647, %v2351
      %vm2586 = vcmp.lt.f32.partialorder %v2585, 0.0004427343
      %v2587 = vsel %vm2586, %v2584, %v2581
      %v2588 = vadd.f32 %v2353, 1.0
      %v2589 = vlog2.pop %v2588
      %v2590 = vmul.f32 %v2589, 0.6931472
      %v2591 = vmul.f32 -0.5, %v2353
      %v2592 = vadd.f32 %v2591, 1.0
      %v2593 = vmul.f32 %v2592, %v2353
      %v2594 = vand.u32 2147483647, %v2353
      %vm2595 = vcmp.lt.f32.partialorder %v2594, 0.0004427343
      %v2596 = vsel %vm2595, %v2593, %v2590
      %v2597 = vadd.f32 %v2355, 1.0
      %v2598 = vlog2.pop %v2597
      %v2599 = vmul.f32 %v2598, 0.6931472
      %v2600 = vmul.f32 -0.5, %v2355
      %v2601 = vadd.f32 %v2600, 1.0
      %v2602 = vmul.f32 %v2601, %v2355
      %v2603 = vand.u32 2147483647, %v2355
      %vm2604 = vcmp.lt.f32.partialorder %v2603, 0.0004427343
      %v2605 = vsel %vm2604, %v2602, %v2599
      %v2606 = vadd.f32 %v2357, 1.0
      %v2607 = vlog2.pop %v2606
      %v2608 = vmul.f32 %v2607, 0.6931472
      %v2609 = vmul.f32 -0.5, %v2357
      %v2610 = vadd.f32 %v2609, 1.0
      %v2611 = vmul.f32 %v2610, %v2357
      %v2612 = vand.u32 2147483647, %v2357
      %vm2613 = vcmp.lt.f32.partialorder %v2612, 0.0004427343
      %v2614 = vsel %vm2613, %v2611, %v2608
      %v2615 = vadd.f32 %v2359, 1.0
      %v2616 = vlog2.pop %v2615
      %v2617 = vmul.f32 %v2616, 0.6931472
      %v2618 = vmul.f32 -0.5, %v2359
      %v2619 = vadd.f32 %v2618, 1.0
      %v2620 = vmul.f32 %v2619, %v2359
      %v2621 = vand.u32 2147483647, %v2359
      %vm2622 = vcmp.lt.f32.partialorder %v2621, 0.0004427343
      %v2623 = vsel %vm2622, %v2620, %v2617
      %v2624 = vadd.f32 %v2361, 1.0
      %v2625 = vlog2.pop %v2624
      %v2626 = vmul.f32 %v2625, 0.6931472
      %v2627 = vmul.f32 -0.5, %v2361
      %v2628 = vadd.f32 %v2627, 1.0
      %v2629 = vmul.f32 %v2628, %v2361
      %v2630 = vand.u32 2147483647, %v2361
      %vm2631 = vcmp.lt.f32.partialorder %v2630, 0.0004427343
      %v2632 = vsel %vm2631, %v2629, %v2626
      %v2633 = vadd.f32 %v2363, 1.0
      %v2634 = vlog2.pop %v2633
      %v2635 = vmul.f32 %v2634, 0.6931472
      %v2636 = vmul.f32 -0.5, %v2363
      %v2637 = vadd.f32 %v2636, 1.0
      %v2638 = vmul.f32 %v2637, %v2363
      %v2639 = vand.u32 2147483647, %v2363
      %vm2640 = vcmp.lt.f32.partialorder %v2639, 0.0004427343
      %v2641 = vsel %vm2640, %v2638, %v2635
      %v2642 = vadd.f32 %v2365, 1.0
      %v2643 = vlog2.pop %v2642
      %v2644 = vmul.f32 %v2643, 0.6931472
      %v2645 = vmul.f32 -0.5, %v2365
      %v2646 = vadd.f32 %v2645, 1.0
      %v2647 = vmul.f32 %v2646, %v2365
      %v2648 = vand.u32 2147483647, %v2365
      %vm2649 = vcmp.lt.f32.partialorder %v2648, 0.0004427343
      %v2650 = vsel %vm2649, %v2647, %v2644
      %v2651 = vadd.f32 %v2367, 1.0
      %v2652 = vlog2.pop %v2651
      %v2653 = vmul.f32 %v2652, 0.6931472
      %v2654 = vmul.f32 -0.5, %v2367
      %v2655 = vadd.f32 %v2654, 1.0
      %v2656 = vmul.f32 %v2655, %v2367
      %v2657 = vand.u32 2147483647, %v2367
      %vm2658 = vcmp.lt.f32.partialorder %v2657, 0.0004427343
      %v2659 = vsel %vm2658, %v2656, %v2653
      %v2660 = vadd.f32 %v2369, 1.0
      %v2661 = vlog2.pop %v2660
      %v2662 = vmul.f32 %v2661, 0.6931472
      %v2663 = vmul.f32 -0.5, %v2369
      %v2664 = vadd.f32 %v2663, 1.0
      %v2665 = vmul.f32 %v2664, %v2369
      %v2666 = vand.u32 2147483647, %v2369
      %vm2667 = vcmp.lt.f32.partialorder %v2666, 0.0004427343
      %v2668 = vsel %vm2667, %v2665, %v2662
      %v2669 = vadd.f32 %v2371, 1.0
      %v2670 = vlog2.pop %v2669
      %v2671 = vmul.f32 %v2670, 0.6931472
      %v2672 = vmul.f32 -0.5, %v2371
      %v2673 = vadd.f32 %v2672, 1.0
      %v2674 = vmul.f32 %v2673, %v2371
      %v2675 = vand.u32 2147483647, %v2371
      %vm2676 = vcmp.lt.f32.partialorder %v2675, 0.0004427343
      %v2677 = vsel %vm2676, %v2674, %v2671
      %v2678 = vadd.f32 %v2373, 1.0
      %v2679 = vlog2.pop %v2678
      %v2680 = vmul.f32 %v2679, 0.6931472
      %v2681 = vmul.f32 -0.5, %v2373
      %v2682 = vadd.f32 %v2681, 1.0
      %v2683 = vmul.f32 %v2682, %v2373
      %v2684 = vand.u32 2147483647, %v2373
      %vm2685 = vcmp.lt.f32.partialorder %v2684, 0.0004427343
      %v2686 = vsel %vm2685, %v2683, %v2680
      %v2687 = vadd.f32 %v2375, 1.0
      %v2688 = vlog2.pop %v2687
      %v2689 = vmul.f32 %v2688, 0.6931472
      %v2690 = vmul.f32 -0.5, %v2375
      %v2691 = vadd.f32 %v2690, 1.0
      %v2692 = vmul.f32 %v2691, %v2375
      %v2693 = vand.u32 2147483647, %v2375
      %vm2694 = vcmp.lt.f32.partialorder %v2693, 0.0004427343
      %v2695 = vsel %vm2694, %v2692, %v2689
      %v2696 = vadd.f32 %v2377, 1.0
      %v2697 = vlog2.pop %v2696
      %v2698 = vmul.f32 %v2697, 0.6931472
      %v2699 = vmul.f32 -0.5, %v2377
      %v2700 = vadd.f32 %v2699, 1.0
      %v2701 = vmul.f32 %v2700, %v2377
      %v2702 = vand.u32 2147483647, %v2377
      %vm2703 = vcmp.lt.f32.partialorder %v2702, 0.0004427343
      %v2704 = vsel %vm2703, %v2701, %v2698
      %v2705 = vadd.f32 %v2379, 1.0
      %v2706 = vlog2.pop %v2705
      %v2707 = vmul.f32 %v2706, 0.6931472
      %v2708 = vmul.f32 -0.5, %v2379
      %v2709 = vadd.f32 %v2708, 1.0
      %v2710 = vmul.f32 %v2709, %v2379
      %v2711 = vand.u32 2147483647, %v2379
      %vm2712 = vcmp.lt.f32.partialorder %v2711, 0.0004427343
      %v2713 = vsel %vm2712, %v2710, %v2707
      %v2714 = vadd.f32 %v2381, 1.0
      %v2715 = vlog2.pop %v2714
      %v2716 = vmul.f32 %v2715, 0.6931472
      %v2717 = vmul.f32 -0.5, %v2381
      %v2718 = vadd.f32 %v2717, 1.0
      %v2719 = vmul.f32 %v2718, %v2381
      %v2720 = vand.u32 2147483647, %v2381
      %vm2721 = vcmp.lt.f32.partialorder %v2720, 0.0004427343
      %v2722 = vsel %vm2721, %v2719, %v2716
      %v2723 = vadd.f32 %v2383, 1.0
      %v2724 = vlog2.pop %v2723
      %v2725 = vmul.f32 %v2724, 0.6931472
      %v2726 = vmul.f32 -0.5, %v2383
      %v2727 = vadd.f32 %v2726, 1.0
      %v2728 = vmul.f32 %v2727, %v2383
      %v2729 = vand.u32 2147483647, %v2383
      %vm2730 = vcmp.lt.f32.partialorder %v2729, 0.0004427343
      %v2731 = vsel %vm2730, %v2728, %v2725
      %v2732 = vadd.f32 %v2385, 1.0
      %v2733 = vlog2.pop %v2732
      %v2734 = vmul.f32 %v2733, 0.6931472
      %v2735 = vmul.f32 -0.5, %v2385
      %v2736 = vadd.f32 %v2735, 1.0
      %v2737 = vmul.f32 %v2736, %v2385
      %v2738 = vand.u32 2147483647, %v2385
      %vm2739 = vcmp.lt.f32.partialorder %v2738, 0.0004427343
      %v2740 = vsel %vm2739, %v2737, %v2734
      %v2741 = vadd.f32 %v2387, 1.0
      %v2742 = vlog2.pop %v2741
      %v2743 = vmul.f32 %v2742, 0.6931472
      %v2744 = vmul.f32 -0.5, %v2387
      %v2745 = vadd.f32 %v2744, 1.0
      %v2746 = vmul.f32 %v2745, %v2387
      %v2747 = vand.u32 2147483647, %v2387
      %vm2748 = vcmp.lt.f32.partialorder %v2747, 0.0004427343
      %v2749 = vsel %vm2748, %v2746, %v2743
      %v2750 = vadd.f32 %v2389, 1.0
      %v2751 = vlog2.pop %v2750
      %v2752 = vmul.f32 %v2751, 0.6931472
      %v2753 = vmul.f32 -0.5, %v2389
      %v2754 = vadd.f32 %v2753, 1.0
      %v2755 = vmul.f32 %v2754, %v2389
      %v2756 = vand.u32 2147483647, %v2389
      %vm2757 = vcmp.lt.f32.partialorder %v2756, 0.0004427343
      %v2758 = vsel %vm2757, %v2755, %v2752
      %v2759 = vadd.f32 %v2391, 1.0
      %v2760 = vlog2.pop %v2759
      %v2761 = vmul.f32 %v2760, 0.6931472
      %v2762 = vmul.f32 -0.5, %v2391
      %v2763 = vadd.f32 %v2762, 1.0
      %v2764 = vmul.f32 %v2763, %v2391
      %v2765 = vand.u32 2147483647, %v2391
      %vm2766 = vcmp.lt.f32.partialorder %v2765, 0.0004427343
      %v2767 = vsel %vm2766, %v2764, %v2761
      %v2768 = vadd.f32 %v2393, 1.0
      %v2769 = vlog2.pop %v2768
      %v2770 = vmul.f32 %v2769, 0.6931472
      %v2771 = vmul.f32 -0.5, %v2393
      %v2772 = vadd.f32 %v2771, 1.0
      %v2773 = vmul.f32 %v2772, %v2393
      %v2774 = vand.u32 2147483647, %v2393
      %vm2775 = vcmp.lt.f32.partialorder %v2774, 0.0004427343
      %v2776 = vsel %vm2775, %v2773, %v2770
      %v2777 = vadd.f32 %v2395, 1.0
      %v2778 = vlog2.pop %v2777
      %v2779 = vmul.f32 %v2778, 0.6931472
      %v2780 = vmul.f32 -0.5, %v2395
      %v2781 = vadd.f32 %v2780, 1.0
      %v2782 = vmul.f32 %v2781, %v2395
      %v2783 = vand.u32 2147483647, %v2395
      %vm2784 = vcmp.lt.f32.partialorder %v2783, 0.0004427343
      %v2785 = vsel %vm2784, %v2782, %v2779
      %v2786 = vadd.f32 %v2397, 1.0
      %v2787 = vlog2.pop %v2786
      %v2788 = vmul.f32 %v2787, 0.6931472
      %v2789 = vmul.f32 -0.5, %v2397
      %v2790 = vadd.f32 %v2789, 1.0
      %v2791 = vmul.f32 %v2790, %v2397
      %v2792 = vand.u32 2147483647, %v2397
      %vm2793 = vcmp.lt.f32.partialorder %v2792, 0.0004427343
      %v2794 = vsel %vm2793, %v2791, %v2788
      %v2795 = vadd.f32 %v2399, 1.0
      %v2796 = vlog2.pop %v2795
      %v2797 = vmul.f32 %v2796, 0.6931472
      %v2798 = vmul.f32 -0.5, %v2399
      %v2799 = vadd.f32 %v2798, 1.0
      %v2800 = vmul.f32 %v2799, %v2399
      %v2801 = vand.u32 2147483647, %v2399
      %vm2802 = vcmp.lt.f32.partialorder %v2801, 0.0004427343
      %v2803 = vsel %vm2802, %v2800, %v2797
      %v2804 = vadd.f32 %v2401, 1.0
      %v2805 = vlog2.pop %v2804
      %v2806 = vmul.f32 %v2805, 0.6931472
      %v2807 = vmul.f32 -0.5, %v2401
      %v2808 = vadd.f32 %v2807, 1.0
      %v2809 = vmul.f32 %v2808, %v2401
      %v2810 = vand.u32 2147483647, %v2401
      %vm2811 = vcmp.lt.f32.partialorder %v2810, 0.0004427343
      %v2812 = vsel %vm2811, %v2809, %v2806
      %v2813 = vadd.f32 %v2403, 1.0
      %v2814 = vlog2.pop %v2813
      %v2815 = vmul.f32 %v2814, 0.6931472
      %v2816 = vmul.f32 -0.5, %v2403
      %v2817 = vadd.f32 %v2816, 1.0
      %v2818 = vmul.f32 %v2817, %v2403
      %v2819 = vand.u32 2147483647, %v2403
      %vm2820 = vcmp.lt.f32.partialorder %v2819, 0.0004427343
      %v2821 = vsel %vm2820, %v2818, %v2815
      %v2822 = vadd.f32 %v2405, 1.0
      %v2823 = vlog2.pop %v2822
      %v2824 = vmul.f32 %v2823, 0.6931472
      %v2825 = vmul.f32 -0.5, %v2405
      %v2826 = vadd.f32 %v2825, 1.0
      %v2827 = vmul.f32 %v2826, %v2405
      %v2828 = vand.u32 2147483647, %v2405
      %vm2829 = vcmp.lt.f32.partialorder %v2828, 0.0004427343
      %v2830 = vsel %vm2829, %v2827, %v2824
      %v2831 = vadd.f32 %v2407, 1.0
      %v2832 = vlog2.pop %v2831
      %v2833 = vmul.f32 %v2832, 0.6931472
      %v2834 = vmul.f32 -0.5, %v2407
      %v2835 = vadd.f32 %v2834, 1.0
      %v2836 = vmul.f32 %v2835, %v2407
      %v2837 = vand.u32 2147483647, %v2407
      %vm2838 = vcmp.lt.f32.partialorder %v2837, 0.0004427343
      %v2839 = vsel %vm2838, %v2836, %v2833
      %v2840 = vmin.f32 %v2041, 0.0
      %v2841 = vmin.f32 %v2043, 0.0
      %v2842 = vmin.f32 %v2154, 0.0
      %v2843 = vmin.f32 %v2045, 0.0
      %v2844 = vmin.f32 %v2047, 0.0
      %v2845 = vmin.f32 %v2157, 0.0
      %v2846 = vmin.f32 %v2051, 0.0
      %v2847 = vmin.f32 %v2053, 0.0
      %v2848 = vmin.f32 %v2162, 0.0
      %v2849 = vmin.f32 %v2055, 0.0
      %v2850 = vmin.f32 %v2057, 0.0
      %v2851 = vmin.f32 %v2165, 0.0
      %v2852 = vmin.f32 %v2061, 0.0
      %v2853 = vmin.f32 %v2063, 0.0
      %v2854 = vmin.f32 %v2170, 0.0
      %v2855 = vmin.f32 %v2065, 0.0
      %v2856 = vmin.f32 %v2067, 0.0
      %v2857 = vmin.f32 %v2173, 0.0
      %v2858 = vmin.f32 %v2071, 0.0
      %v2859 = vmin.f32 %v2073, 0.0
      %v2860 = vmin.f32 %v2178, 0.0
      %v2861 = vmin.f32 %v2075, 0.0
      %v2862 = vmin.f32 %v2077, 0.0
      %v2863 = vmin.f32 %v2181, 0.0
      %v2864 = vmin.f32 %v2081, 0.0
      %v2865 = vmin.f32 %v2083, 0.0
      %v2866 = vmin.f32 %v2186, 0.0
      %v2867 = vmin.f32 %v2085, 0.0
      %v2868 = vmin.f32 %v2087, 0.0
      %v2869 = vmin.f32 %v2189, 0.0
      %v2870 = vmin.f32 %v2091, 0.0
      %v2871 = vmin.f32 %v2093, 0.0
      %v2872 = vmin.f32 %v2194, 0.0
      %v2873 = vmin.f32 %v2095, 0.0
      %v2874 = vmin.f32 %v2097, 0.0
      %v2875 = vmin.f32 %v2197, 0.0
      %v2876 = vmin.f32 %v2101, 0.0
      %v2877 = vmin.f32 %v2103, 0.0
      %v2878 = vmin.f32 %v2202, 0.0
      %v2879 = vmin.f32 %v2105, 0.0
      %v2880 = vmin.f32 %v2107, 0.0
      %v2881 = vmin.f32 %v2205, 0.0
      %v2882 = vmin.f32 %v2111, 0.0
      %v2883 = vmin.f32 %v2113, 0.0
      %v2884 = vmin.f32 %v2210, 0.0
      %v2885 = vmin.f32 %v2115, 0.0
      %v2886 = vmin.f32 %v2117, 0.0
      %v2887 = vmin.f32 %v2213, 0.0
      %v2888 = vsub.f32 %v2840, %v2416
      %v2889 = vsub.f32 %v2841, %v2425
      %v2890 = vsub.f32 %v2842, %v2434
      %v2891 = vsub.f32 %v2843, %v2443
      %v2892 = vsub.f32 %v2844, %v2452
      %v2893 = vsub.f32 %v2845, %v2461
      %v2894 = vsub.f32 %v2846, %v2470
      %v2895 = vsub.f32 %v2847, %v2479
      %v2896 = vsub.f32 %v2848, %v2488
      %v2897 = vsub.f32 %v2849, %v2497
      %v2898 = vsub.f32 %v2850, %v2506
      %v2899 = vsub.f32 %v2851, %v2515
      %v2900 = vsub.f32 %v2852, %v2524
      %v2901 = vsub.f32 %v2853, %v2533
      %v2902 = vsub.f32 %v2854, %v2542
      %v2903 = vsub.f32 %v2855, %v2551
      %v2904 = vsub.f32 %v2856, %v2560
      %v2905 = vsub.f32 %v2857, %v2569
      %v2906 = vsub.f32 %v2858, %v2578
      %v2907 = vsub.f32 %v2859, %v2587
      %v2908 = vsub.f32 %v2860, %v2596
      %v2909 = vsub.f32 %v2861, %v2605
      %v2910 = vsub.f32 %v2862, %v2614
      %v2911 = vsub.f32 %v2863, %v2623
      %v2912 = vsub.f32 %v2864, %v2632
      %v2913 = vsub.f32 %v2865, %v2641
      %v2914 = vsub.f32 %v2866, %v2650
      %v2915 = vsub.f32 %v2867, %v2659
      %v2916 = vsub.f32 %v2868, %v2668
      %v2917 = vsub.f32 %v2869, %v2677
      %v2918 = vsub.f32 %v2870, %v2686
      %v2919 = vsub.f32 %v2871, %v2695
      %v2920 = vsub.f32 %v2872, %v2704
      %v2921 = vsub.f32 %v2873, %v2713
      %v2922 = vsub.f32 %v2874, %v2722
      %v2923 = vsub.f32 %v2875, %v2731
      %v2924 = vsub.f32 %v2876, %v2740
      %v2925 = vsub.f32 %v2877, %v2749
      %v2926 = vsub.f32 %v2878, %v2758
      %v2927 = vsub.f32 %v2879, %v2767
      %v2928 = vsub.f32 %v2880, %v2776
      %v2929 = vsub.f32 %v2881, %v2785
      %v2930 = vsub.f32 %v2882, %v2794
      %v2931 = vsub.f32 %v2883, %v2803
      %v2932 = vsub.f32 %v2884, %v2812
      %v2933 = vsub.f32 %v2885, %v2821
      %v2934 = vsub.f32 %v2886, %v2830
      %v2935 = vsub.f32 %v2887, %v2839
      %v2936 = vmul.f32 %v1477, %v2888
      %v2937 = vmul.f32 %v1478, %v2889
      %v2938 = vmul.f32 %v1479, %v2890
      %v2939 = vmul.f32 %v1480, %v2891
      %v2940 = vmul.f32 %v1481, %v2892
      %v2941 = vmul.f32 %v1482, %v2893
      %v2942 = vmul.f32 %v1483, %v2894
      %v2943 = vmul.f32 %v1484, %v2895
      %v2944 = vmul.f32 %v1485, %v2896
      %v2945 = vmul.f32 %v1486, %v2897
      %v2946 = vmul.f32 %v1487, %v2898
      %v2947 = vmul.f32 %v1488, %v2899
      %v2948 = vmul.f32 %v1489, %v2900
      %v2949 = vmul.f32 %v1490, %v2901
      %v2950 = vmul.f32 %v1491, %v2902
      %v2951 = vmul.f32 %v1492, %v2903
      %v2952 = vmul.f32 %v1493, %v2904
      %v2953 = vmul.f32 %v1494, %v2905
      %v2954 = vmul.f32 %v1495, %v2906
      %v2955 = vmul.f32 %v1496, %v2907
      %v2956 = vmul.f32 %v1497, %v2908
      %v2957 = vmul.f32 %v1498, %v2909
      %v2958 = vmul.f32 %v1499, %v2910
      %v2959 = vmul.f32 %v1500, %v2911
      %v2960 = vmul.f32 %v1501, %v2912
      %v2961 = vmul.f32 %v1502, %v2913
      %v2962 = vmul.f32 %v1503, %v2914
      %v2963 = vmul.f32 %v1504, %v2915
      %v2964 = vmul.f32 %v1505, %v2916
      %v2965 = vmul.f32 %v1506, %v2917
      %v2966 = vmul.f32 %v1507, %v2918
      %v2967 = vmul.f32 %v1508, %v2919
      %v2968 = vmul.f32 %v1509, %v2920
      %v2969 = vmul.f32 %v1510, %v2921
      %v2970 = vmul.f32 %v1511, %v2922
      %v2971 = vmul.f32 %v1512, %v2923
      %v2972 = vmul.f32 %v1513, %v2924
      %v2973 = vmul.f32 %v1514, %v2925
      %v2974 = vmul.f32 %v1515, %v2926
      %v2975 = vmul.f32 %v1516, %v2927
      %v2976 = vmul.f32 %v1517, %v2928
      %v2977 = vmul.f32 %v1518, %v2929
      %v2978 = vmul.f32 %v1519, %v2930
      %v2979 = vmul.f32 %v1520, %v2931
      %v2980 = vmul.f32 %v1521, %v2932
      %v2981 = vmul.f32 %v1522, %v2933
      %v2982 = vmul.f32 %v1523, %v2934
      %v2983 = vmul.f32 %v1524, %v2935
      %v2984 = vmax.f32 %v2041, 0.0
      %v2985 = vmax.f32 %v2043, 0.0
      %v2986 = vmax.f32 %v2154, 0.0
      %v2987 = vmax.f32 %v2045, 0.0
      %v2988 = vmax.f32 %v2047, 0.0
      %v2989 = vmax.f32 %v2157, 0.0
      %v2990 = vmax.f32 %v2051, 0.0
      %v2991 = vmax.f32 %v2053, 0.0
      %v2992 = vmax.f32 %v2162, 0.0
      %v2993 = vmax.f32 %v2055, 0.0
      %v2994 = vmax.f32 %v2057, 0.0
      %v2995 = vmax.f32 %v2165, 0.0
      %v2996 = vmax.f32 %v2061, 0.0
      %v2997 = vmax.f32 %v2063, 0.0
      %v2998 = vmax.f32 %v2170, 0.0
      %v2999 = vmax.f32 %v2065, 0.0
      %v3000 = vmax.f32 %v2067, 0.0
      %v3001 = vmax.f32 %v2173, 0.0
      %v3002 = vmax.f32 %v2071, 0.0
      %v3003 = vmax.f32 %v2073, 0.0
      %v3004 = vmax.f32 %v2178, 0.0
      %v3005 = vmax.f32 %v2075, 0.0
      %v3006 = vmax.f32 %v2077, 0.0
      %v3007 = vmax.f32 %v2181, 0.0
      %v3008 = vmax.f32 %v2081, 0.0
      %v3009 = vmax.f32 %v2083, 0.0
      %v3010 = vmax.f32 %v2186, 0.0
      %v3011 = vmax.f32 %v2085, 0.0
      %v3012 = vmax.f32 %v2087, 0.0
      %v3013 = vmax.f32 %v2189, 0.0
      %v3014 = vmax.f32 %v2091, 0.0
      %v3015 = vmax.f32 %v2093, 0.0
      %v3016 = vmax.f32 %v2194, 0.0
      %v3017 = vmax.f32 %v2095, 0.0
      %v3018 = vmax.f32 %v2097, 0.0
      %v3019 = vmax.f32 %v2197, 0.0
      %v3020 = vmax.f32 %v2101, 0.0
      %v3021 = vmax.f32 %v2103, 0.0
      %v3022 = vmax.f32 %v2202, 0.0
      %v3023 = vmax.f32 %v2105, 0.0
      %v3024 = vmax.f32 %v2107, 0.0
      %v3025 = vmax.f32 %v2205, 0.0
      %v3026 = vmax.f32 %v2111, 0.0
      %v3027 = vmax.f32 %v2113, 0.0
      %v3028 = vmax.f32 %v2210, 0.0
      %v3029 = vmax.f32 %v2115, 0.0
      %v3030 = vmax.f32 %v2117, 0.0
      %v3031 = vmax.f32 %v2213, 0.0
      %v3032 = vsub.f32 0.0, %v2984
      %v3033 = vsub.f32 0.0, %v2985
      %v3034 = vsub.f32 0.0, %v2986
      %v3035 = vsub.f32 0.0, %v2987
      %v3036 = vsub.f32 0.0, %v2988
      %v3037 = vsub.f32 0.0, %v2989
      %v3038 = vsub.f32 0.0, %v2990
      %v3039 = vsub.f32 0.0, %v2991
      %v3040 = vsub.f32 0.0, %v2992
      %v3041 = vsub.f32 0.0, %v2993
      %v3042 = vsub.f32 0.0, %v2994
      %v3043 = vsub.f32 0.0, %v2995
      %v3044 = vsub.f32 0.0, %v2996
      %v3045 = vsub.f32 0.0, %v2997
      %v3046 = vsub.f32 0.0, %v2998
      %v3047 = vsub.f32 0.0, %v2999
      %v3048 = vsub.f32 0.0, %v3000
      %v3049 = vsub.f32 0.0, %v3001
      %v3050 = vsub.f32 0.0, %v3002
      %v3051 = vsub.f32 0.0, %v3003
      %v3052 = vsub.f32 0.0, %v3004
      %v3053 = vsub.f32 0.0, %v3005
      %v3054 = vsub.f32 0.0, %v3006
      %v3055 = vsub.f32 0.0, %v3007
      %v3056 = vsub.f32 0.0, %v3008
      %v3057 = vsub.f32 0.0, %v3009
      %v3058 = vsub.f32 0.0, %v3010
      %v3059 = vsub.f32 0.0, %v3011
      %v3060 = vsub.f32 0.0, %v3012
      %v3061 = vsub.f32 0.0, %v3013
      %v3062 = vsub.f32 0.0, %v3014
      %v3063 = vsub.f32 0.0, %v3015
      %v3064 = vsub.f32 0.0, %v3016
      %v3065 = vsub.f32 0.0, %v3017
      %v3066 = vsub.f32 0.0, %v3018
      %v3067 = vsub.f32 0.0, %v3019
      %v3068 = vsub.f32 0.0, %v3020
      %v3069 = vsub.f32 0.0, %v3021
      %v3070 = vsub.f32 0.0, %v3022
      %v3071 = vsub.f32 0.0, %v3023
      %v3072 = vsub.f32 0.0, %v3024
      %v3073 = vsub.f32 0.0, %v3025
      %v3074 = vsub.f32 0.0, %v3026
      %v3075 = vsub.f32 0.0, %v3027
      %v3076 = vsub.f32 0.0, %v3028
      %v3077 = vsub.f32 0.0, %v3029
      %v3078 = vsub.f32 0.0, %v3030
      %v3079 = vsub.f32 0.0, %v3031
      %v3080 = vsub.f32 %v3032, %v2416
      %v3081 = vsub.f32 %v3033, %v2425
      %v3082 = vsub.f32 %v3034, %v2434
      %v3083 = vsub.f32 %v3035, %v2443
      %v3084 = vsub.f32 %v3036, %v2452
      %v3085 = vsub.f32 %v3037, %v2461
      %v3086 = vsub.f32 %v3038, %v2470
      %v3087 = vsub.f32 %v3039, %v2479
      %v3088 = vsub.f32 %v3040, %v2488
      %v3089 = vsub.f32 %v3041, %v2497
      %v3090 = vsub.f32 %v3042, %v2506
      %v3091 = vsub.f32 %v3043, %v2515
      %v3092 = vsub.f32 %v3044, %v2524
      %v3093 = vsub.f32 %v3045, %v2533
      %v3094 = vsub.f32 %v3046, %v2542
      %v3095 = vsub.f32 %v3047, %v2551
      %v3096 = vsub.f32 %v3048, %v2560
      %v3097 = vsub.f32 %v3049, %v2569
      %v3098 = vsub.f32 %v3050, %v2578
      %v3099 = vsub.f32 %v3051, %v2587
      %v3100 = vsub.f32 %v3052, %v2596
      %v3101 = vsub.f32 %v3053, %v2605
      %v3102 = vsub.f32 %v3054, %v2614
      %v3103 = vsub.f32 %v3055, %v2623
      %v3104 = vsub.f32 %v3056, %v2632
      %v3105 = vsub.f32 %v3057, %v2641
      %v3106 = vsub.f32 %v3058, %v2650
      %v3107 = vsub.f32 %v3059, %v2659
      %v3108 = vsub.f32 %v3060, %v2668
      %v3109 = vsub.f32 %v3061, %v2677
      %v3110 = vsub.f32 %v3062, %v2686
      %v3111 = vsub.f32 %v3063, %v2695
      %v3112 = vsub.f32 %v3064, %v2704
      %v3113 = vsub.f32 %v3065, %v2713
      %v3114 = vsub.f32 %v3066, %v2722
      %v3115 = vsub.f32 %v3067, %v2731
      %v3116 = vsub.f32 %v3068, %v2740
      %v3117 = vsub.f32 %v3069, %v2749
      %v3118 = vsub.f32 %v3070, %v2758
      %v3119 = vsub.f32 %v3071, %v2767
      %v3120 = vsub.f32 %v3072, %v2776
      %v3121 = vsub.f32 %v3073, %v2785
      %v3122 = vsub.f32 %v3074, %v2794
      %v3123 = vsub.f32 %v3075, %v2803
      %v3124 = vsub.f32 %v3076, %v2812
      %v3125 = vsub.f32 %v3077, %v2821
      %v3126 = vsub.f32 %v3078, %v2830
      %v3127 = vsub.f32 %v3079, %v2839
      %v3128 = vmul.f32 %v1573, %v3080
      %v3129 = vmul.f32 %v1574, %v3081
      %v3130 = vmul.f32 %v1575, %v3082
      %v3131 = vmul.f32 %v1576, %v3083
      %v3132 = vmul.f32 %v1577, %v3084
      %v3133 = vmul.f32 %v1578, %v3085
      %v3134 = vmul.f32 %v1579, %v3086
      %v3135 = vmul.f32 %v1580, %v3087
      %v3136 = vmul.f32 %v1581, %v3088
      %v3137 = vmul.f32 %v1582, %v3089
      %v3138 = vmul.f32 %v1583, %v3090
      %v3139 = vmul.f32 %v1584, %v3091
      %v3140 = vmul.f32 %v1585, %v3092
      %v3141 = vmul.f32 %v1586, %v3093
      %v3142 = vmul.f32 %v1587, %v3094
      %v3143 = vmul.f32 %v1588, %v3095
      %v3144 = vmul.f32 %v1589, %v3096
      %v3145 = vmul.f32 %v1590, %v3097
      %v3146 = vmul.f32 %v1591, %v3098
      %v3147 = vmul.f32 %v1592, %v3099
      %v3148 = vmul.f32 %v1593, %v3100
      %v3149 = vmul.f32 %v1594, %v3101
      %v3150 = vmul.f32 %v1595, %v3102
      %v3151 = vmul.f32 %v1596, %v3103
      %v3152 = vmul.f32 %v1597, %v3104
      %v3153 = vmul.f32 %v1598, %v3105
      %v3154 = vmul.f32 %v1599, %v3106
      %v3155 = vmul.f32 %v1600, %v3107
      %v3156 = vmul.f32 %v1601, %v3108
      %v3157 = vmul.f32 %v1602, %v3109
      %v3158 = vmul.f32 %v1603, %v3110
      %v3159 = vmul.f32 %v1604, %v3111
      %v3160 = vmul.f32 %v1605, %v3112
      %v3161 = vmul.f32 %v1606, %v3113
      %v3162 = vmul.f32 %v1607, %v3114
      %v3163 = vmul.f32 %v1608, %v3115
      %v3164 = vmul.f32 %v1609, %v3116
      %v3165 = vmul.f32 %v1610, %v3117
      %v3166 = vmul.f32 %v1611, %v3118
      %v3167 = vmul.f32 %v1612, %v3119
      %v3168 = vmul.f32 %v1613, %v3120
      %v3169 = vmul.f32 %v1614, %v3121
      %v3170 = vmul.f32 %v1615, %v3122
      %v3171 = vmul.f32 %v1616, %v3123
      %v3172 = vmul.f32 %v1617, %v3124
      %v3173 = vmul.f32 %v1618, %v3125
      %v3174 = vmul.f32 %v1619, %v3126
      %v3175 = vmul.f32 %v1620, %v3127
      %v3176 = vadd.f32 %v2936, %v3128
      %v3177 = vadd.f32 %v2937, %v3129
      %v3178 = vadd.f32 %v2938, %v3130
      %v3179 = vadd.f32 %v2939, %v3131
      %v3180 = vadd.f32 %v2940, %v3132
      %v3181 = vadd.f32 %v2941, %v3133
      %v3182 = vadd.f32 %v2942, %v3134
      %v3183 = vadd.f32 %v2943, %v3135
      %v3184 = vadd.f32 %v2944, %v3136
      %v3185 = vadd.f32 %v2945, %v3137
      %v3186 = vadd.f32 %v2946, %v3138
      %v3187 = vadd.f32 %v2947, %v3139
      %v3188 = vadd.f32 %v2948, %v3140
      %v3189 = vadd.f32 %v2949, %v3141
      %v3190 = vadd.f32 %v2950, %v3142
      %v3191 = vadd.f32 %v2951, %v3143
      %v3192 = vadd.f32 %v2952, %v3144
      %v3193 = vadd.f32 %v2953, %v3145
      %v3194 = vadd.f32 %v2954, %v3146
      %v3195 = vadd.f32 %v2955, %v3147
      %v3196 = vadd.f32 %v2956, %v3148
      %v3197 = vadd.f32 %v2957, %v3149
      %v3198 = vadd.f32 %v2958, %v3150
      %v3199 = vadd.f32 %v2959, %v3151
      %v3200 = vadd.f32 %v2960, %v3152
      %v3201 = vadd.f32 %v2961, %v3153
      %v3202 = vadd.f32 %v2962, %v3154
      %v3203 = vadd.f32 %v2963, %v3155
      %v3204 = vadd.f32 %v2964, %v3156
      %v3205 = vadd.f32 %v2965, %v3157
      %v3206 = vadd.f32 %v2966, %v3158
      %v3207 = vadd.f32 %v2967, %v3159
      %v3208 = vadd.f32 %v2968, %v3160
      %v3209 = vadd.f32 %v2969, %v3161
      %v3210 = vadd.f32 %v2970, %v3162
      %v3211 = vadd.f32 %v2971, %v3163
      %v3212 = vadd.f32 %v2972, %v3164
      %v3213 = vadd.f32 %v2973, %v3165
      %v3214 = vadd.f32 %v2974, %v3166
      %v3215 = vadd.f32 %v2975, %v3167
      %v3216 = vadd.f32 %v2976, %v3168
      %v3217 = vadd.f32 %v2977, %v3169
      %v3218 = vadd.f32 %v2978, %v3170
      %v3219 = vadd.f32 %v2979, %v3171
      %v3220 = vadd.f32 %v2980, %v3172
      %v3221 = vadd.f32 %v2981, %v3173
      %v3222 = vadd.f32 %v2982, %v3174
      %v3223 = vadd.f32 %v2983, %v3175
      %v3224 = vadd.f32 %v3176, %v3177
      %v3225 = vadd.f32 %v3224, %v3178
      %v3226 = vadd.f32 %v3225, %v3179
      %v3227 = vadd.f32 %v3226, %v3180
      %v3228 = vadd.f32 %v3227, %v3181
      %v3229 = vadd.f32 %v3228, %v3182
      %v3230 = vadd.f32 %v3229, %v3183
      %v3231 = vadd.f32 %v3230, %v3184
      %v3232 = vadd.f32 %v3231, %v3185
      %v3233 = vadd.f32 %v3232, %v3186
      %v3234 = vadd.f32 %v3233, %v3187
      %v3235 = vadd.f32 %v3234, %v3188
      %v3236 = vadd.f32 %v3235, %v3189
      %v3237 = vadd.f32 %v3236, %v3190
      %v3238 = vadd.f32 %v3237, %v3191
      %v3239 = vadd.f32 %v3238, %v3192
      %v3240 = vadd.f32 %v3239, %v3193
      %v3241 = vadd.f32 %v3240, %v3194
      %v3242 = vadd.f32 %v3241, %v3195
      %v3243 = vadd.f32 %v3242, %v3196
      %v3244 = vadd.f32 %v3243, %v3197
      %v3245 = vadd.f32 %v3244, %v3198
      %v3246 = vadd.f32 %v3245, %v3199
      %v3247 = vadd.f32 %v3246, %v3200
      %v3248 = vadd.f32 %v3247, %v3201
      %v3249 = vadd.f32 %v3248, %v3202
      %v3250 = vadd.f32 %v3249, %v3203
      %v3251 = vadd.f32 %v3250, %v3204
      %v3252 = vadd.f32 %v3251, %v3205
      %v3253 = vadd.f32 %v3252, %v3206
      %v3254 = vadd.f32 %v3253, %v3207
      %v3255 = vadd.f32 %v3254, %v3208
      %v3256 = vadd.f32 %v3255, %v3209
      %v3257 = vadd.f32 %v3256, %v3210
      %v3258 = vadd.f32 %v3257, %v3211
      %v3259 = vadd.f32 %v3258, %v3212
      %v3260 = vadd.f32 %v3259, %v3213
      %v3261 = vadd.f32 %v3260, %v3214
      %v3262 = vadd.f32 %v3261, %v3215
      %v3263 = vadd.f32 %v3262, %v3216
      %v3264 = vadd.f32 %v3263, %v3217
      %v3265 = vadd.f32 %v3264, %v3218
      %v3266 = vadd.f32 %v3265, %v3219
      %v3267 = vadd.f32 %v3266, %v3220
      %v3268 = vadd.f32 %v3267, %v3221
      %v3269 = vadd.f32 %v3268, %v3222
      %v3270 = vadd.f32 %v3269, %v3223
      %3271 = vadd.xlane.f32.xlu0 %v3270
      %v3272 = vpop.xlane.xlu0 %3271
      %v3273 = vrot.slane %v3272, 4
      %v3274 = vadd.f32 %v3272, %v3273
      %v3275 = vrot.slane %v3274, 2
      %v3276 = vadd.f32 %v3274, %v3275
      %v3277 = vrot.slane %v3276, 1
      %v3278 = vadd.f32 %v3276, %v3277
      %s3279 = vtos %v3278
      %v3280 = vsel %vm1093, %v2041, -1e+30
      %v3281 = vsel %vm1094, %v2043, -1e+30
      %v3282 = vsel %vm1095, %v2154, -1e+30
      %v3283 = vsel %vm1096, %v2045, -1e+30
      %v3284 = vsel %vm1097, %v2047, -1e+30
      %v3285 = vsel %vm1098, %v2157, -1e+30
      %v3286 = vsel %vm1099, %v2051, -1e+30
      %v3287 = vsel %vm1100, %v2053, -1e+30
      %v3288 = vsel %vm1101, %v2162, -1e+30
      %v3289 = vsel %vm1102, %v2055, -1e+30
      %v3290 = vsel %vm1103, %v2057, -1e+30
      %v3291 = vsel %vm1104, %v2165, -1e+30
      %v3292 = vsel %vm1105, %v2061, -1e+30
      %v3293 = vsel %vm1106, %v2063, -1e+30
      %v3294 = vsel %vm1107, %v2170, -1e+30
      %v3295 = vsel %vm1108, %v2065, -1e+30
      %v3296 = vsel %vm1109, %v2067, -1e+30
      %v3297 = vsel %vm1110, %v2173, -1e+30
      %v3298 = vsel %vm1111, %v2071, -1e+30
      %v3299 = vsel %vm1112, %v2073, -1e+30
      %v3300 = vsel %vm1113, %v2178, -1e+30
      %v3301 = vsel %vm1114, %v2075, -1e+30
      %v3302 = vsel %vm1115, %v2077, -1e+30
      %v3303 = vsel %vm1116, %v2181, -1e+30
      %v3304 = vsel %vm1117, %v2081, -1e+30
      %v3305 = vsel %vm1118, %v2083, -1e+30
      %v3306 = vsel %vm1119, %v2186, -1e+30
      %v3307 = vsel %vm1120, %v2085, -1e+30
      %v3308 = vsel %vm1121, %v2087, -1e+30
      %v3309 = vsel %vm1122, %v2189, -1e+30
      %v3310 = vsel %vm1123, %v2091, -1e+30
      %v3311 = vsel %vm1124, %v2093, -1e+30
      %v3312 = vsel %vm1125, %v2194, -1e+30
      %v3313 = vsel %vm1126, %v2095, -1e+30
      %v3314 = vsel %vm1127, %v2097, -1e+30
      %v3315 = vsel %vm1128, %v2197, -1e+30
      %v3316 = vsel %vm1129, %v2101, -1e+30
      %v3317 = vsel %vm1130, %v2103, -1e+30
      %v3318 = vsel %vm1131, %v2202, -1e+30
      %v3319 = vsel %vm1132, %v2105, -1e+30
      %v3320 = vsel %vm1133, %v2107, -1e+30
      %v3321 = vsel %vm1134, %v2205, -1e+30
      %v3322 = vsel %vm1135, %v2111, -1e+30
      %v3323 = vsel %vm1136, %v2113, -1e+30
      %v3324 = vsel %vm1137, %v2210, -1e+30
      %v3325 = vsel %vm1138, %v2115, -1e+30
      %v3326 = vsel %vm1139, %v2117, -1e+30
      %v3327 = vsel %vm1140, %v2213, -1e+30
      %v3328 = vmax.f32 %v3280, %v3281
      %v3329 = vmax.f32 %v3328, %v3282
      %3330 = vmax.xlane.f32.xlu0 %v3329
      %v3331 = vpop.xlane.xlu0 %3330
      %v3332 = vmax.f32 %v3283, %v3284
      %v3333 = vmax.f32 %v3332, %v3285
      %3334 = vmax.xlane.f32.xlu0 %v3333
      %v3335 = vpop.xlane.xlu0 %3334
      %v3336 = vmax.f32 %v3286, %v3287
      %v3337 = vmax.f32 %v3336, %v3288
      %3338 = vmax.xlane.f32.xlu0 %v3337
      %v3339 = vpop.xlane.xlu0 %3338
      %v3340 = vmax.f32 %v3289, %v3290
      %v3341 = vmax.f32 %v3340, %v3291
      %3342 = vmax.xlane.f32.xlu0 %v3341
      %v3343 = vpop.xlane.xlu0 %3342
      %v3344 = vmax.f32 %v3292, %v3293
      %v3345 = vmax.f32 %v3344, %v3294
      %3346 = vmax.xlane.f32.xlu0 %v3345
      %v3347 = vpop.xlane.xlu0 %3346
      %v3348 = vmax.f32 %v3295, %v3296
      %v3349 = vmax.f32 %v3348, %v3297
      %3350 = vmax.xlane.f32.xlu0 %v3349
      %v3351 = vpop.xlane.xlu0 %3350
      %v3352 = vmax.f32 %v3298, %v3299
      %v3353 = vmax.f32 %v3352, %v3300
      %3354 = vmax.xlane.f32.xlu0 %v3353
      %v3355 = vpop.xlane.xlu0 %3354
      %v3356 = vmax.f32 %v3301, %v3302
      %v3357 = vmax.f32 %v3356, %v3303
      %3358 = vmax.xlane.f32.xlu0 %v3357
      %v3359 = vpop.xlane.xlu0 %3358
      %v3360 = vmax.f32 %v3304, %v3305
      %v3361 = vmax.f32 %v3360, %v3306
      %3362 = vmax.xlane.f32.xlu0 %v3361
      %v3363 = vpop.xlane.xlu0 %3362
      %v3364 = vmax.f32 %v3307, %v3308
      %v3365 = vmax.f32 %v3364, %v3309
      %3366 = vmax.xlane.f32.xlu0 %v3365
      %v3367 = vpop.xlane.xlu0 %3366
      %v3368 = vmax.f32 %v3310, %v3311
      %v3369 = vmax.f32 %v3368, %v3312
      %3370 = vmax.xlane.f32.xlu0 %v3369
      %v3371 = vpop.xlane.xlu0 %3370
      %v3372 = vmax.f32 %v3313, %v3314
      %v3373 = vmax.f32 %v3372, %v3315
      %3374 = vmax.xlane.f32.xlu0 %v3373
      %v3375 = vpop.xlane.xlu0 %3374
      %v3376 = vmax.f32 %v3316, %v3317
      %v3377 = vmax.f32 %v3376, %v3318
      %3378 = vmax.xlane.f32.xlu0 %v3377
      %v3379 = vpop.xlane.xlu0 %3378
      %v3380 = vmax.f32 %v3319, %v3320
      %v3381 = vmax.f32 %v3380, %v3321
      %3382 = vmax.xlane.f32.xlu0 %v3381
      %v3383 = vpop.xlane.xlu0 %3382
      %v3384 = vmax.f32 %v3322, %v3323
      %v3385 = vmax.f32 %v3384, %v3324
      %3386 = vmax.xlane.f32.xlu0 %v3385
      %v3387 = vpop.xlane.xlu0 %3386
      %v3388 = vmax.f32 %v3325, %v3326
      %v3389 = vmax.f32 %v3388, %v3327
      %3390 = vmax.xlane.f32.xlu0 %v3389
      %v3391 = vpop.xlane.xlu0 %3390
      %v3392 = vsel %vm1381, %v2041, -1e+30
      %v3393 = vsel %vm1382, %v2043, -1e+30
      %v3394 = vsel %vm1383, %v2154, -1e+30
      %v3395 = vsel %vm1384, %v2045, -1e+30
      %v3396 = vsel %vm1385, %v2047, -1e+30
      %v3397 = vsel %vm1386, %v2157, -1e+30
      %v3398 = vsel %vm1387, %v2051, -1e+30
      %v3399 = vsel %vm1388, %v2053, -1e+30
      %v3400 = vsel %vm1389, %v2162, -1e+30
      %v3401 = vsel %vm1390, %v2055, -1e+30
      %v3402 = vsel %vm1391, %v2057, -1e+30
      %v3403 = vsel %vm1392, %v2165, -1e+30
      %v3404 = vsel %vm1393, %v2061, -1e+30
      %v3405 = vsel %vm1394, %v2063, -1e+30
      %v3406 = vsel %vm1395, %v2170, -1e+30
      %v3407 = vsel %vm1396, %v2065, -1e+30
      %v3408 = vsel %vm1397, %v2067, -1e+30
      %v3409 = vsel %vm1398, %v2173, -1e+30
      %v3410 = vsel %vm1399, %v2071, -1e+30
      %v3411 = vsel %vm1400, %v2073, -1e+30
      %v3412 = vsel %vm1401, %v2178, -1e+30
      %v3413 = vsel %vm1402, %v2075, -1e+30
      %v3414 = vsel %vm1403, %v2077, -1e+30
      %v3415 = vsel %vm1404, %v2181, -1e+30
      %v3416 = vsel %vm1405, %v2081, -1e+30
      %v3417 = vsel %vm1406, %v2083, -1e+30
      %v3418 = vsel %vm1407, %v2186, -1e+30
      %v3419 = vsel %vm1408, %v2085, -1e+30
      %v3420 = vsel %vm1409, %v2087, -1e+30
      %v3421 = vsel %vm1410, %v2189, -1e+30
      %v3422 = vsel %vm1411, %v2091, -1e+30
      %v3423 = vsel %vm1412, %v2093, -1e+30
      %v3424 = vsel %vm1413, %v2194, -1e+30
      %v3425 = vsel %vm1414, %v2095, -1e+30
      %v3426 = vsel %vm1415, %v2097, -1e+30
      %v3427 = vsel %vm1416, %v2197, -1e+30
      %v3428 = vsel %vm1417, %v2101, -1e+30
      %v3429 = vsel %vm1418, %v2103, -1e+30
      %v3430 = vsel %vm1419, %v2202, -1e+30
      %v3431 = vsel %vm1420, %v2105, -1e+30
      %v3432 = vsel %vm1421, %v2107, -1e+30
      %v3433 = vsel %vm1422, %v2205, -1e+30
      %v3434 = vsel %vm1423, %v2111, -1e+30
      %v3435 = vsel %vm1424, %v2113, -1e+30
      %v3436 = vsel %vm1425, %v2210, -1e+30
      %v3437 = vsel %vm1426, %v2115, -1e+30
      %v3438 = vsel %vm1427, %v2117, -1e+30
      %v3439 = vsel %vm1428, %v2213, -1e+30
      %v3440 = vmax.f32 %v3392, %v3393
      %v3441 = vmax.f32 %v3440, %v3394
      %3442 = vmax.xlane.f32.xlu0 %v3441
      %v3443 = vpop.xlane.xlu0 %3442
      %v3444 = vmax.f32 %v3395, %v3396
      %v3445 = vmax.f32 %v3444, %v3397
      %3446 = vmax.xlane.f32.xlu0 %v3445
      %v3447 = vpop.xlane.xlu0 %3446
      %v3448 = vmax.f32 %v3398, %v3399
      %v3449 = vmax.f32 %v3448, %v3400
      %3450 = vmax.xlane.f32.xlu0 %v3449
      %v3451 = vpop.xlane.xlu0 %3450
      %v3452 = vmax.f32 %v3401, %v3402
      %v3453 = vmax.f32 %v3452, %v3403
      %3454 = vmax.xlane.f32.xlu0 %v3453
      %v3455 = vpop.xlane.xlu0 %3454
      %v3456 = vmax.f32 %v3404, %v3405
      %v3457 = vmax.f32 %v3456, %v3406
      %3458 = vmax.xlane.f32.xlu0 %v3457
      %v3459 = vpop.xlane.xlu0 %3458
      %v3460 = vmax.f32 %v3407, %v3408
      %v3461 = vmax.f32 %v3460, %v3409
      %3462 = vmax.xlane.f32.xlu0 %v3461
      %v3463 = vpop.xlane.xlu0 %3462
      %v3464 = vmax.f32 %v3410, %v3411
      %v3465 = vmax.f32 %v3464, %v3412
      %3466 = vmax.xlane.f32.xlu0 %v3465
      %v3467 = vpop.xlane.xlu0 %3466
      %v3468 = vmax.f32 %v3413, %v3414
      %v3469 = vmax.f32 %v3468, %v3415
      %3470 = vmax.xlane.f32.xlu0 %v3469
      %v3471 = vpop.xlane.xlu0 %3470
      %v3472 = vmax.f32 %v3416, %v3417
      %v3473 = vmax.f32 %v3472, %v3418
      %3474 = vmax.xlane.f32.xlu0 %v3473
      %v3475 = vpop.xlane.xlu0 %3474
      %v3476 = vmax.f32 %v3419, %v3420
      %v3477 = vmax.f32 %v3476, %v3421
      %3478 = vmax.xlane.f32.xlu0 %v3477
      %v3479 = vpop.xlane.xlu0 %3478
      %v3480 = vmax.f32 %v3422, %v3423
      %v3481 = vmax.f32 %v3480, %v3424
      %3482 = vmax.xlane.f32.xlu0 %v3481
      %v3483 = vpop.xlane.xlu0 %3482
      %v3484 = vmax.f32 %v3425, %v3426
      %v3485 = vmax.f32 %v3484, %v3427
      %3486 = vmax.xlane.f32.xlu0 %v3485
      %v3487 = vpop.xlane.xlu0 %3486
      %v3488 = vmax.f32 %v3428, %v3429
      %v3489 = vmax.f32 %v3488, %v3430
      %3490 = vmax.xlane.f32.xlu0 %v3489
      %v3491 = vpop.xlane.xlu0 %3490
      %v3492 = vmax.f32 %v3431, %v3432
      %v3493 = vmax.f32 %v3492, %v3433
      %3494 = vmax.xlane.f32.xlu0 %v3493
      %v3495 = vpop.xlane.xlu0 %3494
      %v3496 = vmax.f32 %v3434, %v3435
      %v3497 = vmax.f32 %v3496, %v3436
      %3498 = vmax.xlane.f32.xlu0 %v3497
      %v3499 = vpop.xlane.xlu0 %3498
      %v3500 = vmax.f32 %v3437, %v3438
      %v3501 = vmax.f32 %v3500, %v3439
      %3502 = vmax.xlane.f32.xlu0 %v3501
      %v3503 = vpop.xlane.xlu0 %3502
      %vm3504 = vcmp.ge.f32.partialorder %v3331, %v3443
      %vm3505 = vcmp.ge.f32.partialorder %v3335, %v3447
      %vm3506 = vcmp.ge.f32.partialorder %v3339, %v3451
      %vm3507 = vcmp.ge.f32.partialorder %v3343, %v3455
      %vm3508 = vcmp.ge.f32.partialorder %v3347, %v3459
      %vm3509 = vcmp.ge.f32.partialorder %v3351, %v3463
      %vm3510 = vcmp.ge.f32.partialorder %v3355, %v3467
      %vm3511 = vcmp.ge.f32.partialorder %v3359, %v3471
      %vm3512 = vcmp.ge.f32.partialorder %v3363, %v3475
      %vm3513 = vcmp.ge.f32.partialorder %v3367, %v3479
      %vm3514 = vcmp.ge.f32.partialorder %v3371, %v3483
      %vm3515 = vcmp.ge.f32.partialorder %v3375, %v3487
      %vm3516 = vcmp.ge.f32.partialorder %v3379, %v3491
      %vm3517 = vcmp.ge.f32.partialorder %v3383, %v3495
      %vm3518 = vcmp.ge.f32.partialorder %v3387, %v3499
      %vm3519 = vcmp.ge.f32.partialorder %v3391, %v3503
      %vm3520 = vmand %vm831, %vm3504
      %vm3521 = vmand %vm832, %vm3505
      %vm3522 = vmand %vm833, %vm3506
      %vm3523 = vmand %vm834, %vm3507
      %vm3524 = vmand %vm835, %vm3508
      %vm3525 = vmand %vm836, %vm3509
      %vm3526 = vmand %vm837, %vm3510
      %vm3527 = vmand %vm838, %vm3511
      %vm3528 = vmand %vm839, %vm3512
      %vm3529 = vmand %vm840, %vm3513
      %vm3530 = vmand %vm841, %vm3514
      %vm3531 = vmand %vm842, %vm3515
      %vm3532 = vmand %vm843, %vm3516
      %vm3533 = vmand %vm844, %vm3517
      %vm3534 = vmand %vm845, %vm3518
      %vm3535 = vmand %vm846, %vm3519
      %v3536 = vsel %vm3520, 1.0, 0.0
      %v3537 = vsel %vm3521, 1.0, 0.0
      %v3538 = vsel %vm3522, 1.0, 0.0
      %v3539 = vsel %vm3523, 1.0, 0.0
      %v3540 = vsel %vm3524, 1.0, 0.0
      %v3541 = vsel %vm3525, 1.0, 0.0
      %v3542 = vsel %vm3526, 1.0, 0.0
      %v3543 = vsel %vm3527, 1.0, 0.0
      %v3544 = vsel %vm3528, 1.0, 0.0
      %v3545 = vsel %vm3529, 1.0, 0.0
      %v3546 = vsel %vm3530, 1.0, 0.0
      %v3547 = vsel %vm3531, 1.0, 0.0
      %v3548 = vsel %vm3532, 1.0, 0.0
      %v3549 = vsel %vm3533, 1.0, 0.0
      %v3550 = vsel %vm3534, 1.0, 0.0
      %v3551 = vsel %vm3535, 1.0, 0.0
      %vm3552 = vcmask 7168
      %v3553 = vsel %vm3552, %v3536, 0.0
      %v3554 = vsel %vm3552, %v3537, 0.0
      %v3555 = vadd.f32 %v3553, %v3554
      %v3556 = vsel %vm3552, %v3538, 0.0
      %v3557 = vadd.f32 %v3555, %v3556
      %v3558 = vsel %vm3552, %v3539, 0.0
      %v3559 = vadd.f32 %v3557, %v3558
      %v3560 = vsel %vm3552, %v3540, 0.0
      %v3561 = vadd.f32 %v3559, %v3560
      %v3562 = vsel %vm3552, %v3541, 0.0
      %v3563 = vadd.f32 %v3561, %v3562
      %v3564 = vsel %vm3552, %v3542, 0.0
      %v3565 = vadd.f32 %v3563, %v3564
      %v3566 = vsel %vm3552, %v3543, 0.0
      %v3567 = vadd.f32 %v3565, %v3566
      %v3568 = vsel %vm3552, %v3544, 0.0
      %v3569 = vadd.f32 %v3567, %v3568
      %v3570 = vsel %vm3552, %v3545, 0.0
      %v3571 = vadd.f32 %v3569, %v3570
      %v3572 = vsel %vm3552, %v3546, 0.0
      %v3573 = vadd.f32 %v3571, %v3572
      %v3574 = vsel %vm3552, %v3547, 0.0
      %v3575 = vadd.f32 %v3573, %v3574
      %v3576 = vsel %vm3552, %v3548, 0.0
      %v3577 = vadd.f32 %v3575, %v3576
      %v3578 = vsel %vm3552, %v3549, 0.0
      %v3579 = vadd.f32 %v3577, %v3578
      %v3580 = vsel %vm3552, %v3550, 0.0
      %v3581 = vadd.f32 %v3579, %v3580
      %v3582 = vsel %vm3552, %v3551, 0.0
      %v3583 = vadd.f32 %v3581, %v3582
      %3584 = vadd.xlane.f32.xlu0 %v3583
      %v3585 = vpop.xlane.xlu0 %3584
      %v3586 = vrot.slane %v3585, 4
      %v3587 = vadd.f32 %v3585, %v3586
      %v3588 = vrot.slane %v3587, 2
      %v3589 = vadd.f32 %v3587, %v3588
      %v3590 = vrot.slane %v3589, 1
      %v3591 = vadd.f32 %v3589, %v3590
      %s3592 = vtos %v3591
      %3593 = vmatprep.subr.bf16.mxu0 0
      %3594 = vmatpush1.bf16.xpose.msra.mxu0 %v1893
      %3595 = vmatprep.subr.bf16.mxu0 0
      %3596 = vmatpush1.bf16.xpose.msra.mxu0 %v1894
      %3597 = vmatprep.subr.bf16.mxu0 0
      %3598 = vmatpush1.bf16.xpose.msra.mxu0 %v1895
      %3599 = vmatprep.subr.bf16.mxu0 0
      %3600 = vmatpush1.bf16.xpose.msra.mxu0 %v1896
      %3601 = vmatprep.subr.bf16.mxu0 0
      %3602 = vmatpush1.bf16.xpose.msra.mxu0 %v1897
      %3603 = vmatprep.subr.bf16.mxu0 0
      %3604 = vmatpush1.bf16.xpose.msra.mxu0 %v1898
      %3605 = vmatprep.subr.bf16.mxu0 0
      %3606 = vmatpush1.bf16.xpose.msra.mxu0 %v1899
      %3607 = vmatprep.subr.bf16.mxu0 0
      %3608 = vmatpush1.bf16.xpose.msra.mxu0 %v1900
      %3609 = vmatprep.subr.bf16.mxu0 0
      %3610 = vmatpush1.bf16.xpose.msra.mxu0 %v1941
      %3611 = vmatprep.subr.bf16.mxu0 0
      %3612 = vmatpush1.bf16.xpose.msra.mxu0 %v1942
      %3613 = vmatprep.subr.bf16.mxu0 0
      %3614 = vmatpush1.bf16.xpose.msra.mxu0 %v1943
      %3615 = vmatprep.subr.bf16.mxu0 0
      %3616 = vmatpush1.bf16.xpose.msra.mxu0 %v1944
      %3617 = vmatprep.subr.bf16.mxu0 0
      %3618 = vmatpush1.bf16.xpose.msra.mxu0 %v1945
      %3619 = vmatprep.subr.bf16.mxu0 0
      %3620 = vmatpush1.bf16.xpose.msra.mxu0 %v1946
      %3621 = vmatprep.subr.bf16.mxu0 0
      %3622 = vmatpush1.bf16.xpose.msra.mxu0 %v1947
      %3623 = vmatprep.subr.bf16.mxu0 0
      %3624 = vmatpush1.bf16.xpose.msra.mxu0 %v1948
      %3625 = vmatprep.mubr.bf16.mxu0 0
      %3626 = vmatmul.mubr.bf16.gmra.mrb[0].mxu0 %v1749
      %v3627 = vpop.f32.mrb[0].mxu0
      %v3628 = vadd.f32 %v2005, %v3627
      %v3629 = vpop.f32.mrb[0].mxu0
      %v3630 = vadd.f32 %v2005, %v3629
      %v3631 = vpop.f32.mrb[0].mxu0
      %v3632 = vadd.f32 %v2005, %v3631
      %v3633 = vpop.f32.mrb[0].mxu0
      %v3634 = vadd.f32 %v2005, %v3633
      %3635 = vmatprep.mubr.bf16.mxu0 0
      %3636 = vmatmul.mubr.bf16.gmra.mrb[0].mxu0 %v1750
      %v3637 = vpop.f32.mrb[0].mxu0
      %v3638 = vadd.f32 %v2005, %v3637
      %v3639 = vpop.f32.mrb[0].mxu0
      %v3640 = vadd.f32 %v2005, %v3639
      %v3641 = vpop.f32.mrb[0].mxu0
      %v3642 = vadd.f32 %v2005, %v3641
      %v3643 = vpop.f32.mrb[0].mxu0
      %v3644 = vadd.f32 %v2005, %v3643
      %3645 = vmatprep.mubr.bf16.mxu0 0
      %3646 = vmatmul.mubr.bf16.gmra.mrb[0].mxu0 %v1751
      %v3647 = vpop.f32.mrb[0].mxu0
      %v3648 = vadd.f32 %v2005, %v3647
      %v3649 = vpop.f32.mrb[0].mxu0
      %v3650 = vadd.f32 %v2005, %v3649
      %v3651 = vpop.f32.mrb[0].mxu0
      %v3652 = vadd.f32 %v2005, %v3651
      %v3653 = vpop.f32.mrb[0].mxu0
      %v3654 = vadd.f32 %v2005, %v3653
      %3655 = vmatprep.mubr.bf16.mxu0 0
      %3656 = vmatmul.mubr.bf16.gmra.mrb[0].mxu0 %v1752
      %v3657 = vpop.f32.mrb[0].mxu0
      %v3658 = vadd.f32 %v2005, %v3657
      %v3659 = vpop.f32.mrb[0].mxu0
      %v3660 = vadd.f32 %v2005, %v3659
      %v3661 = vpop.f32.mrb[0].mxu0
      %v3662 = vadd.f32 %v2005, %v3661
      %v3663 = vpop.f32.mrb[0].mxu0
      %v3664 = vadd.f32 %v2005, %v3663
      %3665 = vmatprep.mubr.bf16.mxu0 0
      %3666 = vmatmul.mubr.bf16.gmra.mrb[0].mxu0 %v1753
      %v3667 = vpop.f32.mrb[0].mxu0
      %v3668 = vadd.f32 %v2005, %v3667
      %v3669 = vpop.f32.mrb[0].mxu0
      %v3670 = vadd.f32 %v2005, %v3669
      %v3671 = vpop.f32.mrb[0].mxu0
      %v3672 = vadd.f32 %v2005, %v3671
      %v3673 = vpop.f32.mrb[0].mxu0
      %v3674 = vadd.f32 %v2005, %v3673
      %3675 = vmatprep.mubr.bf16.mxu0 0
      %3676 = vmatmul.mubr.bf16.gmra.mrb[0].mxu0 %v1754
      %v3677 = vpop.f32.mrb[0].mxu0
      %v3678 = vadd.f32 %v2005, %v3677
      %v3679 = vpop.f32.mrb[0].mxu0
      %v3680 = vadd.f32 %v2005, %v3679
      %v3681 = vpop.f32.mrb[0].mxu0
      %v3682 = vadd.f32 %v2005, %v3681
      %v3683 = vpop.f32.mrb[0].mxu0
      %v3684 = vadd.f32 %v2005, %v3683
      %3685 = vmatprep.mubr.bf16.mxu0 0
      %3686 = vmatmul.mubr.bf16.gmra.mrb[0].mxu0 %v1755
      %v3687 = vpop.f32.mrb[0].mxu0
      %v3688 = vadd.f32 %v2005, %v3687
      %v3689 = vpop.f32.mrb[0].mxu0
      %v3690 = vadd.f32 %v2005, %v3689
      %v3691 = vpop.f32.mrb[0].mxu0
      %v3692 = vadd.f32 %v2005, %v3691
      %v3693 = vpop.f32.mrb[0].mxu0
      %v3694 = vadd.f32 %v2005, %v3693
      %3695 = vmatprep.mubr.bf16.mxu0 0
      %3696 = vmatmul.mubr.bf16.gmra.mrb[0].mxu0 %v1756
      %v3697 = vpop.f32.mrb[0].mxu0
      %v3698 = vadd.f32 %v2005, %v3697
      %v3699 = vpop.f32.mrb[0].mxu0
      %v3700 = vadd.f32 %v2005, %v3699
      %v3701 = vpop.f32.mrb[0].mxu0
      %v3702 = vadd.f32 %v2005, %v3701
      %v3703 = vpop.f32.mrb[0].mxu0
      %v3704 = vadd.f32 %v2005, %v3703
      %3705 = vdwg.mxu0
      %3706 = vmatprep.subr.bf16.mxu0 0
      %3707 = vmatpush1.bf16.xpose.msra.mxu0 %v1989
      %3708 = vmatprep.subr.bf16.mxu0 0
      %3709 = vmatpush1.bf16.xpose.msra.mxu0 %v1990
      %3710 = vmatprep.subr.bf16.mxu0 0
      %3711 = vmatpush1.bf16.xpose.msra.mxu0 %v1991
      %3712 = vmatprep.subr.bf16.mxu0 0
      %3713 = vmatpush1.bf16.xpose.msra.mxu0 %v1992
      %3714 = vmatprep.subr.bf16.mxu0 0
      %3715 = vmatpush1.bf16.xpose.msra.mxu0 %v1993
      %3716 = vmatprep.subr.bf16.mxu0 0
      %3717 = vmatpush1.bf16.xpose.msra.mxu0 %v1994
      %3718 = vmatprep.subr.bf16.mxu0 0
      %3719 = vmatpush1.bf16.xpose.msra.mxu0 %v1995
      %3720 = vmatprep.subr.bf16.mxu0 0
      %3721 = vmatpush1.bf16.xpose.msra.mxu0 %v1996
      %3722 = vmatprep.subr.bf16.mxu0 0
      %3723 = vmatpush1.bf16.xpose.msra.mxu0 0
      %3724 = vmatprep.subr.bf16.mxu0 0
      %3725 = vmatpush1.bf16.xpose.msra.mxu0 0
      %3726 = vmatprep.subr.bf16.mxu0 0
      %3727 = vmatpush1.bf16.xpose.msra.mxu0 0
      %3728 = vmatprep.subr.bf16.mxu0 0
      %3729 = vmatpush1.bf16.xpose.msra.mxu0 0
      %3730 = vmatprep.subr.bf16.mxu0 0
      %3731 = vmatpush1.bf16.xpose.msra.mxu0 0
      %3732 = vmatprep.subr.bf16.mxu0 0
      %3733 = vmatpush1.bf16.xpose.msra.mxu0 0
      %3734 = vmatprep.subr.bf16.mxu0 0
      %3735 = vmatpush1.bf16.xpose.msra.mxu0 0
      %3736 = vmatprep.subr.bf16.mxu0 0
      %3737 = vmatpush1.bf16.xpose.msra.mxu0 0
      %3738 = vmatprep.mubr.bf16.mxu0 0
      %3739 = vmatmul.mubr.bf16.gmra.mrb[0].mxu0 %v1749
      %v3740 = vpop.f32.mrb[0].mxu0
      %v3741 = vadd.f32 %v2005, %v3740
      %v3742 = vpop.f32.mrb[0].mxu0
      %v3743 = vpop.f32.mrb[0].mxu0
      %v3744 = vadd.f32 %v2005, %v3743
      %v3745 = vpop.f32.mrb[0].mxu0
      %3746 = vmatprep.mubr.bf16.mxu0 0
      %3747 = vmatmul.mubr.bf16.gmra.mrb[0].mxu0 %v1750
      %v3748 = vpop.f32.mrb[0].mxu0
      %v3749 = vadd.f32 %v2005, %v3748
      %v3750 = vpop.f32.mrb[0].mxu0
      %v3751 = vpop.f32.mrb[0].mxu0
      %v3752 = vadd.f32 %v2005, %v3751
      %v3753 = vpop.f32.mrb[0].mxu0
      %3754 = vmatprep.mubr.bf16.mxu0 0
      %3755 = vmatmul.mubr.bf16.gmra.mrb[0].mxu0 %v1751
      %v3756 = vpop.f32.mrb[0].mxu0
      %v3757 = vadd.f32 %v2005, %v3756
      %v3758 = vpop.f32.mrb[0].mxu0
      %v3759 = vpop.f32.mrb[0].mxu0
      %v3760 = vadd.f32 %v2005, %v3759
      %v3761 = vpop.f32.mrb[0].mxu0
      %3762 = vmatprep.mubr.bf16.mxu0 0
      %3763 = vmatmul.mubr.bf16.gmra.mrb[0].mxu0 %v1752
      %v3764 = vpop.f32.mrb[0].mxu0
      %v3765 = vadd.f32 %v2005, %v3764
      %v3766 = vpop.f32.mrb[0].mxu0
      %v3767 = vpop.f32.mrb[0].mxu0
      %v3768 = vadd.f32 %v2005, %v3767
      %v3769 = vpop.f32.mrb[0].mxu0
      %3770 = vmatprep.mubr.bf16.mxu0 0
      %3771 = vmatmul.mubr.bf16.gmra.mrb[0].mxu0 %v1753
      %v3772 = vpop.f32.mrb[0].mxu0
      %v3773 = vadd.f32 %v2005, %v3772
      %v3774 = vpop.f32.mrb[0].mxu0
      %v3775 = vpop.f32.mrb[0].mxu0
      %v3776 = vadd.f32 %v2005, %v3775
      %v3777 = vpop.f32.mrb[0].mxu0
      %3778 = vmatprep.mubr.bf16.mxu0 0
      %3779 = vmatmul.mubr.bf16.gmra.mrb[0].mxu0 %v1754
      %v3780 = vpop.f32.mrb[0].mxu0
      %v3781 = vadd.f32 %v2005, %v3780
      %v3782 = vpop.f32.mrb[0].mxu0
      %v3783 = vpop.f32.mrb[0].mxu0
      %v3784 = vadd.f32 %v2005, %v3783
      %v3785 = vpop.f32.mrb[0].mxu0
      %3786 = vmatprep.mubr.bf16.mxu0 0
      %3787 = vmatmul.mubr.bf16.gmra.mrb[0].mxu0 %v1755
      %v3788 = vpop.f32.mrb[0].mxu0
      %v3789 = vadd.f32 %v2005, %v3788
      %v3790 = vpop.f32.mrb[0].mxu0
      %v3791 = vpop.f32.mrb[0].mxu0
      %v3792 = vadd.f32 %v2005, %v3791
      %v3793 = vpop.f32.mrb[0].mxu0
      %3794 = vmatprep.mubr.bf16.mxu0 0
      %3795 = vmatmul.mubr.bf16.gmra.mrb[0].mxu0 %v1756
      %v3796 = vpop.f32.mrb[0].mxu0
      %v3797 = vadd.f32 %v2005, %v3796
      %v3798 = vpop.f32.mrb[0].mxu0
      %v3799 = vpop.f32.mrb[0].mxu0
      %v3800 = vadd.f32 %v2005, %v3799
      %v3801 = vpop.f32.mrb[0].mxu0
      %3802 = vdwg.mxu0
      %v3803 = vand.u32 2147483647, %v3628
      %v3804 = vand.u32 2147483647, %v3630
      %v3805 = vand.u32 2147483647, %v3741
      %v3806 = vand.u32 2147483647, %v3632
      %v3807 = vand.u32 2147483647, %v3634
      %v3808 = vand.u32 2147483647, %v3744
      %v3809 = vand.u32 2147483647, %v3638
      %v3810 = vand.u32 2147483647, %v3640
      %v3811 = vand.u32 2147483647, %v3749
      %v3812 = vand.u32 2147483647, %v3642
      %v3813 = vand.u32 2147483647, %v3644
      %v3814 = vand.u32 2147483647, %v3752
      %v3815 = vand.u32 2147483647, %v3648
      %v3816 = vand.u32 2147483647, %v3650
      %v3817 = vand.u32 2147483647, %v3757
      %v3818 = vand.u32 2147483647, %v3652
      %v3819 = vand.u32 2147483647, %v3654
      %v3820 = vand.u32 2147483647, %v3760
      %v3821 = vand.u32 2147483647, %v3658
      %v3822 = vand.u32 2147483647, %v3660
      %v3823 = vand.u32 2147483647, %v3765
      %v3824 = vand.u32 2147483647, %v3662
      %v3825 = vand.u32 2147483647, %v3664
      %v3826 = vand.u32 2147483647, %v3768
      %v3827 = vand.u32 2147483647, %v3668
      %v3828 = vand.u32 2147483647, %v3670
      %v3829 = vand.u32 2147483647, %v3773
      %v3830 = vand.u32 2147483647, %v3672
      %v3831 = vand.u32 2147483647, %v3674
      %v3832 = vand.u32 2147483647, %v3776
      %v3833 = vand.u32 2147483647, %v3678
      %v3834 = vand.u32 2147483647, %v3680
      %v3835 = vand.u32 2147483647, %v3781
      %v3836 = vand.u32 2147483647, %v3682
      %v3837 = vand.u32 2147483647, %v3684
      %v3838 = vand.u32 2147483647, %v3784
      %v3839 = vand.u32 2147483647, %v3688
      %v3840 = vand.u32 2147483647, %v3690
      %v3841 = vand.u32 2147483647, %v3789
      %v3842 = vand.u32 2147483647, %v3692
      %v3843 = vand.u32 2147483647, %v3694
      %v3844 = vand.u32 2147483647, %v3792
      %v3845 = vand.u32 2147483647, %v3698
      %v3846 = vand.u32 2147483647, %v3700
      %v3847 = vand.u32 2147483647, %v3797
      %v3848 = vand.u32 2147483647, %v3702
      %v3849 = vand.u32 2147483647, %v3704
      %v3850 = vand.u32 2147483647, %v3800
      %v3851 = vsub.f32 0.0, %v3803
      %v3852 = vsub.f32 0.0, %v3804
      %v3853 = vsub.f32 0.0, %v3805
      %v3854 = vsub.f32 0.0, %v3806
      %v3855 = vsub.f32 0.0, %v3807
      %v3856 = vsub.f32 0.0, %v3808
      %v3857 = vsub.f32 0.0, %v3809
      %v3858 = vsub.f32 0.0, %v3810
      %v3859 = vsub.f32 0.0, %v3811
      %v3860 = vsub.f32 0.0, %v3812
      %v3861 = vsub.f32 0.0, %v3813
      %v3862 = vsub.f32 0.0, %v3814
      %v3863 = vsub.f32 0.0, %v3815
      %v3864 = vsub.f32 0.0, %v3816
      %v3865 = vsub.f32 0.0, %v3817
      %v3866 = vsub.f32 0.0, %v3818
      %v3867 = vsub.f32 0.0, %v3819
      %v3868 = vsub.f32 0.0, %v3820
      %v3869 = vsub.f32 0.0, %v3821
      %v3870 = vsub.f32 0.0, %v3822
      %v3871 = vsub.f32 0.0, %v3823
      %v3872 = vsub.f32 0.0, %v3824
      %v3873 = vsub.f32 0.0, %v3825
      %v3874 = vsub.f32 0.0, %v3826
      %v3875 = vsub.f32 0.0, %v3827
      %v3876 = vsub.f32 0.0, %v3828
      %v3877 = vsub.f32 0.0, %v3829
      %v3878 = vsub.f32 0.0, %v3830
      %v3879 = vsub.f32 0.0, %v3831
      %v3880 = vsub.f32 0.0, %v3832
      %v3881 = vsub.f32 0.0, %v3833
      %v3882 = vsub.f32 0.0, %v3834
      %v3883 = vsub.f32 0.0, %v3835
      %v3884 = vsub.f32 0.0, %v3836
      %v3885 = vsub.f32 0.0, %v3837
      %v3886 = vsub.f32 0.0, %v3838
      %v3887 = vsub.f32 0.0, %v3839
      %v3888 = vsub.f32 0.0, %v3840
      %v3889 = vsub.f32 0.0, %v3841
      %v3890 = vsub.f32 0.0, %v3842
      %v3891 = vsub.f32 0.0, %v3843
      %v3892 = vsub.f32 0.0, %v3844
      %v3893 = vsub.f32 0.0, %v3845
      %v3894 = vsub.f32 0.0, %v3846
      %v3895 = vsub.f32 0.0, %v3847
      %v3896 = vsub.f32 0.0, %v3848
      %v3897 = vsub.f32 0.0, %v3849
      %v3898 = vsub.f32 0.0, %v3850
      %v3899 = vmul.f32 %v3851, 1.442695
      %v3900 = vpow.pop %v3899
      %v3901 = vmul.f32 %v3852, 1.442695
      %v3902 = vpow.pop %v3901
      %v3903 = vmul.f32 %v3853, 1.442695
      %v3904 = vpow.pop %v3903
      %v3905 = vmul.f32 %v3854, 1.442695
      %v3906 = vpow.pop %v3905
      %v3907 = vmul.f32 %v3855, 1.442695
      %v3908 = vpow.pop %v3907
      %v3909 = vmul.f32 %v3856, 1.442695
      %v3910 = vpow.pop %v3909
      %v3911 = vmul.f32 %v3857, 1.442695
      %v3912 = vpow.pop %v3911
      %v3913 = vmul.f32 %v3858, 1.442695
      %v3914 = vpow.pop %v3913
      %v3915 = vmul.f32 %v3859, 1.442695
      %v3916 = vpow.pop %v3915
      %v3917 = vmul.f32 %v3860, 1.442695
      %v3918 = vpow.pop %v3917
      %v3919 = vmul.f32 %v3861, 1.442695
      %v3920 = vpow.pop %v3919
      %v3921 = vmul.f32 %v3862, 1.442695
      %v3922 = vpow.pop %v3921
      %v3923 = vmul.f32 %v3863, 1.442695
      %v3924 = vpow.pop %v3923
      %v3925 = vmul.f32 %v3864, 1.442695
      %v3926 = vpow.pop %v3925
      %v3927 = vmul.f32 %v3865, 1.442695
      %v3928 = vpow.pop %v3927
      %v3929 = vmul.f32 %v3866, 1.442695
      %v3930 = vpow.pop %v3929
      %v3931 = vmul.f32 %v3867, 1.442695
      %v3932 = vpow.pop %v3931
      %v3933 = vmul.f32 %v3868, 1.442695
      %v3934 = vpow.pop %v3933
      %v3935 = vmul.f32 %v3869, 1.442695
      %v3936 = vpow.pop %v3935
      %v3937 = vmul.f32 %v3870, 1.442695
      %v3938 = vpow.pop %v3937
      %v3939 = vmul.f32 %v3871, 1.442695
      %v3940 = vpow.pop %v3939
      %v3941 = vmul.f32 %v3872, 1.442695
      %v3942 = vpow.pop %v3941
      %v3943 = vmul.f32 %v3873, 1.442695
      %v3944 = vpow.pop %v3943
      %v3945 = vmul.f32 %v3874, 1.442695
      %v3946 = vpow.pop %v3945
      %v3947 = vmul.f32 %v3875, 1.442695
      %v3948 = vpow.pop %v3947
      %v3949 = vmul.f32 %v3876, 1.442695
      %v3950 = vpow.pop %v3949
      %v3951 = vmul.f32 %v3877, 1.442695
      %v3952 = vpow.pop %v3951
      %v3953 = vmul.f32 %v3878, 1.442695
      %v3954 = vpow.pop %v3953
      %v3955 = vmul.f32 %v3879, 1.442695
      %v3956 = vpow.pop %v3955
      %v3957 = vmul.f32 %v3880, 1.442695
      %v3958 = vpow.pop %v3957
      %v3959 = vmul.f32 %v3881, 1.442695
      %v3960 = vpow.pop %v3959
      %v3961 = vmul.f32 %v3882, 1.442695
      %v3962 = vpow.pop %v3961
      %v3963 = vmul.f32 %v3883, 1.442695
      %v3964 = vpow.pop %v3963
      %v3965 = vmul.f32 %v3884, 1.442695
      %v3966 = vpow.pop %v3965
      %v3967 = vmul.f32 %v3885, 1.442695
      %v3968 = vpow.pop %v3967
      %v3969 = vmul.f32 %v3886, 1.442695
      %v3970 = vpow.pop %v3969
      %v3971 = vmul.f32 %v3887, 1.442695
      %v3972 = vpow.pop %v3971
      %v3973 = vmul.f32 %v3888, 1.442695
      %v3974 = vpow.pop %v3973
      %v3975 = vmul.f32 %v3889, 1.442695
      %v3976 = vpow.pop %v3975
      %v3977 = vmul.f32 %v3890, 1.442695
      %v3978 = vpow.pop %v3977
      %v3979 = vmul.f32 %v3891, 1.442695
      %v3980 = vpow.pop %v3979
      %v3981 = vmul.f32 %v3892, 1.442695
      %v3982 = vpow.pop %v3981
      %v3983 = vmul.f32 %v3893, 1.442695
      %v3984 = vpow.pop %v3983
      %v3985 = vmul.f32 %v3894, 1.442695
      %v3986 = vpow.pop %v3985
      %v3987 = vmul.f32 %v3895, 1.442695
      %v3988 = vpow.pop %v3987
      %v3989 = vmul.f32 %v3896, 1.442695
      %v3990 = vpow.pop %v3989
      %v3991 = vmul.f32 %v3897, 1.442695
      %v3992 = vpow.pop %v3991
      %v3993 = vmul.f32 %v3898, 1.442695
      %v3994 = vpow.pop %v3993
      %v3995 = vadd.f32 %v3900, 1.0
      %v3996 = vlog2.pop %v3995
      %v3997 = vmul.f32 %v3996, 0.6931472
      %v3998 = vmul.f32 -0.5, %v3900
      %v3999 = vadd.f32 %v3998, 1.0
      %v4000 = vmul.f32 %v3999, %v3900
      %v4001 = vand.u32 2147483647, %v3900
      %vm4002 = vcmp.lt.f32.partialorder %v4001, 0.0004427343
      %v4003 = vsel %vm4002, %v4000, %v3997
      %v4004 = vadd.f32 %v3902, 1.0
      %v4005 = vlog2.pop %v4004
      %v4006 = vmul.f32 %v4005, 0.6931472
      %v4007 = vmul.f32 -0.5, %v3902
      %v4008 = vadd.f32 %v4007, 1.0
      %v4009 = vmul.f32 %v4008, %v3902
      %v4010 = vand.u32 2147483647, %v3902
      %vm4011 = vcmp.lt.f32.partialorder %v4010, 0.0004427343
      %v4012 = vsel %vm4011, %v4009, %v4006
      %v4013 = vadd.f32 %v3904, 1.0
      %v4014 = vlog2.pop %v4013
      %v4015 = vmul.f32 %v4014, 0.6931472
      %v4016 = vmul.f32 -0.5, %v3904
      %v4017 = vadd.f32 %v4016, 1.0
      %v4018 = vmul.f32 %v4017, %v3904
      %v4019 = vand.u32 2147483647, %v3904
      %vm4020 = vcmp.lt.f32.partialorder %v4019, 0.0004427343
      %v4021 = vsel %vm4020, %v4018, %v4015
      %v4022 = vadd.f32 %v3906, 1.0
      %v4023 = vlog2.pop %v4022
      %v4024 = vmul.f32 %v4023, 0.6931472
      %v4025 = vmul.f32 -0.5, %v3906
      %v4026 = vadd.f32 %v4025, 1.0
      %v4027 = vmul.f32 %v4026, %v3906
      %v4028 = vand.u32 2147483647, %v3906
      %vm4029 = vcmp.lt.f32.partialorder %v4028, 0.0004427343
      %v4030 = vsel %vm4029, %v4027, %v4024
      %v4031 = vadd.f32 %v3908, 1.0
      %v4032 = vlog2.pop %v4031
      %v4033 = vmul.f32 %v4032, 0.6931472
      %v4034 = vmul.f32 -0.5, %v3908
      %v4035 = vadd.f32 %v4034, 1.0
      %v4036 = vmul.f32 %v4035, %v3908
      %v4037 = vand.u32 2147483647, %v3908
      %vm4038 = vcmp.lt.f32.partialorder %v4037, 0.0004427343
      %v4039 = vsel %vm4038, %v4036, %v4033
      %v4040 = vadd.f32 %v3910, 1.0
      %v4041 = vlog2.pop %v4040
      %v4042 = vmul.f32 %v4041, 0.6931472
      %v4043 = vmul.f32 -0.5, %v3910
      %v4044 = vadd.f32 %v4043, 1.0
      %v4045 = vmul.f32 %v4044, %v3910
      %v4046 = vand.u32 2147483647, %v3910
      %vm4047 = vcmp.lt.f32.partialorder %v4046, 0.0004427343
      %v4048 = vsel %vm4047, %v4045, %v4042
      %v4049 = vadd.f32 %v3912, 1.0
      %v4050 = vlog2.pop %v4049
      %v4051 = vmul.f32 %v4050, 0.6931472
      %v4052 = vmul.f32 -0.5, %v3912
      %v4053 = vadd.f32 %v4052, 1.0
      %v4054 = vmul.f32 %v4053, %v3912
      %v4055 = vand.u32 2147483647, %v3912
      %vm4056 = vcmp.lt.f32.partialorder %v4055, 0.0004427343
      %v4057 = vsel %vm4056, %v4054, %v4051
      %v4058 = vadd.f32 %v3914, 1.0
      %v4059 = vlog2.pop %v4058
      %v4060 = vmul.f32 %v4059, 0.6931472
      %v4061 = vmul.f32 -0.5, %v3914
      %v4062 = vadd.f32 %v4061, 1.0
      %v4063 = vmul.f32 %v4062, %v3914
      %v4064 = vand.u32 2147483647, %v3914
      %vm4065 = vcmp.lt.f32.partialorder %v4064, 0.0004427343
      %v4066 = vsel %vm4065, %v4063, %v4060
      %v4067 = vadd.f32 %v3916, 1.0
      %v4068 = vlog2.pop %v4067
      %v4069 = vmul.f32 %v4068, 0.6931472
      %v4070 = vmul.f32 -0.5, %v3916
      %v4071 = vadd.f32 %v4070, 1.0
      %v4072 = vmul.f32 %v4071, %v3916
      %v4073 = vand.u32 2147483647, %v3916
      %vm4074 = vcmp.lt.f32.partialorder %v4073, 0.0004427343
      %v4075 = vsel %vm4074, %v4072, %v4069
      %v4076 = vadd.f32 %v3918, 1.0
      %v4077 = vlog2.pop %v4076
      %v4078 = vmul.f32 %v4077, 0.6931472
      %v4079 = vmul.f32 -0.5, %v3918
      %v4080 = vadd.f32 %v4079, 1.0
      %v4081 = vmul.f32 %v4080, %v3918
      %v4082 = vand.u32 2147483647, %v3918
      %vm4083 = vcmp.lt.f32.partialorder %v4082, 0.0004427343
      %v4084 = vsel %vm4083, %v4081, %v4078
      %v4085 = vadd.f32 %v3920, 1.0
      %v4086 = vlog2.pop %v4085
      %v4087 = vmul.f32 %v4086, 0.6931472
      %v4088 = vmul.f32 -0.5, %v3920
      %v4089 = vadd.f32 %v4088, 1.0
      %v4090 = vmul.f32 %v4089, %v3920
      %v4091 = vand.u32 2147483647, %v3920
      %vm4092 = vcmp.lt.f32.partialorder %v4091, 0.0004427343
      %v4093 = vsel %vm4092, %v4090, %v4087
      %v4094 = vadd.f32 %v3922, 1.0
      %v4095 = vlog2.pop %v4094
      %v4096 = vmul.f32 %v4095, 0.6931472
      %v4097 = vmul.f32 -0.5, %v3922
      %v4098 = vadd.f32 %v4097, 1.0
      %v4099 = vmul.f32 %v4098, %v3922
      %v4100 = vand.u32 2147483647, %v3922
      %vm4101 = vcmp.lt.f32.partialorder %v4100, 0.0004427343
      %v4102 = vsel %vm4101, %v4099, %v4096
      %v4103 = vadd.f32 %v3924, 1.0
      %v4104 = vlog2.pop %v4103
      %v4105 = vmul.f32 %v4104, 0.6931472
      %v4106 = vmul.f32 -0.5, %v3924
      %v4107 = vadd.f32 %v4106, 1.0
      %v4108 = vmul.f32 %v4107, %v3924
      %v4109 = vand.u32 2147483647, %v3924
      %vm4110 = vcmp.lt.f32.partialorder %v4109, 0.0004427343
      %v4111 = vsel %vm4110, %v4108, %v4105
      %v4112 = vadd.f32 %v3926, 1.0
      %v4113 = vlog2.pop %v4112
      %v4114 = vmul.f32 %v4113, 0.6931472
      %v4115 = vmul.f32 -0.5, %v3926
      %v4116 = vadd.f32 %v4115, 1.0
      %v4117 = vmul.f32 %v4116, %v3926
      %v4118 = vand.u32 2147483647, %v3926
      %vm4119 = vcmp.lt.f32.partialorder %v4118, 0.0004427343
      %v4120 = vsel %vm4119, %v4117, %v4114
      %v4121 = vadd.f32 %v3928, 1.0
      %v4122 = vlog2.pop %v4121
      %v4123 = vmul.f32 %v4122, 0.6931472
      %v4124 = vmul.f32 -0.5, %v3928
      %v4125 = vadd.f32 %v4124, 1.0
      %v4126 = vmul.f32 %v4125, %v3928
      %v4127 = vand.u32 2147483647, %v3928
      %vm4128 = vcmp.lt.f32.partialorder %v4127, 0.0004427343
      %v4129 = vsel %vm4128, %v4126, %v4123
      %v4130 = vadd.f32 %v3930, 1.0
      %v4131 = vlog2.pop %v4130
      %v4132 = vmul.f32 %v4131, 0.6931472
      %v4133 = vmul.f32 -0.5, %v3930
      %v4134 = vadd.f32 %v4133, 1.0
      %v4135 = vmul.f32 %v4134, %v3930
      %v4136 = vand.u32 2147483647, %v3930
      %vm4137 = vcmp.lt.f32.partialorder %v4136, 0.0004427343
      %v4138 = vsel %vm4137, %v4135, %v4132
      %v4139 = vadd.f32 %v3932, 1.0
      %v4140 = vlog2.pop %v4139
      %v4141 = vmul.f32 %v4140, 0.6931472
      %v4142 = vmul.f32 -0.5, %v3932
      %v4143 = vadd.f32 %v4142, 1.0
      %v4144 = vmul.f32 %v4143, %v3932
      %v4145 = vand.u32 2147483647, %v3932
      %vm4146 = vcmp.lt.f32.partialorder %v4145, 0.0004427343
      %v4147 = vsel %vm4146, %v4144, %v4141
      %v4148 = vadd.f32 %v3934, 1.0
      %v4149 = vlog2.pop %v4148
      %v4150 = vmul.f32 %v4149, 0.6931472
      %v4151 = vmul.f32 -0.5, %v3934
      %v4152 = vadd.f32 %v4151, 1.0
      %v4153 = vmul.f32 %v4152, %v3934
      %v4154 = vand.u32 2147483647, %v3934
      %vm4155 = vcmp.lt.f32.partialorder %v4154, 0.0004427343
      %v4156 = vsel %vm4155, %v4153, %v4150
      %v4157 = vadd.f32 %v3936, 1.0
      %v4158 = vlog2.pop %v4157
      %v4159 = vmul.f32 %v4158, 0.6931472
      %v4160 = vmul.f32 -0.5, %v3936
      %v4161 = vadd.f32 %v4160, 1.0
      %v4162 = vmul.f32 %v4161, %v3936
      %v4163 = vand.u32 2147483647, %v3936
      %vm4164 = vcmp.lt.f32.partialorder %v4163, 0.0004427343
      %v4165 = vsel %vm4164, %v4162, %v4159
      %v4166 = vadd.f32 %v3938, 1.0
      %v4167 = vlog2.pop %v4166
      %v4168 = vmul.f32 %v4167, 0.6931472
      %v4169 = vmul.f32 -0.5, %v3938
      %v4170 = vadd.f32 %v4169, 1.0
      %v4171 = vmul.f32 %v4170, %v3938
      %v4172 = vand.u32 2147483647, %v3938
      %vm4173 = vcmp.lt.f32.partialorder %v4172, 0.0004427343
      %v4174 = vsel %vm4173, %v4171, %v4168
      %v4175 = vadd.f32 %v3940, 1.0
      %v4176 = vlog2.pop %v4175
      %v4177 = vmul.f32 %v4176, 0.6931472
      %v4178 = vmul.f32 -0.5, %v3940
      %v4179 = vadd.f32 %v4178, 1.0
      %v4180 = vmul.f32 %v4179, %v3940
      %v4181 = vand.u32 2147483647, %v3940
      %vm4182 = vcmp.lt.f32.partialorder %v4181, 0.0004427343
      %v4183 = vsel %vm4182, %v4180, %v4177
      %v4184 = vadd.f32 %v3942, 1.0
      %v4185 = vlog2.pop %v4184
      %v4186 = vmul.f32 %v4185, 0.6931472
      %v4187 = vmul.f32 -0.5, %v3942
      %v4188 = vadd.f32 %v4187, 1.0
      %v4189 = vmul.f32 %v4188, %v3942
      %v4190 = vand.u32 2147483647, %v3942
      %vm4191 = vcmp.lt.f32.partialorder %v4190, 0.0004427343
      %v4192 = vsel %vm4191, %v4189, %v4186
      %v4193 = vadd.f32 %v3944, 1.0
      %v4194 = vlog2.pop %v4193
      %v4195 = vmul.f32 %v4194, 0.6931472
      %v4196 = vmul.f32 -0.5, %v3944
      %v4197 = vadd.f32 %v4196, 1.0
      %v4198 = vmul.f32 %v4197, %v3944
      %v4199 = vand.u32 2147483647, %v3944
      %vm4200 = vcmp.lt.f32.partialorder %v4199, 0.0004427343
      %v4201 = vsel %vm4200, %v4198, %v4195
      %v4202 = vadd.f32 %v3946, 1.0
      %v4203 = vlog2.pop %v4202
      %v4204 = vmul.f32 %v4203, 0.6931472
      %v4205 = vmul.f32 -0.5, %v3946
      %v4206 = vadd.f32 %v4205, 1.0
      %v4207 = vmul.f32 %v4206, %v3946
      %v4208 = vand.u32 2147483647, %v3946
      %vm4209 = vcmp.lt.f32.partialorder %v4208, 0.0004427343
      %v4210 = vsel %vm4209, %v4207, %v4204
      %v4211 = vadd.f32 %v3948, 1.0
      %v4212 = vlog2.pop %v4211
      %v4213 = vmul.f32 %v4212, 0.6931472
      %v4214 = vmul.f32 -0.5, %v3948
      %v4215 = vadd.f32 %v4214, 1.0
      %v4216 = vmul.f32 %v4215, %v3948
      %v4217 = vand.u32 2147483647, %v3948
      %vm4218 = vcmp.lt.f32.partialorder %v4217, 0.0004427343
      %v4219 = vsel %vm4218, %v4216, %v4213
      %v4220 = vadd.f32 %v3950, 1.0
      %v4221 = vlog2.pop %v4220
      %v4222 = vmul.f32 %v4221, 0.6931472
      %v4223 = vmul.f32 -0.5, %v3950
      %v4224 = vadd.f32 %v4223, 1.0
      %v4225 = vmul.f32 %v4224, %v3950
      %v4226 = vand.u32 2147483647, %v3950
      %vm4227 = vcmp.lt.f32.partialorder %v4226, 0.0004427343
      %v4228 = vsel %vm4227, %v4225, %v4222
      %v4229 = vadd.f32 %v3952, 1.0
      %v4230 = vlog2.pop %v4229
      %v4231 = vmul.f32 %v4230, 0.6931472
      %v4232 = vmul.f32 -0.5, %v3952
      %v4233 = vadd.f32 %v4232, 1.0
      %v4234 = vmul.f32 %v4233, %v3952
      %v4235 = vand.u32 2147483647, %v3952
      %vm4236 = vcmp.lt.f32.partialorder %v4235, 0.0004427343
      %v4237 = vsel %vm4236, %v4234, %v4231
      %v4238 = vadd.f32 %v3954, 1.0
      %v4239 = vlog2.pop %v4238
      %v4240 = vmul.f32 %v4239, 0.6931472
      %v4241 = vmul.f32 -0.5, %v3954
      %v4242 = vadd.f32 %v4241, 1.0
      %v4243 = vmul.f32 %v4242, %v3954
      %v4244 = vand.u32 2147483647, %v3954
      %vm4245 = vcmp.lt.f32.partialorder %v4244, 0.0004427343
      %v4246 = vsel %vm4245, %v4243, %v4240
      %v4247 = vadd.f32 %v3956, 1.0
      %v4248 = vlog2.pop %v4247
      %v4249 = vmul.f32 %v4248, 0.6931472
      %v4250 = vmul.f32 -0.5, %v3956
      %v4251 = vadd.f32 %v4250, 1.0
      %v4252 = vmul.f32 %v4251, %v3956
      %v4253 = vand.u32 2147483647, %v3956
      %vm4254 = vcmp.lt.f32.partialorder %v4253, 0.0004427343
      %v4255 = vsel %vm4254, %v4252, %v4249
      %v4256 = vadd.f32 %v3958, 1.0
      %v4257 = vlog2.pop %v4256
      %v4258 = vmul.f32 %v4257, 0.6931472
      %v4259 = vmul.f32 -0.5, %v3958
      %v4260 = vadd.f32 %v4259, 1.0
      %v4261 = vmul.f32 %v4260, %v3958
      %v4262 = vand.u32 2147483647, %v3958
      %vm4263 = vcmp.lt.f32.partialorder %v4262, 0.0004427343
      %v4264 = vsel %vm4263, %v4261, %v4258
      %v4265 = vadd.f32 %v3960, 1.0
      %v4266 = vlog2.pop %v4265
      %v4267 = vmul.f32 %v4266, 0.6931472
      %v4268 = vmul.f32 -0.5, %v3960
      %v4269 = vadd.f32 %v4268, 1.0
      %v4270 = vmul.f32 %v4269, %v3960
      %v4271 = vand.u32 2147483647, %v3960
      %vm4272 = vcmp.lt.f32.partialorder %v4271, 0.0004427343
      %v4273 = vsel %vm4272, %v4270, %v4267
      %v4274 = vadd.f32 %v3962, 1.0
      %v4275 = vlog2.pop %v4274
      %v4276 = vmul.f32 %v4275, 0.6931472
      %v4277 = vmul.f32 -0.5, %v3962
      %v4278 = vadd.f32 %v4277, 1.0
      %v4279 = vmul.f32 %v4278, %v3962
      %v4280 = vand.u32 2147483647, %v3962
      %vm4281 = vcmp.lt.f32.partialorder %v4280, 0.0004427343
      %v4282 = vsel %vm4281, %v4279, %v4276
      %v4283 = vadd.f32 %v3964, 1.0
      %v4284 = vlog2.pop %v4283
      %v4285 = vmul.f32 %v4284, 0.6931472
      %v4286 = vmul.f32 -0.5, %v3964
      %v4287 = vadd.f32 %v4286, 1.0
      %v4288 = vmul.f32 %v4287, %v3964
      %v4289 = vand.u32 2147483647, %v3964
      %vm4290 = vcmp.lt.f32.partialorder %v4289, 0.0004427343
      %v4291 = vsel %vm4290, %v4288, %v4285
      %v4292 = vadd.f32 %v3966, 1.0
      %v4293 = vlog2.pop %v4292
      %v4294 = vmul.f32 %v4293, 0.6931472
      %v4295 = vmul.f32 -0.5, %v3966
      %v4296 = vadd.f32 %v4295, 1.0
      %v4297 = vmul.f32 %v4296, %v3966
      %v4298 = vand.u32 2147483647, %v3966
      %vm4299 = vcmp.lt.f32.partialorder %v4298, 0.0004427343
      %v4300 = vsel %vm4299, %v4297, %v4294
      %v4301 = vadd.f32 %v3968, 1.0
      %v4302 = vlog2.pop %v4301
      %v4303 = vmul.f32 %v4302, 0.6931472
      %v4304 = vmul.f32 -0.5, %v3968
      %v4305 = vadd.f32 %v4304, 1.0
      %v4306 = vmul.f32 %v4305, %v3968
      %v4307 = vand.u32 2147483647, %v3968
      %vm4308 = vcmp.lt.f32.partialorder %v4307, 0.0004427343
      %v4309 = vsel %vm4308, %v4306, %v4303
      %v4310 = vadd.f32 %v3970, 1.0
      %v4311 = vlog2.pop %v4310
      %v4312 = vmul.f32 %v4311, 0.6931472
      %v4313 = vmul.f32 -0.5, %v3970
      %v4314 = vadd.f32 %v4313, 1.0
      %v4315 = vmul.f32 %v4314, %v3970
      %v4316 = vand.u32 2147483647, %v3970
      %vm4317 = vcmp.lt.f32.partialorder %v4316, 0.0004427343
      %v4318 = vsel %vm4317, %v4315, %v4312
      %v4319 = vadd.f32 %v3972, 1.0
      %v4320 = vlog2.pop %v4319
      %v4321 = vmul.f32 %v4320, 0.6931472
      %v4322 = vmul.f32 -0.5, %v3972
      %v4323 = vadd.f32 %v4322, 1.0
      %v4324 = vmul.f32 %v4323, %v3972
      %v4325 = vand.u32 2147483647, %v3972
      %vm4326 = vcmp.lt.f32.partialorder %v4325, 0.0004427343
      %v4327 = vsel %vm4326, %v4324, %v4321
      %v4328 = vadd.f32 %v3974, 1.0
      %v4329 = vlog2.pop %v4328
      %v4330 = vmul.f32 %v4329, 0.6931472
      %v4331 = vmul.f32 -0.5, %v3974
      %v4332 = vadd.f32 %v4331, 1.0
      %v4333 = vmul.f32 %v4332, %v3974
      %v4334 = vand.u32 2147483647, %v3974
      %vm4335 = vcmp.lt.f32.partialorder %v4334, 0.0004427343
      %v4336 = vsel %vm4335, %v4333, %v4330
      %v4337 = vadd.f32 %v3976, 1.0
      %v4338 = vlog2.pop %v4337
      %v4339 = vmul.f32 %v4338, 0.6931472
      %v4340 = vmul.f32 -0.5, %v3976
      %v4341 = vadd.f32 %v4340, 1.0
      %v4342 = vmul.f32 %v4341, %v3976
      %v4343 = vand.u32 2147483647, %v3976
      %vm4344 = vcmp.lt.f32.partialorder %v4343, 0.0004427343
      %v4345 = vsel %vm4344, %v4342, %v4339
      %v4346 = vadd.f32 %v3978, 1.0
      %v4347 = vlog2.pop %v4346
      %v4348 = vmul.f32 %v4347, 0.6931472
      %v4349 = vmul.f32 -0.5, %v3978
      %v4350 = vadd.f32 %v4349, 1.0
      %v4351 = vmul.f32 %v4350, %v3978
      %v4352 = vand.u32 2147483647, %v3978
      %vm4353 = vcmp.lt.f32.partialorder %v4352, 0.0004427343
      %v4354 = vsel %vm4353, %v4351, %v4348
      %v4355 = vadd.f32 %v3980, 1.0
      %v4356 = vlog2.pop %v4355
      %v4357 = vmul.f32 %v4356, 0.6931472
      %v4358 = vmul.f32 -0.5, %v3980
      %v4359 = vadd.f32 %v4358, 1.0
      %v4360 = vmul.f32 %v4359, %v3980
      %v4361 = vand.u32 2147483647, %v3980
      %vm4362 = vcmp.lt.f32.partialorder %v4361, 0.0004427343
      %v4363 = vsel %vm4362, %v4360, %v4357
      %v4364 = vadd.f32 %v3982, 1.0
      %v4365 = vlog2.pop %v4364
      %v4366 = vmul.f32 %v4365, 0.6931472
      %v4367 = vmul.f32 -0.5, %v3982
      %v4368 = vadd.f32 %v4367, 1.0
      %v4369 = vmul.f32 %v4368, %v3982
      %v4370 = vand.u32 2147483647, %v3982
      %vm4371 = vcmp.lt.f32.partialorder %v4370, 0.0004427343
      %v4372 = vsel %vm4371, %v4369, %v4366
      %v4373 = vadd.f32 %v3984, 1.0
      %v4374 = vlog2.pop %v4373
      %v4375 = vmul.f32 %v4374, 0.6931472
      %v4376 = vmul.f32 -0.5, %v3984
      %v4377 = vadd.f32 %v4376, 1.0
      %v4378 = vmul.f32 %v4377, %v3984
      %v4379 = vand.u32 2147483647, %v3984
      %vm4380 = vcmp.lt.f32.partialorder %v4379, 0.0004427343
      %v4381 = vsel %vm4380, %v4378, %v4375
      %v4382 = vadd.f32 %v3986, 1.0
      %v4383 = vlog2.pop %v4382
      %v4384 = vmul.f32 %v4383, 0.6931472
      %v4385 = vmul.f32 -0.5, %v3986
      %v4386 = vadd.f32 %v4385, 1.0
      %v4387 = vmul.f32 %v4386, %v3986
      %v4388 = vand.u32 2147483647, %v3986
      %vm4389 = vcmp.lt.f32.partialorder %v4388, 0.0004427343
      %v4390 = vsel %vm4389, %v4387, %v4384
      %v4391 = vadd.f32 %v3988, 1.0
      %v4392 = vlog2.pop %v4391
      %v4393 = vmul.f32 %v4392, 0.6931472
      %v4394 = vmul.f32 -0.5, %v3988
      %v4395 = vadd.f32 %v4394, 1.0
      %v4396 = vmul.f32 %v4395, %v3988
      %v4397 = vand.u32 2147483647, %v3988
      %vm4398 = vcmp.lt.f32.partialorder %v4397, 0.0004427343
      %v4399 = vsel %vm4398, %v4396, %v4393
      %v4400 = vadd.f32 %v3990, 1.0
      %v4401 = vlog2.pop %v4400
      %v4402 = vmul.f32 %v4401, 0.6931472
      %v4403 = vmul.f32 -0.5, %v3990
      %v4404 = vadd.f32 %v4403, 1.0
      %v4405 = vmul.f32 %v4404, %v3990
      %v4406 = vand.u32 2147483647, %v3990
      %vm4407 = vcmp.lt.f32.partialorder %v4406, 0.0004427343
      %v4408 = vsel %vm4407, %v4405, %v4402
      %v4409 = vadd.f32 %v3992, 1.0
      %v4410 = vlog2.pop %v4409
      %v4411 = vmul.f32 %v4410, 0.6931472
      %v4412 = vmul.f32 -0.5, %v3992
      %v4413 = vadd.f32 %v4412, 1.0
      %v4414 = vmul.f32 %v4413, %v3992
      %v4415 = vand.u32 2147483647, %v3992
      %vm4416 = vcmp.lt.f32.partialorder %v4415, 0.0004427343
      %v4417 = vsel %vm4416, %v4414, %v4411
      %v4418 = vadd.f32 %v3994, 1.0
      %v4419 = vlog2.pop %v4418
      %v4420 = vmul.f32 %v4419, 0.6931472
      %v4421 = vmul.f32 -0.5, %v3994
      %v4422 = vadd.f32 %v4421, 1.0
      %v4423 = vmul.f32 %v4422, %v3994
      %v4424 = vand.u32 2147483647, %v3994
      %vm4425 = vcmp.lt.f32.partialorder %v4424, 0.0004427343
      %v4426 = vsel %vm4425, %v4423, %v4420
      %v4427 = vmin.f32 %v3628, 0.0
      %v4428 = vmin.f32 %v3630, 0.0
      %v4429 = vmin.f32 %v3741, 0.0
      %v4430 = vmin.f32 %v3632, 0.0
      %v4431 = vmin.f32 %v3634, 0.0
      %v4432 = vmin.f32 %v3744, 0.0
      %v4433 = vmin.f32 %v3638, 0.0
      %v4434 = vmin.f32 %v3640, 0.0
      %v4435 = vmin.f32 %v3749, 0.0
      %v4436 = vmin.f32 %v3642, 0.0
      %v4437 = vmin.f32 %v3644, 0.0
      %v4438 = vmin.f32 %v3752, 0.0
      %v4439 = vmin.f32 %v3648, 0.0
      %v4440 = vmin.f32 %v3650, 0.0
      %v4441 = vmin.f32 %v3757, 0.0
      %v4442 = vmin.f32 %v3652, 0.0
      %v4443 = vmin.f32 %v3654, 0.0
      %v4444 = vmin.f32 %v3760, 0.0
      %v4445 = vmin.f32 %v3658, 0.0
      %v4446 = vmin.f32 %v3660, 0.0
      %v4447 = vmin.f32 %v3765, 0.0
      %v4448 = vmin.f32 %v3662, 0.0
      %v4449 = vmin.f32 %v3664, 0.0
      %v4450 = vmin.f32 %v3768, 0.0
      %v4451 = vmin.f32 %v3668, 0.0
      %v4452 = vmin.f32 %v3670, 0.0
      %v4453 = vmin.f32 %v3773, 0.0
      %v4454 = vmin.f32 %v3672, 0.0
      %v4455 = vmin.f32 %v3674, 0.0
      %v4456 = vmin.f32 %v3776, 0.0
      %v4457 = vmin.f32 %v3678, 0.0
      %v4458 = vmin.f32 %v3680, 0.0
      %v4459 = vmin.f32 %v3781, 0.0
      %v4460 = vmin.f32 %v3682, 0.0
      %v4461 = vmin.f32 %v3684, 0.0
      %v4462 = vmin.f32 %v3784, 0.0
      %v4463 = vmin.f32 %v3688, 0.0
      %v4464 = vmin.f32 %v3690, 0.0
      %v4465 = vmin.f32 %v3789, 0.0
      %v4466 = vmin.f32 %v3692, 0.0
      %v4467 = vmin.f32 %v3694, 0.0
      %v4468 = vmin.f32 %v3792, 0.0
      %v4469 = vmin.f32 %v3698, 0.0
      %v4470 = vmin.f32 %v3700, 0.0
      %v4471 = vmin.f32 %v3797, 0.0
      %v4472 = vmin.f32 %v3702, 0.0
      %v4473 = vmin.f32 %v3704, 0.0
      %v4474 = vmin.f32 %v3800, 0.0
      %v4475 = vsub.f32 %v4427, %v4003
      %v4476 = vsub.f32 %v4428, %v4012
      %v4477 = vsub.f32 %v4429, %v4021
      %v4478 = vsub.f32 %v4430, %v4030
      %v4479 = vsub.f32 %v4431, %v4039
      %v4480 = vsub.f32 %v4432, %v4048
      %v4481 = vsub.f32 %v4433, %v4057
      %v4482 = vsub.f32 %v4434, %v4066
      %v4483 = vsub.f32 %v4435, %v4075
      %v4484 = vsub.f32 %v4436, %v4084
      %v4485 = vsub.f32 %v4437, %v4093
      %v4486 = vsub.f32 %v4438, %v4102
      %v4487 = vsub.f32 %v4439, %v4111
      %v4488 = vsub.f32 %v4440, %v4120
      %v4489 = vsub.f32 %v4441, %v4129
      %v4490 = vsub.f32 %v4442, %v4138
      %v4491 = vsub.f32 %v4443, %v4147
      %v4492 = vsub.f32 %v4444, %v4156
      %v4493 = vsub.f32 %v4445, %v4165
      %v4494 = vsub.f32 %v4446, %v4174
      %v4495 = vsub.f32 %v4447, %v4183
      %v4496 = vsub.f32 %v4448, %v4192
      %v4497 = vsub.f32 %v4449, %v4201
      %v4498 = vsub.f32 %v4450, %v4210
      %v4499 = vsub.f32 %v4451, %v4219
      %v4500 = vsub.f32 %v4452, %v4228
      %v4501 = vsub.f32 %v4453, %v4237
      %v4502 = vsub.f32 %v4454, %v4246
      %v4503 = vsub.f32 %v4455, %v4255
      %v4504 = vsub.f32 %v4456, %v4264
      %v4505 = vsub.f32 %v4457, %v4273
      %v4506 = vsub.f32 %v4458, %v4282
      %v4507 = vsub.f32 %v4459, %v4291
      %v4508 = vsub.f32 %v4460, %v4300
      %v4509 = vsub.f32 %v4461, %v4309
      %v4510 = vsub.f32 %v4462, %v4318
      %v4511 = vsub.f32 %v4463, %v4327
      %v4512 = vsub.f32 %v4464, %v4336
      %v4513 = vsub.f32 %v4465, %v4345
      %v4514 = vsub.f32 %v4466, %v4354
      %v4515 = vsub.f32 %v4467, %v4363
      %v4516 = vsub.f32 %v4468, %v4372
      %v4517 = vsub.f32 %v4469, %v4381
      %v4518 = vsub.f32 %v4470, %v4390
      %v4519 = vsub.f32 %v4471, %v4399
      %v4520 = vsub.f32 %v4472, %v4408
      %v4521 = vsub.f32 %v4473, %v4417
      %v4522 = vsub.f32 %v4474, %v4426
      %v4523 = vmul.f32 %v1477, %v4475
      %v4524 = vmul.f32 %v1478, %v4476
      %v4525 = vmul.f32 %v1479, %v4477
      %v4526 = vmul.f32 %v1480, %v4478
      %v4527 = vmul.f32 %v1481, %v4479
      %v4528 = vmul.f32 %v1482, %v4480
      %v4529 = vmul.f32 %v1483, %v4481
      %v4530 = vmul.f32 %v1484, %v4482
      %v4531 = vmul.f32 %v1485, %v4483
      %v4532 = vmul.f32 %v1486, %v4484
      %v4533 = vmul.f32 %v1487, %v4485
      %v4534 = vmul.f32 %v1488, %v4486
      %v4535 = vmul.f32 %v1489, %v4487
      %v4536 = vmul.f32 %v1490, %v4488
      %v4537 = vmul.f32 %v1491, %v4489
      %v4538 = vmul.f32 %v1492, %v4490
      %v4539 = vmul.f32 %v1493, %v4491
      %v4540 = vmul.f32 %v1494, %v4492
      %v4541 = vmul.f32 %v1495, %v4493
      %v4542 = vmul.f32 %v1496, %v4494
      %v4543 = vmul.f32 %v1497, %v4495
      %v4544 = vmul.f32 %v1498, %v4496
      %v4545 = vmul.f32 %v1499, %v4497
      %v4546 = vmul.f32 %v1500, %v4498
      %v4547 = vmul.f32 %v1501, %v4499
      %v4548 = vmul.f32 %v1502, %v4500
      %v4549 = vmul.f32 %v1503, %v4501
      %v4550 = vmul.f32 %v1504, %v4502
      %v4551 = vmul.f32 %v1505, %v4503
      %v4552 = vmul.f32 %v1506, %v4504
      %v4553 = vmul.f32 %v1507, %v4505
      %v4554 = vmul.f32 %v1508, %v4506
      %v4555 = vmul.f32 %v1509, %v4507
      %v4556 = vmul.f32 %v1510, %v4508
      %v4557 = vmul.f32 %v1511, %v4509
      %v4558 = vmul.f32 %v1512, %v4510
      %v4559 = vmul.f32 %v1513, %v4511
      %v4560 = vmul.f32 %v1514, %v4512
      %v4561 = vmul.f32 %v1515, %v4513
      %v4562 = vmul.f32 %v1516, %v4514
      %v4563 = vmul.f32 %v1517, %v4515
      %v4564 = vmul.f32 %v1518, %v4516
      %v4565 = vmul.f32 %v1519, %v4517
      %v4566 = vmul.f32 %v1520, %v4518
      %v4567 = vmul.f32 %v1521, %v4519
      %v4568 = vmul.f32 %v1522, %v4520
      %v4569 = vmul.f32 %v1523, %v4521
      %v4570 = vmul.f32 %v1524, %v4522
      %v4571 = vmax.f32 %v3628, 0.0
      %v4572 = vmax.f32 %v3630, 0.0
      %v4573 = vmax.f32 %v3741, 0.0
      %v4574 = vmax.f32 %v3632, 0.0
      %v4575 = vmax.f32 %v3634, 0.0
      %v4576 = vmax.f32 %v3744, 0.0
      %v4577 = vmax.f32 %v3638, 0.0
      %v4578 = vmax.f32 %v3640, 0.0
      %v4579 = vmax.f32 %v3749, 0.0
      %v4580 = vmax.f32 %v3642, 0.0
      %v4581 = vmax.f32 %v3644, 0.0
      %v4582 = vmax.f32 %v3752, 0.0
      %v4583 = vmax.f32 %v3648, 0.0
      %v4584 = vmax.f32 %v3650, 0.0
      %v4585 = vmax.f32 %v3757, 0.0
      %v4586 = vmax.f32 %v3652, 0.0
      %v4587 = vmax.f32 %v3654, 0.0
      %v4588 = vmax.f32 %v3760, 0.0
      %v4589 = vmax.f32 %v3658, 0.0
      %v4590 = vmax.f32 %v3660, 0.0
      %v4591 = vmax.f32 %v3765, 0.0
      %v4592 = vmax.f32 %v3662, 0.0
      %v4593 = vmax.f32 %v3664, 0.0
      %v4594 = vmax.f32 %v3768, 0.0
      %v4595 = vmax.f32 %v3668, 0.0
      %v4596 = vmax.f32 %v3670, 0.0
      %v4597 = vmax.f32 %v3773, 0.0
      %v4598 = vmax.f32 %v3672, 0.0
      %v4599 = vmax.f32 %v3674, 0.0
      %v4600 = vmax.f32 %v3776, 0.0
      %v4601 = vmax.f32 %v3678, 0.0
      %v4602 = vmax.f32 %v3680, 0.0
      %v4603 = vmax.f32 %v3781, 0.0
      %v4604 = vmax.f32 %v3682, 0.0
      %v4605 = vmax.f32 %v3684, 0.0
      %v4606 = vmax.f32 %v3784, 0.0
      %v4607 = vmax.f32 %v3688, 0.0
      %v4608 = vmax.f32 %v3690, 0.0
      %v4609 = vmax.f32 %v3789, 0.0
      %v4610 = vmax.f32 %v3692, 0.0
      %v4611 = vmax.f32 %v3694, 0.0
      %v4612 = vmax.f32 %v3792, 0.0
      %v4613 = vmax.f32 %v3698, 0.0
      %v4614 = vmax.f32 %v3700, 0.0
      %v4615 = vmax.f32 %v3797, 0.0
      %v4616 = vmax.f32 %v3702, 0.0
      %v4617 = vmax.f32 %v3704, 0.0
      %v4618 = vmax.f32 %v3800, 0.0
      %v4619 = vsub.f32 0.0, %v4571
      %v4620 = vsub.f32 0.0, %v4572
      %v4621 = vsub.f32 0.0, %v4573
      %v4622 = vsub.f32 0.0, %v4574
      %v4623 = vsub.f32 0.0, %v4575
      %v4624 = vsub.f32 0.0, %v4576
      %v4625 = vsub.f32 0.0, %v4577
      %v4626 = vsub.f32 0.0, %v4578
      %v4627 = vsub.f32 0.0, %v4579
      %v4628 = vsub.f32 0.0, %v4580
      %v4629 = vsub.f32 0.0, %v4581
      %v4630 = vsub.f32 0.0, %v4582
      %v4631 = vsub.f32 0.0, %v4583
      %v4632 = vsub.f32 0.0, %v4584
      %v4633 = vsub.f32 0.0, %v4585
      %v4634 = vsub.f32 0.0, %v4586
      %v4635 = vsub.f32 0.0, %v4587
      %v4636 = vsub.f32 0.0, %v4588
      %v4637 = vsub.f32 0.0, %v4589
      %v4638 = vsub.f32 0.0, %v4590
      %v4639 = vsub.f32 0.0, %v4591
      %v4640 = vsub.f32 0.0, %v4592
      %v4641 = vsub.f32 0.0, %v4593
      %v4642 = vsub.f32 0.0, %v4594
      %v4643 = vsub.f32 0.0, %v4595
      %v4644 = vsub.f32 0.0, %v4596
      %v4645 = vsub.f32 0.0, %v4597
      %v4646 = vsub.f32 0.0, %v4598
      %v4647 = vsub.f32 0.0, %v4599
      %v4648 = vsub.f32 0.0, %v4600
      %v4649 = vsub.f32 0.0, %v4601
      %v4650 = vsub.f32 0.0, %v4602
      %v4651 = vsub.f32 0.0, %v4603
      %v4652 = vsub.f32 0.0, %v4604
      %v4653 = vsub.f32 0.0, %v4605
      %v4654 = vsub.f32 0.0, %v4606
      %v4655 = vsub.f32 0.0, %v4607
      %v4656 = vsub.f32 0.0, %v4608
      %v4657 = vsub.f32 0.0, %v4609
      %v4658 = vsub.f32 0.0, %v4610
      %v4659 = vsub.f32 0.0, %v4611
      %v4660 = vsub.f32 0.0, %v4612
      %v4661 = vsub.f32 0.0, %v4613
      %v4662 = vsub.f32 0.0, %v4614
      %v4663 = vsub.f32 0.0, %v4615
      %v4664 = vsub.f32 0.0, %v4616
      %v4665 = vsub.f32 0.0, %v4617
      %v4666 = vsub.f32 0.0, %v4618
      %v4667 = vsub.f32 %v4619, %v4003
      %v4668 = vsub.f32 %v4620, %v4012
      %v4669 = vsub.f32 %v4621, %v4021
      %v4670 = vsub.f32 %v4622, %v4030
      %v4671 = vsub.f32 %v4623, %v4039
      %v4672 = vsub.f32 %v4624, %v4048
      %v4673 = vsub.f32 %v4625, %v4057
      %v4674 = vsub.f32 %v4626, %v4066
      %v4675 = vsub.f32 %v4627, %v4075
      %v4676 = vsub.f32 %v4628, %v4084
      %v4677 = vsub.f32 %v4629, %v4093
      %v4678 = vsub.f32 %v4630, %v4102
      %v4679 = vsub.f32 %v4631, %v4111
      %v4680 = vsub.f32 %v4632, %v4120
      %v4681 = vsub.f32 %v4633, %v4129
      %v4682 = vsub.f32 %v4634, %v4138
      %v4683 = vsub.f32 %v4635, %v4147
      %v4684 = vsub.f32 %v4636, %v4156
      %v4685 = vsub.f32 %v4637, %v4165
      %v4686 = vsub.f32 %v4638, %v4174
      %v4687 = vsub.f32 %v4639, %v4183
      %v4688 = vsub.f32 %v4640, %v4192
      %v4689 = vsub.f32 %v4641, %v4201
      %v4690 = vsub.f32 %v4642, %v4210
      %v4691 = vsub.f32 %v4643, %v4219
      %v4692 = vsub.f32 %v4644, %v4228
      %v4693 = vsub.f32 %v4645, %v4237
      %v4694 = vsub.f32 %v4646, %v4246
      %v4695 = vsub.f32 %v4647, %v4255
      %v4696 = vsub.f32 %v4648, %v4264
      %v4697 = vsub.f32 %v4649, %v4273
      %v4698 = vsub.f32 %v4650, %v4282
      %v4699 = vsub.f32 %v4651, %v4291
      %v4700 = vsub.f32 %v4652, %v4300
      %v4701 = vsub.f32 %v4653, %v4309
      %v4702 = vsub.f32 %v4654, %v4318
      %v4703 = vsub.f32 %v4655, %v4327
      %v4704 = vsub.f32 %v4656, %v4336
      %v4705 = vsub.f32 %v4657, %v4345
      %v4706 = vsub.f32 %v4658, %v4354
      %v4707 = vsub.f32 %v4659, %v4363
      %v4708 = vsub.f32 %v4660, %v4372
      %v4709 = vsub.f32 %v4661, %v4381
      %v4710 = vsub.f32 %v4662, %v4390
      %v4711 = vsub.f32 %v4663, %v4399
      %v4712 = vsub.f32 %v4664, %v4408
      %v4713 = vsub.f32 %v4665, %v4417
      %v4714 = vsub.f32 %v4666, %v4426
      %v4715 = vmul.f32 %v1573, %v4667
      %v4716 = vmul.f32 %v1574, %v4668
      %v4717 = vmul.f32 %v1575, %v4669
      %v4718 = vmul.f32 %v1576, %v4670
      %v4719 = vmul.f32 %v1577, %v4671
      %v4720 = vmul.f32 %v1578, %v4672
      %v4721 = vmul.f32 %v1579, %v4673
      %v4722 = vmul.f32 %v1580, %v4674
      %v4723 = vmul.f32 %v1581, %v4675
      %v4724 = vmul.f32 %v1582, %v4676
      %v4725 = vmul.f32 %v1583, %v4677
      %v4726 = vmul.f32 %v1584, %v4678
      %v4727 = vmul.f32 %v1585, %v4679
      %v4728 = vmul.f32 %v1586, %v4680
      %v4729 = vmul.f32 %v1587, %v4681
      %v4730 = vmul.f32 %v1588, %v4682
      %v4731 = vmul.f32 %v1589, %v4683
      %v4732 = vmul.f32 %v1590, %v4684
      %v4733 = vmul.f32 %v1591, %v4685
      %v4734 = vmul.f32 %v1592, %v4686
      %v4735 = vmul.f32 %v1593, %v4687
      %v4736 = vmul.f32 %v1594, %v4688
      %v4737 = vmul.f32 %v1595, %v4689
      %v4738 = vmul.f32 %v1596, %v4690
      %v4739 = vmul.f32 %v1597, %v4691
      %v4740 = vmul.f32 %v1598, %v4692
      %v4741 = vmul.f32 %v1599, %v4693
      %v4742 = vmul.f32 %v1600, %v4694
      %v4743 = vmul.f32 %v1601, %v4695
      %v4744 = vmul.f32 %v1602, %v4696
      %v4745 = vmul.f32 %v1603, %v4697
      %v4746 = vmul.f32 %v1604, %v4698
      %v4747 = vmul.f32 %v1605, %v4699
      %v4748 = vmul.f32 %v1606, %v4700
      %v4749 = vmul.f32 %v1607, %v4701
      %v4750 = vmul.f32 %v1608, %v4702
      %v4751 = vmul.f32 %v1609, %v4703
      %v4752 = vmul.f32 %v1610, %v4704
      %v4753 = vmul.f32 %v1611, %v4705
      %v4754 = vmul.f32 %v1612, %v4706
      %v4755 = vmul.f32 %v1613, %v4707
      %v4756 = vmul.f32 %v1614, %v4708
      %v4757 = vmul.f32 %v1615, %v4709
      %v4758 = vmul.f32 %v1616, %v4710
      %v4759 = vmul.f32 %v1617, %v4711
      %v4760 = vmul.f32 %v1618, %v4712
      %v4761 = vmul.f32 %v1619, %v4713
      %v4762 = vmul.f32 %v1620, %v4714
      %v4763 = vadd.f32 %v4523, %v4715
      %v4764 = vadd.f32 %v4524, %v4716
      %v4765 = vadd.f32 %v4525, %v4717
      %v4766 = vadd.f32 %v4526, %v4718
      %v4767 = vadd.f32 %v4527, %v4719
      %v4768 = vadd.f32 %v4528, %v4720
      %v4769 = vadd.f32 %v4529, %v4721
      %v4770 = vadd.f32 %v4530, %v4722
      %v4771 = vadd.f32 %v4531, %v4723
      %v4772 = vadd.f32 %v4532, %v4724
      %v4773 = vadd.f32 %v4533, %v4725
      %v4774 = vadd.f32 %v4534, %v4726
      %v4775 = vadd.f32 %v4535, %v4727
      %v4776 = vadd.f32 %v4536, %v4728
      %v4777 = vadd.f32 %v4537, %v4729
      %v4778 = vadd.f32 %v4538, %v4730
      %v4779 = vadd.f32 %v4539, %v4731
      %v4780 = vadd.f32 %v4540, %v4732
      %v4781 = vadd.f32 %v4541, %v4733
      %v4782 = vadd.f32 %v4542, %v4734
      %v4783 = vadd.f32 %v4543, %v4735
      %v4784 = vadd.f32 %v4544, %v4736
      %v4785 = vadd.f32 %v4545, %v4737
      %v4786 = vadd.f32 %v4546, %v4738
      %v4787 = vadd.f32 %v4547, %v4739
      %v4788 = vadd.f32 %v4548, %v4740
      %v4789 = vadd.f32 %v4549, %v4741
      %v4790 = vadd.f32 %v4550, %v4742
      %v4791 = vadd.f32 %v4551, %v4743
      %v4792 = vadd.f32 %v4552, %v4744
      %v4793 = vadd.f32 %v4553, %v4745
      %v4794 = vadd.f32 %v4554, %v4746
      %v4795 = vadd.f32 %v4555, %v4747
      %v4796 = vadd.f32 %v4556, %v4748
      %v4797 = vadd.f32 %v4557, %v4749
      %v4798 = vadd.f32 %v4558, %v4750
      %v4799 = vadd.f32 %v4559, %v4751
      %v4800 = vadd.f32 %v4560, %v4752
      %v4801 = vadd.f32 %v4561, %v4753
      %v4802 = vadd.f32 %v4562, %v4754
      %v4803 = vadd.f32 %v4563, %v4755
      %v4804 = vadd.f32 %v4564, %v4756
      %v4805 = vadd.f32 %v4565, %v4757
      %v4806 = vadd.f32 %v4566, %v4758
      %v4807 = vadd.f32 %v4567, %v4759
      %v4808 = vadd.f32 %v4568, %v4760
      %v4809 = vadd.f32 %v4569, %v4761
      %v4810 = vadd.f32 %v4570, %v4762
      %v4811 = vadd.f32 %v4763, %v4764
      %v4812 = vadd.f32 %v4811, %v4765
      %v4813 = vadd.f32 %v4812, %v4766
      %v4814 = vadd.f32 %v4813, %v4767
      %v4815 = vadd.f32 %v4814, %v4768
      %v4816 = vadd.f32 %v4815, %v4769
      %v4817 = vadd.f32 %v4816, %v4770
      %v4818 = vadd.f32 %v4817, %v4771
      %v4819 = vadd.f32 %v4818, %v4772
      %v4820 = vadd.f32 %v4819, %v4773
      %v4821 = vadd.f32 %v4820, %v4774
      %v4822 = vadd.f32 %v4821, %v4775
      %v4823 = vadd.f32 %v4822, %v4776
      %v4824 = vadd.f32 %v4823, %v4777
      %v4825 = vadd.f32 %v4824, %v4778
      %v4826 = vadd.f32 %v4825, %v4779
      %v4827 = vadd.f32 %v4826, %v4780
      %v4828 = vadd.f32 %v4827, %v4781
      %v4829 = vadd.f32 %v4828, %v4782
      %v4830 = vadd.f32 %v4829, %v4783
      %v4831 = vadd.f32 %v4830, %v4784
      %v4832 = vadd.f32 %v4831, %v4785
      %v4833 = vadd.f32 %v4832, %v4786
      %v4834 = vadd.f32 %v4833, %v4787
      %v4835 = vadd.f32 %v4834, %v4788
      %v4836 = vadd.f32 %v4835, %v4789
      %v4837 = vadd.f32 %v4836, %v4790
      %v4838 = vadd.f32 %v4837, %v4791
      %v4839 = vadd.f32 %v4838, %v4792
      %v4840 = vadd.f32 %v4839, %v4793
      %v4841 = vadd.f32 %v4840, %v4794
      %v4842 = vadd.f32 %v4841, %v4795
      %v4843 = vadd.f32 %v4842, %v4796
      %v4844 = vadd.f32 %v4843, %v4797
      %v4845 = vadd.f32 %v4844, %v4798
      %v4846 = vadd.f32 %v4845, %v4799
      %v4847 = vadd.f32 %v4846, %v4800
      %v4848 = vadd.f32 %v4847, %v4801
      %v4849 = vadd.f32 %v4848, %v4802
      %v4850 = vadd.f32 %v4849, %v4803
      %v4851 = vadd.f32 %v4850, %v4804
      %v4852 = vadd.f32 %v4851, %v4805
      %v4853 = vadd.f32 %v4852, %v4806
      %v4854 = vadd.f32 %v4853, %v4807
      %v4855 = vadd.f32 %v4854, %v4808
      %v4856 = vadd.f32 %v4855, %v4809
      %v4857 = vadd.f32 %v4856, %v4810
      %4858 = vadd.xlane.f32.xlu0 %v4857
      %v4859 = vpop.xlane.xlu0 %4858
      %v4860 = vrot.slane %v4859, 4
      %v4861 = vadd.f32 %v4859, %v4860
      %v4862 = vrot.slane %v4861, 2
      %v4863 = vadd.f32 %v4861, %v4862
      %v4864 = vrot.slane %v4863, 1
      %v4865 = vadd.f32 %v4863, %v4864
      %s4866 = vtos %v4865
      %v4867 = vsel %vm1093, %v3628, -1e+30
      %v4868 = vsel %vm1094, %v3630, -1e+30
      %v4869 = vsel %vm1095, %v3741, -1e+30
      %v4870 = vsel %vm1096, %v3632, -1e+30
      %v4871 = vsel %vm1097, %v3634, -1e+30
      %v4872 = vsel %vm1098, %v3744, -1e+30
      %v4873 = vsel %vm1099, %v3638, -1e+30
      %v4874 = vsel %vm1100, %v3640, -1e+30
      %v4875 = vsel %vm1101, %v3749, -1e+30
      %v4876 = vsel %vm1102, %v3642, -1e+30
      %v4877 = vsel %vm1103, %v3644, -1e+30
      %v4878 = vsel %vm1104, %v3752, -1e+30
      %v4879 = vsel %vm1105, %v3648, -1e+30
      %v4880 = vsel %vm1106, %v3650, -1e+30
      %v4881 = vsel %vm1107, %v3757, -1e+30
      %v4882 = vsel %vm1108, %v3652, -1e+30
      %v4883 = vsel %vm1109, %v3654, -1e+30
      %v4884 = vsel %vm1110, %v3760, -1e+30
      %v4885 = vsel %vm1111, %v3658, -1e+30
      %v4886 = vsel %vm1112, %v3660, -1e+30
      %v4887 = vsel %vm1113, %v3765, -1e+30
      %v4888 = vsel %vm1114, %v3662, -1e+30
      %v4889 = vsel %vm1115, %v3664, -1e+30
      %v4890 = vsel %vm1116, %v3768, -1e+30
      %v4891 = vsel %vm1117, %v3668, -1e+30
      %v4892 = vsel %vm1118, %v3670, -1e+30
      %v4893 = vsel %vm1119, %v3773, -1e+30
      %v4894 = vsel %vm1120, %v3672, -1e+30
      %v4895 = vsel %vm1121, %v3674, -1e+30
      %v4896 = vsel %vm1122, %v3776, -1e+30
      %v4897 = vsel %vm1123, %v3678, -1e+30
      %v4898 = vsel %vm1124, %v3680, -1e+30
      %v4899 = vsel %vm1125, %v3781, -1e+30
      %v4900 = vsel %vm1126, %v3682, -1e+30
      %v4901 = vsel %vm1127, %v3684, -1e+30
      %v4902 = vsel %vm1128, %v3784, -1e+30
      %v4903 = vsel %vm1129, %v3688, -1e+30
      %v4904 = vsel %vm1130, %v3690, -1e+30
      %v4905 = vsel %vm1131, %v3789, -1e+30
      %v4906 = vsel %vm1132, %v3692, -1e+30
      %v4907 = vsel %vm1133, %v3694, -1e+30
      %v4908 = vsel %vm1134, %v3792, -1e+30
      %v4909 = vsel %vm1135, %v3698, -1e+30
      %v4910 = vsel %vm1136, %v3700, -1e+30
      %v4911 = vsel %vm1137, %v3797, -1e+30
      %v4912 = vsel %vm1138, %v3702, -1e+30
      %v4913 = vsel %vm1139, %v3704, -1e+30
      %v4914 = vsel %vm1140, %v3800, -1e+30
      %v4915 = vmax.f32 %v4867, %v4868
      %v4916 = vmax.f32 %v4915, %v4869
      %4917 = vmax.xlane.f32.xlu0 %v4916
      %v4918 = vpop.xlane.xlu0 %4917
      %v4919 = vmax.f32 %v4870, %v4871
      %v4920 = vmax.f32 %v4919, %v4872
      %4921 = vmax.xlane.f32.xlu0 %v4920
      %v4922 = vpop.xlane.xlu0 %4921
      %v4923 = vmax.f32 %v4873, %v4874
      %v4924 = vmax.f32 %v4923, %v4875
      %4925 = vmax.xlane.f32.xlu0 %v4924
      %v4926 = vpop.xlane.xlu0 %4925
      %v4927 = vmax.f32 %v4876, %v4877
      %v4928 = vmax.f32 %v4927, %v4878
      %4929 = vmax.xlane.f32.xlu0 %v4928
      %v4930 = vpop.xlane.xlu0 %4929
      %v4931 = vmax.f32 %v4879, %v4880
      %v4932 = vmax.f32 %v4931, %v4881
      %4933 = vmax.xlane.f32.xlu0 %v4932
      %v4934 = vpop.xlane.xlu0 %4933
      %v4935 = vmax.f32 %v4882, %v4883
      %v4936 = vmax.f32 %v4935, %v4884
      %4937 = vmax.xlane.f32.xlu0 %v4936
      %v4938 = vpop.xlane.xlu0 %4937
      %v4939 = vmax.f32 %v4885, %v4886
      %v4940 = vmax.f32 %v4939, %v4887
      %4941 = vmax.xlane.f32.xlu0 %v4940
      %v4942 = vpop.xlane.xlu0 %4941
      %v4943 = vmax.f32 %v4888, %v4889
      %v4944 = vmax.f32 %v4943, %v4890
      %4945 = vmax.xlane.f32.xlu0 %v4944
      %v4946 = vpop.xlane.xlu0 %4945
      %v4947 = vmax.f32 %v4891, %v4892
      %v4948 = vmax.f32 %v4947, %v4893
      %4949 = vmax.xlane.f32.xlu0 %v4948
      %v4950 = vpop.xlane.xlu0 %4949
      %v4951 = vmax.f32 %v4894, %v4895
      %v4952 = vmax.f32 %v4951, %v4896
      %4953 = vmax.xlane.f32.xlu0 %v4952
      %v4954 = vpop.xlane.xlu0 %4953
      %v4955 = vmax.f32 %v4897, %v4898
      %v4956 = vmax.f32 %v4955, %v4899
      %4957 = vmax.xlane.f32.xlu0 %v4956
      %v4958 = vpop.xlane.xlu0 %4957
      %v4959 = vmax.f32 %v4900, %v4901
      %v4960 = vmax.f32 %v4959, %v4902
      %4961 = vmax.xlane.f32.xlu0 %v4960
      %v4962 = vpop.xlane.xlu0 %4961
      %v4963 = vmax.f32 %v4903, %v4904
      %v4964 = vmax.f32 %v4963, %v4905
      %4965 = vmax.xlane.f32.xlu0 %v4964
      %v4966 = vpop.xlane.xlu0 %4965
      %v4967 = vmax.f32 %v4906, %v4907
      %v4968 = vmax.f32 %v4967, %v4908
      %4969 = vmax.xlane.f32.xlu0 %v4968
      %v4970 = vpop.xlane.xlu0 %4969
      %v4971 = vmax.f32 %v4909, %v4910
      %v4972 = vmax.f32 %v4971, %v4911
      %4973 = vmax.xlane.f32.xlu0 %v4972
      %v4974 = vpop.xlane.xlu0 %4973
      %v4975 = vmax.f32 %v4912, %v4913
      %v4976 = vmax.f32 %v4975, %v4914
      %4977 = vmax.xlane.f32.xlu0 %v4976
      %v4978 = vpop.xlane.xlu0 %4977
      %v4979 = vsel %vm1381, %v3628, -1e+30
      %v4980 = vsel %vm1382, %v3630, -1e+30
      %v4981 = vsel %vm1383, %v3741, -1e+30
      %v4982 = vsel %vm1384, %v3632, -1e+30
      %v4983 = vsel %vm1385, %v3634, -1e+30
      %v4984 = vsel %vm1386, %v3744, -1e+30
      %v4985 = vsel %vm1387, %v3638, -1e+30
      %v4986 = vsel %vm1388, %v3640, -1e+30
      %v4987 = vsel %vm1389, %v3749, -1e+30
      %v4988 = vsel %vm1390, %v3642, -1e+30
      %v4989 = vsel %vm1391, %v3644, -1e+30
      %v4990 = vsel %vm1392, %v3752, -1e+30
      %v4991 = vsel %vm1393, %v3648, -1e+30
      %v4992 = vsel %vm1394, %v3650, -1e+30
      %v4993 = vsel %vm1395, %v3757, -1e+30
      %v4994 = vsel %vm1396, %v3652, -1e+30
      %v4995 = vsel %vm1397, %v3654, -1e+30
      %v4996 = vsel %vm1398, %v3760, -1e+30
      %v4997 = vsel %vm1399, %v3658, -1e+30
      %v4998 = vsel %vm1400, %v3660, -1e+30
      %v4999 = vsel %vm1401, %v3765, -1e+30
      %v5000 = vsel %vm1402, %v3662, -1e+30
      %v5001 = vsel %vm1403, %v3664, -1e+30
      %v5002 = vsel %vm1404, %v3768, -1e+30
      %v5003 = vsel %vm1405, %v3668, -1e+30
      %v5004 = vsel %vm1406, %v3670, -1e+30
      %v5005 = vsel %vm1407, %v3773, -1e+30
      %v5006 = vsel %vm1408, %v3672, -1e+30
      %v5007 = vsel %vm1409, %v3674, -1e+30
      %v5008 = vsel %vm1410, %v3776, -1e+30
      %v5009 = vsel %vm1411, %v3678, -1e+30
      %v5010 = vsel %vm1412, %v3680, -1e+30
      %v5011 = vsel %vm1413, %v3781, -1e+30
      %v5012 = vsel %vm1414, %v3682, -1e+30
      %v5013 = vsel %vm1415, %v3684, -1e+30
      %v5014 = vsel %vm1416, %v3784, -1e+30
      %v5015 = vsel %vm1417, %v3688, -1e+30
      %v5016 = vsel %vm1418, %v3690, -1e+30
      %v5017 = vsel %vm1419, %v3789, -1e+30
      %v5018 = vsel %vm1420, %v3692, -1e+30
      %v5019 = vsel %vm1421, %v3694, -1e+30
      %v5020 = vsel %vm1422, %v3792, -1e+30
      %v5021 = vsel %vm1423, %v3698, -1e+30
      %v5022 = vsel %vm1424, %v3700, -1e+30
      %v5023 = vsel %vm1425, %v3797, -1e+30
      %v5024 = vsel %vm1426, %v3702, -1e+30
      %v5025 = vsel %vm1427, %v3704, -1e+30
      %v5026 = vsel %vm1428, %v3800, -1e+30
      %v5027 = vmax.f32 %v4979, %v4980
      %v5028 = vmax.f32 %v5027, %v4981
      %5029 = vmax.xlane.f32.xlu0 %v5028
      %v5030 = vpop.xlane.xlu0 %5029
      %v5031 = vmax.f32 %v4982, %v4983
      %v5032 = vmax.f32 %v5031, %v4984
      %5033 = vmax.xlane.f32.xlu0 %v5032
      %v5034 = vpop.xlane.xlu0 %5033
      %v5035 = vmax.f32 %v4985, %v4986
      %v5036 = vmax.f32 %v5035, %v4987
      %5037 = vmax.xlane.f32.xlu0 %v5036
      %v5038 = vpop.xlane.xlu0 %5037
      %v5039 = vmax.f32 %v4988, %v4989
      %v5040 = vmax.f32 %v5039, %v4990
      %5041 = vmax.xlane.f32.xlu0 %v5040
      %v5042 = vpop.xlane.xlu0 %5041
      %v5043 = vmax.f32 %v4991, %v4992
      %v5044 = vmax.f32 %v5043, %v4993
      %5045 = vmax.xlane.f32.xlu0 %v5044
      %v5046 = vpop.xlane.xlu0 %5045
      %v5047 = vmax.f32 %v4994, %v4995
      %v5048 = vmax.f32 %v5047, %v4996
      %5049 = vmax.xlane.f32.xlu0 %v5048
      %v5050 = vpop.xlane.xlu0 %5049
      %v5051 = vmax.f32 %v4997, %v4998
      %v5052 = vmax.f32 %v5051, %v4999
      %5053 = vmax.xlane.f32.xlu0 %v5052
      %v5054 = vpop.xlane.xlu0 %5053
      %v5055 = vmax.f32 %v5000, %v5001
      %v5056 = vmax.f32 %v5055, %v5002
      %5057 = vmax.xlane.f32.xlu0 %v5056
      %v5058 = vpop.xlane.xlu0 %5057
      %v5059 = vmax.f32 %v5003, %v5004
      %v5060 = vmax.f32 %v5059, %v5005
      %5061 = vmax.xlane.f32.xlu0 %v5060
      %v5062 = vpop.xlane.xlu0 %5061
      %v5063 = vmax.f32 %v5006, %v5007
      %v5064 = vmax.f32 %v5063, %v5008
      %5065 = vmax.xlane.f32.xlu0 %v5064
      %v5066 = vpop.xlane.xlu0 %5065
      %v5067 = vmax.f32 %v5009, %v5010
      %v5068 = vmax.f32 %v5067, %v5011
      %5069 = vmax.xlane.f32.xlu0 %v5068
      %v5070 = vpop.xlane.xlu0 %5069
      %v5071 = vmax.f32 %v5012, %v5013
      %v5072 = vmax.f32 %v5071, %v5014
      %5073 = vmax.xlane.f32.xlu0 %v5072
      %v5074 = vpop.xlane.xlu0 %5073
      %v5075 = vmax.f32 %v5015, %v5016
      %v5076 = vmax.f32 %v5075, %v5017
      %5077 = vmax.xlane.f32.xlu0 %v5076
      %v5078 = vpop.xlane.xlu0 %5077
      %v5079 = vmax.f32 %v5018, %v5019
      %v5080 = vmax.f32 %v5079, %v5020
      %5081 = vmax.xlane.f32.xlu0 %v5080
      %v5082 = vpop.xlane.xlu0 %5081
      %v5083 = vmax.f32 %v5021, %v5022
      %v5084 = vmax.f32 %v5083, %v5023
      %5085 = vmax.xlane.f32.xlu0 %v5084
      %v5086 = vpop.xlane.xlu0 %5085
      %v5087 = vmax.f32 %v5024, %v5025
      %v5088 = vmax.f32 %v5087, %v5026
      %5089 = vmax.xlane.f32.xlu0 %v5088
      %v5090 = vpop.xlane.xlu0 %5089
      %vm5091 = vcmp.ge.f32.partialorder %v4918, %v5030
      %vm5092 = vcmp.ge.f32.partialorder %v4922, %v5034
      %vm5093 = vcmp.ge.f32.partialorder %v4926, %v5038
      %vm5094 = vcmp.ge.f32.partialorder %v4930, %v5042
      %vm5095 = vcmp.ge.f32.partialorder %v4934, %v5046
      %vm5096 = vcmp.ge.f32.partialorder %v4938, %v5050
      %vm5097 = vcmp.ge.f32.partialorder %v4942, %v5054
      %vm5098 = vcmp.ge.f32.partialorder %v4946, %v5058
      %vm5099 = vcmp.ge.f32.partialorder %v4950, %v5062
      %vm5100 = vcmp.ge.f32.partialorder %v4954, %v5066
      %vm5101 = vcmp.ge.f32.partialorder %v4958, %v5070
      %vm5102 = vcmp.ge.f32.partialorder %v4962, %v5074
      %vm5103 = vcmp.ge.f32.partialorder %v4966, %v5078
      %vm5104 = vcmp.ge.f32.partialorder %v4970, %v5082
      %vm5105 = vcmp.ge.f32.partialorder %v4974, %v5086
      %vm5106 = vcmp.ge.f32.partialorder %v4978, %v5090
      %vm5107 = vmand %vm831, %vm5091
      %vm5108 = vmand %vm832, %vm5092
      %vm5109 = vmand %vm833, %vm5093
      %vm5110 = vmand %vm834, %vm5094
      %vm5111 = vmand %vm835, %vm5095
      %vm5112 = vmand %vm836, %vm5096
      %vm5113 = vmand %vm837, %vm5097
      %vm5114 = vmand %vm838, %vm5098
      %vm5115 = vmand %vm839, %vm5099
      %vm5116 = vmand %vm840, %vm5100
      %vm5117 = vmand %vm841, %vm5101
      %vm5118 = vmand %vm842, %vm5102
      %vm5119 = vmand %vm843, %vm5103
      %vm5120 = vmand %vm844, %vm5104
      %vm5121 = vmand %vm845, %vm5105
      %vm5122 = vmand %vm846, %vm5106
      %v5123 = vsel %vm5107, 1.0, 0.0
      %v5124 = vsel %vm5108, 1.0, 0.0
      %v5125 = vsel %vm5109, 1.0, 0.0
      %v5126 = vsel %vm5110, 1.0, 0.0
      %v5127 = vsel %vm5111, 1.0, 0.0
      %v5128 = vsel %vm5112, 1.0, 0.0
      %v5129 = vsel %vm5113, 1.0, 0.0
      %v5130 = vsel %vm5114, 1.0, 0.0
      %v5131 = vsel %vm5115, 1.0, 0.0
      %v5132 = vsel %vm5116, 1.0, 0.0
      %v5133 = vsel %vm5117, 1.0, 0.0
      %v5134 = vsel %vm5118, 1.0, 0.0
      %v5135 = vsel %vm5119, 1.0, 0.0
      %v5136 = vsel %vm5120, 1.0, 0.0
      %v5137 = vsel %vm5121, 1.0, 0.0
      %v5138 = vsel %vm5122, 1.0, 0.0
      %v5139 = vsel %vm3552, %v5123, 0.0
      %v5140 = vsel %vm3552, %v5124, 0.0
      %v5141 = vadd.f32 %v5139, %v5140
      %v5142 = vsel %vm3552, %v5125, 0.0
      %v5143 = vadd.f32 %v5141, %v5142
      %v5144 = vsel %vm3552, %v5126, 0.0
      %v5145 = vadd.f32 %v5143, %v5144
      %v5146 = vsel %vm3552, %v5127, 0.0
      %v5147 = vadd.f32 %v5145, %v5146
      %v5148 = vsel %vm3552, %v5128, 0.0
      %v5149 = vadd.f32 %v5147, %v5148
      %v5150 = vsel %vm3552, %v5129, 0.0
      %v5151 = vadd.f32 %v5149, %v5150
      %v5152 = vsel %vm3552, %v5130, 0.0
      %v5153 = vadd.f32 %v5151, %v5152
      %v5154 = vsel %vm3552, %v5131, 0.0
      %v5155 = vadd.f32 %v5153, %v5154
      %v5156 = vsel %vm3552, %v5132, 0.0
      %v5157 = vadd.f32 %v5155, %v5156
      %v5158 = vsel %vm3552, %v5133, 0.0
      %v5159 = vadd.f32 %v5157, %v5158
      %v5160 = vsel %vm3552, %v5134, 0.0
      %v5161 = vadd.f32 %v5159, %v5160
      %v5162 = vsel %vm3552, %v5135, 0.0
      %v5163 = vadd.f32 %v5161, %v5162
      %v5164 = vsel %vm3552, %v5136, 0.0
      %v5165 = vadd.f32 %v5163, %v5164
      %v5166 = vsel %vm3552, %v5137, 0.0
      %v5167 = vadd.f32 %v5165, %v5166
      %v5168 = vsel %vm3552, %v5138, 0.0
      %v5169 = vadd.f32 %v5167, %v5168
      %5170 = vadd.xlane.f32.xlu0 %v5169
      %v5171 = vpop.xlane.xlu0 %5170
      %v5172 = vrot.slane %v5171, 4
      %v5173 = vadd.f32 %v5171, %v5172
      %v5174 = vrot.slane %v5173, 2
      %v5175 = vadd.f32 %v5173, %v5174
      %v5176 = vrot.slane %v5175, 1
      %v5177 = vadd.f32 %v5175, %v5176
      %s5178 = vtos %v5177
      %s5179 = sadd.f32 %s3279, %s4866
      %s5180 = ssub.f32 0.0, %s5179
      %v5181 = vstv %s5180
      %5182 = vst [vmem:[%s728] sm:$0xff] %v5181
      %s5183 = sadd.f32 %s3592, %s5178
      %v5184 = vstv %s5183
      %5185 = vst [vmem:[%s735] sm:$0xff] %v5184
      %p5186 = scmp.lt.s32.totalorder %s25, 1
      %s5187 = scalar_select %p5186, %s25, 1
      %p5188 = scmp.lt.s32.totalorder %s26, 0
      %s5189 = scalar_select %p5188, %s26, 0
      %s5190 = sadd.s32 %s5189, %s5187
      %s5191 = smul.addr %s5190, 8
      %s5192 = scalar_lea.vmem %s7, %s5191
      %p5193 = scmp.lt.s32.totalorder %s25, 1
      %s5194 = scalar_select %p5193, %s25, 1
      %p5195 = scmp.lt.s32.totalorder %s26, 0
      %s5196 = scalar_select %p5195, %s26, 0
      %s5197 = sadd.s32 %s5196, %s5194
      %s5198 = smul.addr %s5197, 8
      %s5199 = scalar_lea.vmem %s8, %s5198
      // Predicated region
      $region49: #{local_siglip_loss.1} parent=47 // pred_check
        %p5200 = pneg %p298
      $region50: #{local_siglip_loss.1} parent=47 // pred_check_branch
        %5202 = sbr.rel (%p5200) target = $region52
      $region51: #{local_siglip_loss.1} parent=47 // pred_region
        _
      $region52: #{local_siglip_loss.1} parent=47 // pred_fallthru
        _
      // Predicated region
      $region53: #{local_siglip_loss.1} parent=47 // pred_check
        %p5203 = pneg %p326
      $region54: #{local_siglip_loss.1} parent=47 // pred_check_branch
        %5205 = sbr.rel (%p5203) target = $region56
      $region55: #{local_siglip_loss.1} parent=47 // pred_region
        _
      $region56: #{local_siglip_loss.1} parent=47 // pred_fallthru
        _
    $region48: #{local_siglip_loss.1} parent=5 // pred_fallthru
      _
    %p5206 = scmp.le.s32.totalorder 2, %s16
    // Predicated region
    $region57: #{local_siglip_loss.1} parent=5 // pred_check
      %p5207 = pneg %p5206
    $region58: #{local_siglip_loss.1} parent=5 // pred_check_branch
      %5209 = sbr.rel (%p5207) target = $region60
    $region59: #{local_siglip_loss.1} parent=5 // pred_region
      %s5210 = ssub.s32 %s16, 2
      // Predicated region
      $region61: #{local_siglip_loss.1} parent=59 // pred_check
        %p5211 = pneg %p304
      $region62: #{local_siglip_loss.1} parent=59 // pred_check_branch
        %5213 = sbr.rel (%p5211) target = $region64
      $region63: #{local_siglip_loss.1} parent=59 // pred_region
        %p5214 = scmp.lt.s32.totalorder %s27, 1
        %s5215 = scalar_select %p5214, %s27, 1
        %p5216 = scmp.lt.s32.totalorder %s28, 0
        %s5217 = scalar_select %p5216, %s28, 0
        %s5218 = sadd.s32 %s5217, %s5215
        %s5219 = smul.addr %s5218, 8
        %s5220 = scalar_lea.vmem %s7, %s5219
      $region64: #{local_siglip_loss.1} parent=59 // pred_fallthru
        _
      // Predicated region
      $region65: #{local_siglip_loss.1} parent=59 // pred_check
        %p5221 = pneg %p332
      $region66: #{local_siglip_loss.1} parent=59 // pred_check_branch
        %5223 = sbr.rel (%p5221) target = $region68
      $region67: #{local_siglip_loss.1} parent=59 // pred_region
        %p5224 = scmp.lt.s32.totalorder %s27, 1
        %s5225 = scalar_select %p5224, %s27, 1
        %p5226 = scmp.lt.s32.totalorder %s28, 0
        %s5227 = scalar_select %p5226, %s28, 0
        %s5228 = sadd.s32 %s5227, %s5225
        %s5229 = smul.addr %s5228, 8
        %s5230 = scalar_lea.vmem %s8, %s5229
      $region68: #{local_siglip_loss.1} parent=59 // pred_fallthru
        _
    $region60: #{local_siglip_loss.1} parent=5 // pred_fallthru
      _
  $region6: #{local_siglip_loss.1} parent=0 // loop_footer
    %s20 = sadd.s32 1, %s16
  $region7: #{local_siglip_loss.1} parent=0 // loop_footer_branch
    %15 = sbr.rel target = $region3
  $region8: #{local_siglip_loss.1} parent=0 // loop_exit
    _

</llo_original>
